<compile_context>
chip_gen: v7x
topology: tpu7x:2x2x1
jax: 0.10.0
libtpu: 0.0.40
codegen_flags: <defaults>
</compile_context>

<pallas_src>
import functools

import jax
import jax.numpy as jnp
from jax.experimental import pallas as pl
from jax.experimental.pallas import tpu as pltpu


LANES = 128          # full vreg lane width; everything stays lane-dense at 128
BIAS_ROWS = 16       # rows reserved for the bias block inside the slab

# Row indices of each (128-lane, zero-padded) bias vector inside the bias block.
_B_BE, _B_B0, _B_G0, _B_BETA0, _B_B1 = 0, 1, 2, 3, 4
_B_BIH0, _B_BHH0, _B_BIH1, _B_BHH1, _B_BG = 5, 6, 7, 8, 9


def _round8(n):
    return -(-n // 8) * 8


def _slab_layout(d_in, h, p):
    """Row offsets (8-aligned) of each parameter block inside the packed slab.

    Weight blocks consumed by full-128-lane activations are padded to 128 rows
    so every matmul is (M,128)@(128,128): no lane slicing of the LHS, and
    garbage in padded activation lanes is killed by the zero weight rows.
    """
    off = {}
    r = 0
    for name, rows in (
        ("we", _round8(d_in)),   # (d_in,128) encoder linear   (K = natural d_in)
        ("w0", _round8(p)),      # (P,128)    UnitCoder E0 lin (K = natural P)
        ("w1", LANES),           # (128,128)  UnitCoder E1 linear
        ("wih0", LANES),         # (128,128)  GRU L0 input weights (hoisted proj)
        ("whh0", LANES),         # (128,128)  GRU L0 hidden weights
        ("wih1", LANES),         # (128,128)  GRU L1 input weights
        ("whh1", LANES),         # (128,128)  GRU L1 hidden weights
        ("wg", LANES),           # (128,128)  GLU output gate
        ("bias", BIAS_ROWS),     # one 128-lane bias vector per row
    ):
        off[name] = r
        r += rows
    return off, r


def pack_params(params, d_in, h, p):
    """Pack every weight/bias into one (rows, 128) f32 slab (single DMA).

    Lane conventions inside the slab / kernel:
      * GRU gate layout per 128-lane row:  r @ [0:H), z @ [H:2H), n @ [2H:3H).
      * The hidden state (and the encoder output Z) lives in the n-gate lanes
        [2H:3H), so the GRU cell needs only two XLU rolls and no lane slices.
      * Weight blocks consuming a hidden state therefore carry their K rows at
        row offset 2H inside their 128-row block (zero rows elsewhere).
    """
    off, rows = _slab_layout(d_in, h, p)
    H, G = h, 3 * h
    NO = 2 * h                       # lane/row offset of the hidden-state lanes
    slab = jnp.zeros((rows, LANES), jnp.float32)

    def put(s, name, row0, arr, lane0):
        r, c = arr.shape
        return s.at[off[name] + row0: off[name] + row0 + r,
                    lane0: lane0 + c].set(arr)

    slab = put(slab, "we", 0, params["we"], NO)      # encoder out -> lanes 2H:3H
    slab = put(slab, "w0", 0, params["w0"], 0)       # E0 out      -> lanes 0:H
    slab = put(slab, "w1", 0, params["w1"], 0)       # v @ lanes 0:H -> rows 0:H
    slab = put(slab, "wih0", 0, params["wih0"], 0)   # v2 @ 0:H     -> rows 0:H
    slab = put(slab, "whh0", NO, params["whh0"], 0)  # h0 @ 2H:3H   -> rows 2H:3H
    slab = put(slab, "wih1", NO, params["wih1"], 0)  # h0 @ 2H:3H   -> rows 2H:3H
    slab = put(slab, "whh1", NO, params["whh1"], 0)  # h1 @ 2H:3H   -> rows 2H:3H
    slab = put(slab, "wg", NO, params["wg"], 0)      # h1 @ 2H:3H   -> rows 2H:3H

    b = off["bias"]

    def putb(s, row, vec, lane0):
        v = jnp.asarray(vec).reshape(1, -1)
        return s.at[b + row: b + row + 1, lane0: lane0 + v.shape[1]].set(v)

    slab = putb(slab, _B_BE, params["be"], NO)       # encoder bias @ lanes 2H:3H
    slab = putb(slab, _B_B0, params["b0"], 0)
    slab = putb(slab, _B_G0, params["g0"], 0)
    slab = putb(slab, _B_BETA0, params["beta0"], 0)
    slab = putb(slab, _B_B1, params["b1"], 0)
    slab = putb(slab, _B_BIH0, params["bih0"], 0)
    slab = putb(slab, _B_BHH0, params["bhh0"], 0)
    slab = putb(slab, _B_BIH1, params["bih1"], 0)
    slab = putb(slab, _B_BHH1, params["bhh1"], 0)
    slab = putb(slab, _B_BG, params["bg"], 0)
    return slab, off


# ----------------------------------------------------------------------------
# Pallas kernel: whole hot path (encoder, UnitCoders, 2-layer GRU, GLU gate)
# in one invocation.  Everything fits comfortably in VMEM; single program.
# ----------------------------------------------------------------------------
def ae_plasvardyn_kernel(x_ref, l_ref, w_ref, out_ref, *,
                         d_in, h, p, seq, batch, off):
    f32 = jnp.float32
    H, B, S = h, batch, seq
    NO = 2 * h                       # lane offset of the hidden state / n gate

    # ---- whole-tile (full 128-lane) reads of the packed parameter slab ------
    we   = w_ref[off["we"]:off["we"] + d_in, :]          # (d_in, 128)
    w0   = w_ref[off["w0"]:off["w0"] + p, :]             # (P, 128)
    w1   = w_ref[off["w1"]:off["w1"] + LANES, :]         # (128, 128)
    wih0 = w_ref[off["wih0"]:off["wih0"] + LANES, :]
    whh0 = w_ref[off["whh0"]:off["whh0"] + LANES, :]
    wih1 = w_ref[off["wih1"]:off["wih1"] + LANES, :]
    whh1 = w_ref[off["whh1"]:off["whh1"] + LANES, :]
    wg   = w_ref[off["wg"]:off["wg"] + LANES, :]
    bias = w_ref[off["bias"]:off["bias"] + BIAS_ROWS, :]  # (16, 128)

    # one-time, full-lane-width bias rows (outside the recurrence)
    be    = bias[_B_BE:_B_BE + 1, :]
    b0    = bias[_B_B0:_B_B0 + 1, :]
    g0    = bias[_B_G0:_B_G0 + 1, :]
    beta0 = bias[_B_BETA0:_B_BETA0 + 1, :]
    b1    = bias[_B_B1:_B_B1 + 1, :]
    bih0  = bias[_B_BIH0:_B_BIH0 + 1, :]
    bg    = bias[_B_BG:_B_BG + 1, :]
    # per-step biases: broadcast to (B,128) ONCE, before the unrolled loop
    bhh0_b = jnp.broadcast_to(bias[_B_BHH0:_B_BHH0 + 1, :], (B, LANES))
    bih1_b = jnp.broadcast_to(bias[_B_BIH1:_B_BIH1 + 1, :], (B, LANES))
    bhh1_b = jnp.broadcast_to(bias[_B_BHH1:_B_BHH1 + 1, :], (B, LANES))

    # ---- encoder: Z = tanh(X @ We + be); lands directly in lanes [2H:3H) ----
    z = jnp.tanh(jnp.dot(x_ref[...], we, preferred_element_type=f32) + be)

    # ---- UnitCoder E0: Linear -> BatchNorm1d (train-mode batch stats) -> tanh
    v = jnp.dot(l_ref[...], w0, preferred_element_type=f32) + b0   # (S*B, 128)
    mu = jnp.mean(v, axis=0, keepdims=True)
    var = jnp.mean((v - mu) ** 2, axis=0, keepdims=True)
    v = jnp.tanh((v - mu) * jax.lax.rsqrt(var + 1e-5) * g0 + beta0)

    # ---- UnitCoder E1 (last layer_dimension entry): Linear only --------------
    v = jnp.dot(v, w1, preferred_element_type=f32) + b1            # data @ 0:H

    # ---- GRU layer-0 input projection, hoisted off the serial recurrence -----
    gi0_all = (jnp.dot(v, wih0, preferred_element_type=f32) + bih0
               ).reshape(S, B, LANES)                              # gates @ 0:3H

    def gru_cell(gi, gh, hprev):
        # Full-width PyTorch GRU cell (gate order r|z|n).  The hidden state
        # lives in the n-gate lanes [2H:3H), so after two XLU rolls everything
        # coincides and the whole cell is whole-vreg VPU/EUP math — no lane
        # slices.  Lanes outside [2H:3H) carry bounded junk that the zero
        # weight rows annihilate at the next matmul.
        s = jax.nn.sigmoid(gi + gh)            # r @ [0:H), z @ [H:2H)     (EUP)
        r_n = pltpu.roll(s, 2 * H, 1)          # r  -> lanes [2H:3H)       (XLU)
        n = jnp.tanh(gi + r_n * gh)            # n  @ lanes [2H:3H)        (EUP)
        z_n = pltpu.roll(s, H, 1)              # z  -> lanes [2H:3H)       (XLU)
        return (1.0 - z_n) * n + z_n * hprev   # h' @ lanes [2H:3H)        (VPU)

    # ---- PlasVarDyn dyn core: 2-layer GRU, initial hidden of each layer = Z -
    h0 = z
    h1 = z
    for t in range(S):  # small static trip count -> fully unrolled
        # Both hidden-side matmuls depend only on h*_{t-1}: issue them at step
        # start so layer-1's gh1 overlaps layer-0's gate math (no concat =>
        # no false dependency on h0_t).
        gh0 = jnp.dot(h0, whh0, preferred_element_type=f32) + bhh0_b
        gh1 = jnp.dot(h1, whh1, preferred_element_type=f32) + bhh1_b
        h0 = gru_cell(gi0_all[t], gh0, h0)
        gi1 = jnp.dot(h0, wih1, preferred_element_type=f32) + bih1_b
        h1 = gru_cell(gi1, gh1, h1)

    # ---- GLU output gate (gate_type='glu'): a * sigmoid(b) -------------------
    g = jnp.dot(h1, wg, preferred_element_type=f32) + bg   # a @ [0:H), b @ [H:2H)
    b_al = pltpu.roll(g, LANES - H, 1)                     # b -> lanes [0:H)
    out_ref[...] = g * jax.nn.sigmoid(b_al)                # lanes [0:H) valid


# ----------------------------------------------------------------------------
# Wrapper: layout glue (time-major L, packed param slab) + pallas_call
# ----------------------------------------------------------------------------
def ae_plasvardyn_forward(X, L, params):
    B, d_in = X.shape
    _, S, P = L.shape
    H = params["we"].shape[1]

    # time-major 2-D slab (S*B, P): row block [t*B:(t+1)*B] is time step t.
    # (B should be a multiple of 8 so every step is sublane-aligned.)
    L_tm = jnp.transpose(L, (1, 0, 2)).reshape(S * B, P)

    slab, off = pack_params(params, d_in, H, P)

    flops = 2 * (
        B * d_in * LANES                 # encoder
        + S * B * P * LANES              # UnitCoder E0 linear
        + S * B * LANES * LANES          # UnitCoder E1 linear
        + S * B * LANES * LANES          # hoisted GRU L0 input projection
        + S * 3 * B * LANES * LANES      # per-step whh0 / wih1 / whh1 matmuls
        + B * LANES * LANES              # GLU output gate
    )
    transcendentals = B * LANES * (2 + 4 * S) + S * B * LANES
    bytes_accessed = 4 * (X.size + L_tm.size + slab.size + B * LANES)

    kernel = functools.partial(ae_plasvardyn_kernel,
                               d_in=d_in, h=H, p=P, seq=S, batch=B, off=off)
    vmem = pl.BlockSpec(memory_space=pltpu.MemorySpace.VMEM)
    # NOTE: at production scale (base_dimension=3648, huge batch) add a batch
    # grid axis with dimension_semantics=("parallel",) so the call tiles for
    # v7x's 64 MiB VMEM and shards across its 2 TensorCores; unnecessary here.
    out_full = pl.pallas_call(
        kernel,
        out_shape=jax.ShapeDtypeStruct((B, LANES), jnp.float32),
        in_specs=[vmem, vmem, vmem],
        out_specs=vmem,
        cost_estimate=pl.CostEstimate(flops=int(flops),
                                      transcendentals=int(transcendentals),
                                      bytes_accessed=int(bytes_accessed)),
    )(X, L_tm, slab)
    return out_full[:, :H]               # drop the zero/junk padding lanes


# ----------------------------------------------------------------------------
# Deterministic parameter construction (synthetic; no checkpoint loading)
# ----------------------------------------------------------------------------
def xavier_uniform(key, shape):
    fan_in, fan_out = shape
    bound = (6.0 / (fan_in + fan_out)) ** 0.5
    return jax.random.uniform(key, shape, jnp.float32, -bound, bound)


def gru_uniform(key, shape, hidden):
    bound = 1.0 / (hidden ** 0.5)
    return jax.random.uniform(key, shape, jnp.float32, -bound, bound)


def make_params(key, d_in, H, P):
    ks = jax.random.split(key, 12)
    p = {}
    # synthetic encoder
    p["we"] = xavier_uniform(ks[0], (d_in, H))
    p["be"] = jnp.zeros((1, H), jnp.float32)
    # UnitCoder E0 (Linear + BatchNorm1d init: weight=1, bias=0)
    p["w0"] = xavier_uniform(ks[1], (P, H))
    p["b0"] = jnp.zeros((1, H), jnp.float32)
    p["g0"] = jnp.ones((1, H), jnp.float32)
    p["beta0"] = jnp.zeros((1, H), jnp.float32)
    # UnitCoder E1 (Linear)
    p["w1"] = xavier_uniform(ks[2], (H, H))
    p["b1"] = jnp.zeros((1, H), jnp.float32)
    # GRU layer 0 / 1 (stored transposed for right-multiply, gate order r|z|n)
    p["wih0"] = gru_uniform(ks[3], (H, 3 * H), H)
    p["whh0"] = gru_uniform(ks[4], (H, 3 * H), H)
    p["bih0"] = gru_uniform(ks[5], (1, 3 * H), H)
    p["bhh0"] = gru_uniform(ks[6], (1, 3 * H), H)
    p["wih1"] = gru_uniform(ks[7], (H, 3 * H), H)
    p["whh1"] = gru_uniform(ks[8], (H, 3 * H), H)
    p["bih1"] = gru_uniform(ks[9], (1, 3 * H), H)
    p["bhh1"] = gru_uniform(ks[10], (1, 3 * H), H)
    # GLU output gate
    p["wg"] = xavier_uniform(ks[11], (H, 2 * H))
    p["bg"] = jnp.zeros((1, 2 * H), jnp.float32)
    return p


# ----------------------------------------------------------------------------
# Pure-JAX reference (straightforward, unfused math) for a correctness check
# ----------------------------------------------------------------------------
def reference_forward(X, L, p):
    B, _ = X.shape
    _, S, _ = L.shape
    H = p["we"].shape[1]
    z = jnp.tanh(X @ p["we"] + p["be"])
    v = jnp.transpose(L, (1, 0, 2)).reshape(S * B, -1)
    v = v @ p["w0"] + p["b0"]
    mu = jnp.mean(v, axis=0, keepdims=True)
    var = jnp.mean((v - mu) ** 2, axis=0, keepdims=True)
    v = jnp.tanh((v - mu) * jax.lax.rsqrt(var + 1e-5) * p["g0"] + p["beta0"])
    v = v @ p["w1"] + p["b1"]

    def cell(x_t, h, wih, whh, bih, bhh):
        gi = x_t @ wih + bih
        gh = h @ whh + bhh
        r = jax.nn.sigmoid(gi[:, :H] + gh[:, :H])
        zt = jax.nn.sigmoid(gi[:, H:2 * H] + gh[:, H:2 * H])
        n = jnp.tanh(gi[:, 2 * H:] + r * gh[:, 2 * H:])
        return (1.0 - zt) * n + zt * h

    h0, h1 = z, z
    for t in range(S):
        x_t = v[t * B:(t + 1) * B, :]
        h0 = cell(x_t, h0, p["wih0"], p["whh0"], p["bih0"], p["bhh0"])
        h1 = cell(h0, h1, p["wih1"], p["whh1"], p["bih1"], p["bhh1"])
    g = h1 @ p["wg"] + p["bg"]
    return g[:, :H] * jax.nn.sigmoid(g[:, H:])


if __name__ == "__main__":
    # small shapes consistent with the module defaults
    B = 8          # batch (multiple of 8 -> sublane-aligned time steps)
    D_IN = 64      # base_dimension (scaled down from 3648)
    H = 16         # hidden_dimension / layer_dimension entries
    S = 8          # sequence_length
    P = 16         # process_variables

    key = jax.random.PRNGKey(0)
    kx, kl, kp = jax.random.split(key, 3)
    X = jax.random.normal(kx, (B, D_IN), jnp.float32)
    L = jax.random.normal(kl, (B, S, P), jnp.float32)
    params = make_params(kp, D_IN, H, P)

    z_hat = ae_plasvardyn_forward(X, L, params)
    z_hat = jax.block_until_ready(z_hat)

    z_ref = reference_forward(X, L, params)
    assert z_hat.shape == (B, H), z_hat.shape
    assert jnp.allclose(z_hat, z_ref, rtol=1e-4, atol=1e-4), (
        "kernel/reference mismatch: max abs diff "
        f"{float(jnp.max(jnp.abs(z_hat - z_ref)))}"
    )
    print("KERNEL_OK")
</pallas_src>

<mosaic_0001>
module attributes {stable_mosaic.version = 11 : i64} {
  func.func @ae_plasvardyn_kernel(%arg0: memref<8x64xf32, #tpu.memory_space<vmem>>, %arg1: memref<64x16xf32, #tpu.memory_space<vmem>>, %arg2: memref<864x128xf32, #tpu.memory_space<vmem>>, %arg3: memref<8x128xf32, #tpu.memory_space<vmem>>) attributes {dimension_semantics = [], scalar_prefetch = 0 : i64, scratch_operands = 0 : i64, tpu.core_type = #tpu.core_type<tc>} {
    %c0 = arith.constant 0 : index
    %c0_0 = arith.constant 0 : index
    %0 = vector.load %arg2[%c0, %c0_0] : memref<864x128xf32, #tpu.memory_space<vmem>>, vector<64x128xf32>
    %c64 = arith.constant 64 : index
    %c0_1 = arith.constant 0 : index
    %1 = vector.load %arg2[%c64, %c0_1] : memref<864x128xf32, #tpu.memory_space<vmem>>, vector<16x128xf32>
    %c80 = arith.constant 80 : index
    %c0_2 = arith.constant 0 : index
    %2 = vector.load %arg2[%c80, %c0_2] : memref<864x128xf32, #tpu.memory_space<vmem>>, vector<128x128xf32>
    %c208 = arith.constant 208 : index
    %c0_3 = arith.constant 0 : index
    %3 = vector.load %arg2[%c208, %c0_3] : memref<864x128xf32, #tpu.memory_space<vmem>>, vector<128x128xf32>
    %c336 = arith.constant 336 : index
    %c0_4 = arith.constant 0 : index
    %4 = vector.load %arg2[%c336, %c0_4] : memref<864x128xf32, #tpu.memory_space<vmem>>, vector<128x128xf32>
    %c464 = arith.constant 464 : index
    %c0_5 = arith.constant 0 : index
    %5 = vector.load %arg2[%c464, %c0_5] : memref<864x128xf32, #tpu.memory_space<vmem>>, vector<128x128xf32>
    %c592 = arith.constant 592 : index
    %c0_6 = arith.constant 0 : index
    %6 = vector.load %arg2[%c592, %c0_6] : memref<864x128xf32, #tpu.memory_space<vmem>>, vector<128x128xf32>
    %c720 = arith.constant 720 : index
    %c0_7 = arith.constant 0 : index
    %7 = vector.load %arg2[%c720, %c0_7] : memref<864x128xf32, #tpu.memory_space<vmem>>, vector<128x128xf32>
    %c848 = arith.constant 848 : index
    %c0_8 = arith.constant 0 : index
    %8 = vector.load %arg2[%c848, %c0_8] : memref<864x128xf32, #tpu.memory_space<vmem>>, vector<16x128xf32>
    %9 = vector.extract_strided_slice %8 {offsets = [0, 0], sizes = [1, 128], strides = [1, 1]} : vector<16x128xf32> to vector<1x128xf32>
    %10 = vector.extract_strided_slice %8 {offsets = [1, 0], sizes = [1, 128], strides = [1, 1]} : vector<16x128xf32> to vector<1x128xf32>
    %11 = vector.extract_strided_slice %8 {offsets = [2, 0], sizes = [1, 128], strides = [1, 1]} : vector<16x128xf32> to vector<1x128xf32>
    %12 = vector.extract_strided_slice %8 {offsets = [3, 0], sizes = [1, 128], strides = [1, 1]} : vector<16x128xf32> to vector<1x128xf32>
    %13 = vector.extract_strided_slice %8 {offsets = [4, 0], sizes = [1, 128], strides = [1, 1]} : vector<16x128xf32> to vector<1x128xf32>
    %14 = vector.extract_strided_slice %8 {offsets = [5, 0], sizes = [1, 128], strides = [1, 1]} : vector<16x128xf32> to vector<1x128xf32>
    %15 = vector.extract_strided_slice %8 {offsets = [9, 0], sizes = [1, 128], strides = [1, 1]} : vector<16x128xf32> to vector<1x128xf32>
    %16 = vector.extract_strided_slice %8 {offsets = [6, 0], sizes = [1, 128], strides = [1, 1]} : vector<16x128xf32> to vector<1x128xf32>
    %17 = vector.shape_cast %16 : vector<1x128xf32> to vector<1x128xf32>
    %18 = vector.broadcast %17 : vector<1x128xf32> to vector<8x128xf32>
    %19 = vector.extract_strided_slice %8 {offsets = [7, 0], sizes = [1, 128], strides = [1, 1]} : vector<16x128xf32> to vector<1x128xf32>
    %20 = vector.shape_cast %19 : vector<1x128xf32> to vector<1x128xf32>
    %21 = vector.broadcast %20 : vector<1x128xf32> to vector<8x128xf32>
    %22 = vector.extract_strided_slice %8 {offsets = [8, 0], sizes = [1, 128], strides = [1, 1]} : vector<16x128xf32> to vector<1x128xf32>
    %23 = vector.shape_cast %22 : vector<1x128xf32> to vector<1x128xf32>
    %24 = vector.broadcast %23 : vector<1x128xf32> to vector<8x128xf32>
    %c0_9 = arith.constant 0 : index
    %c0_10 = arith.constant 0 : index
    %25 = vector.load %arg0[%c0_9, %c0_10] : memref<8x64xf32, #tpu.memory_space<vmem>>, vector<8x64xf32>
    %cst = arith.constant dense<0.000000e+00> : vector<8x128xf32>
    %26 = tpu.matmul %25, %0, %cst {dimension_numbers = #tpu.dot_dimension_numbers<[1], [0], [0], [1], [0, 0, 1, 1], [], []>} : vector<8x64xf32>, vector<64x128xf32>, vector<8x128xf32> -> vector<8x128xf32>
    %27 = vector.broadcast %9 : vector<1x128xf32> to vector<8x128xf32>
    %28 = arith.addf %26, %27 : vector<8x128xf32>
    %29 = math.tanh %28 : vector<8x128xf32>
    %c0_11 = arith.constant 0 : index
    %c0_12 = arith.constant 0 : index
    %30 = vector.load %arg1[%c0_11, %c0_12] : memref<64x16xf32, #tpu.memory_space<vmem>>, vector<64x16xf32>
    %cst_13 = arith.constant dense<0.000000e+00> : vector<64x128xf32>
    %31 = tpu.matmul %30, %1, %cst_13 {dimension_numbers = #tpu.dot_dimension_numbers<[1], [0], [0], [1], [0, 0, 1, 1], [], []>} : vector<64x16xf32>, vector<16x128xf32>, vector<64x128xf32> -> vector<64x128xf32>
    %32 = vector.broadcast %10 : vector<1x128xf32> to vector<64x128xf32>
    %33 = arith.addf %31, %32 : vector<64x128xf32>
    %cst_14 = arith.constant dense<0.000000e+00> : vector<128xf32>
    %34 = vector.multi_reduction <add>, %33, %cst_14 [0] : vector<64x128xf32> to vector<128xf32>
    %35 = vector.shape_cast %34 : vector<128xf32> to vector<1x128xf32>
    %cst_15 = arith.constant 6.400000e+01 : f32
    %36 = vector.broadcast %cst_15 : f32 to vector<1x128xf32>
    %37 = arith.divf %35, %36 : vector<1x128xf32>
    %38 = vector.broadcast %37 : vector<1x128xf32> to vector<64x128xf32>
    %39 = arith.subf %33, %38 : vector<64x128xf32>
    %40 = arith.mulf %39, %39 : vector<64x128xf32>
    %cst_16 = arith.constant dense<0.000000e+00> : vector<128xf32>
    %41 = vector.multi_reduction <add>, %40, %cst_16 [0] : vector<64x128xf32> to vector<128xf32>
    %42 = vector.shape_cast %41 : vector<128xf32> to vector<1x128xf32>
    %cst_17 = arith.constant 6.400000e+01 : f32
    %43 = vector.broadcast %cst_17 : f32 to vector<1x128xf32>
    %44 = arith.divf %42, %43 : vector<1x128xf32>
    %45 = vector.broadcast %37 : vector<1x128xf32> to vector<64x128xf32>
    %46 = arith.subf %33, %45 : vector<64x128xf32>
    %cst_18 = arith.constant 9.99999974E-6 : f32
    %47 = vector.broadcast %cst_18 : f32 to vector<1x128xf32>
    %48 = arith.addf %44, %47 : vector<1x128xf32>
    %49 = math.rsqrt %48 : vector<1x128xf32>
    %50 = vector.broadcast %49 : vector<1x128xf32> to vector<64x128xf32>
    %51 = arith.mulf %46, %50 : vector<64x128xf32>
    %52 = vector.broadcast %11 : vector<1x128xf32> to vector<64x128xf32>
    %53 = arith.mulf %51, %52 : vector<64x128xf32>
    %54 = vector.broadcast %12 : vector<1x128xf32> to vector<64x128xf32>
    %55 = arith.addf %53, %54 : vector<64x128xf32>
    %56 = math.tanh %55 : vector<64x128xf32>
    %cst_19 = arith.constant dense<0.000000e+00> : vector<64x128xf32>
    %57 = tpu.matmul %56, %2, %cst_19 {dimension_numbers = #tpu.dot_dimension_numbers<[1], [0], [0], [1], [0, 0, 1, 1], [], []>} : vector<64x128xf32>, vector<128x128xf32>, vector<64x128xf32> -> vector<64x128xf32>
    %58 = vector.broadcast %13 : vector<1x128xf32> to vector<64x128xf32>
    %59 = arith.addf %57, %58 : vector<64x128xf32>
    %cst_20 = arith.constant dense<0.000000e+00> : vector<64x128xf32>
    %60 = tpu.matmul %59, %3, %cst_20 {dimension_numbers = #tpu.dot_dimension_numbers<[1], [0], [0], [1], [0, 0, 1, 1], [], []>} : vector<64x128xf32>, vector<128x128xf32>, vector<64x128xf32> -> vector<64x128xf32>
    %61 = vector.broadcast %14 : vector<1x128xf32> to vector<64x128xf32>
    %62 = arith.addf %60, %61 : vector<64x128xf32>
    %63 = vector.shape_cast %62 : vector<64x128xf32> to vector<8x8x128xf32>
    %cst_21 = arith.constant dense<0.000000e+00> : vector<8x128xf32>
    %64 = tpu.matmul %29, %4, %cst_21 {dimension_numbers = #tpu.dot_dimension_numbers<[1], [0], [0], [1], [0, 0, 1, 1], [], []>} : vector<8x128xf32>, vector<128x128xf32>, vector<8x128xf32> -> vector<8x128xf32>
    %65 = arith.addf %64, %18 : vector<8x128xf32>
    %cst_22 = arith.constant dense<0.000000e+00> : vector<8x128xf32>
    %66 = tpu.matmul %29, %6, %cst_22 {dimension_numbers = #tpu.dot_dimension_numbers<[1], [0], [0], [1], [0, 0, 1, 1], [], []>} : vector<8x128xf32>, vector<128x128xf32>, vector<8x128xf32> -> vector<8x128xf32>
    %67 = arith.addf %66, %24 : vector<8x128xf32>
    %68 = vector.extract_strided_slice %63 {offsets = [0, 0, 0], sizes = [1, 8, 128], strides = [1, 1, 1]} : vector<8x8x128xf32> to vector<1x8x128xf32>
    %69 = vector.shape_cast %68 : vector<1x8x128xf32> to vector<8x128xf32>
    %70 = arith.addf %69, %65 : vector<8x128xf32>
    %71 = arith.negf %70 : vector<8x128xf32>
    %72 = math.exp %71 : vector<8x128xf32>
    %cst_23 = arith.constant 1.000000e+00 : f32
    %73 = vector.broadcast %cst_23 : f32 to vector<8x128xf32>
    %74 = arith.addf %73, %72 : vector<8x128xf32>
    %75 = arith.divf %73, %74 : vector<8x128xf32>
    %c32_i32 = arith.constant 32 : i32
    %76 = tpu.dynamic_rotate %75 by %c32_i32 dim 1 : vector<8x128xf32>, i32 -> vector<8x128xf32>
    %77 = arith.mulf %76, %65 : vector<8x128xf32>
    %78 = arith.addf %69, %77 : vector<8x128xf32>
    %79 = math.tanh %78 : vector<8x128xf32>
    %c16_i32 = arith.constant 16 : i32
    %80 = tpu.dynamic_rotate %75 by %c16_i32 dim 1 : vector<8x128xf32>, i32 -> vector<8x128xf32>
    %cst_24 = arith.constant 1.000000e+00 : f32
    %81 = vector.broadcast %cst_24 : f32 to vector<8x128xf32>
    %82 = arith.subf %81, %80 : vector<8x128xf32>
    %83 = arith.mulf %82, %79 : vector<8x128xf32>
    %84 = arith.mulf %80, %29 : vector<8x128xf32>
    %85 = arith.addf %83, %84 : vector<8x128xf32>
    %cst_25 = arith.constant dense<0.000000e+00> : vector<8x128xf32>
    %86 = tpu.matmul %85, %5, %cst_25 {dimension_numbers = #tpu.dot_dimension_numbers<[1], [0], [0], [1], [0, 0, 1, 1], [], []>} : vector<8x128xf32>, vector<128x128xf32>, vector<8x128xf32> -> vector<8x128xf32>
    %87 = arith.addf %86, %21 : vector<8x128xf32>
    %88 = arith.addf %87, %67 : vector<8x128xf32>
    %89 = arith.negf %88 : vector<8x128xf32>
    %90 = math.exp %89 : vector<8x128xf32>
    %cst_26 = arith.constant 1.000000e+00 : f32
    %91 = vector.broadcast %cst_26 : f32 to vector<8x128xf32>
    %92 = arith.addf %91, %90 : vector<8x128xf32>
    %93 = arith.divf %91, %92 : vector<8x128xf32>
    %c32_i32_27 = arith.constant 32 : i32
    %94 = tpu.dynamic_rotate %93 by %c32_i32_27 dim 1 : vector<8x128xf32>, i32 -> vector<8x128xf32>
    %95 = arith.mulf %94, %67 : vector<8x128xf32>
    %96 = arith.addf %87, %95 : vector<8x128xf32>
    %97 = math.tanh %96 : vector<8x128xf32>
    %c16_i32_28 = arith.constant 16 : i32
    %98 = tpu.dynamic_rotate %93 by %c16_i32_28 dim 1 : vector<8x128xf32>, i32 -> vector<8x128xf32>
    %cst_29 = arith.constant 1.000000e+00 : f32
    %99 = vector.broadcast %cst_29 : f32 to vector<8x128xf32>
    %100 = arith.subf %99, %98 : vector<8x128xf32>
    %101 = arith.mulf %100, %97 : vector<8x128xf32>
    %102 = arith.mulf %98, %29 : vector<8x128xf32>
    %103 = arith.addf %101, %102 : vector<8x128xf32>
    %cst_30 = arith.constant dense<0.000000e+00> : vector<8x128xf32>
    %104 = tpu.matmul %85, %4, %cst_30 {dimension_numbers = #tpu.dot_dimension_numbers<[1], [0], [0], [1], [0, 0, 1, 1], [], []>} : vector<8x128xf32>, vector<128x128xf32>, vector<8x128xf32> -> vector<8x128xf32>
    %105 = arith.addf %104, %18 : vector<8x128xf32>
    %cst_31 = arith.constant dense<0.000000e+00> : vector<8x128xf32>
    %106 = tpu.matmul %103, %6, %cst_31 {dimension_numbers = #tpu.dot_dimension_numbers<[1], [0], [0], [1], [0, 0, 1, 1], [], []>} : vector<8x128xf32>, vector<128x128xf32>, vector<8x128xf32> -> vector<8x128xf32>
    %107 = arith.addf %106, %24 : vector<8x128xf32>
    %108 = vector.extract_strided_slice %63 {offsets = [1, 0, 0], sizes = [1, 8, 128], strides = [1, 1, 1]} : vector<8x8x128xf32> to vector<1x8x128xf32>
    %109 = vector.shape_cast %108 : vector<1x8x128xf32> to vector<8x128xf32>
    %110 = arith.addf %109, %105 : vector<8x128xf32>
    %111 = arith.negf %110 : vector<8x128xf32>
    %112 = math.exp %111 : vector<8x128xf32>
    %cst_32 = arith.constant 1.000000e+00 : f32
    %113 = vector.broadcast %cst_32 : f32 to vector<8x128xf32>
    %114 = arith.addf %113, %112 : vector<8x128xf32>
    %115 = arith.divf %113, %114 : vector<8x128xf32>
    %c32_i32_33 = arith.constant 32 : i32
    %116 = tpu.dynamic_rotate %115 by %c32_i32_33 dim 1 : vector<8x128xf32>, i32 -> vector<8x128xf32>
    %117 = arith.mulf %116, %105 : vector<8x128xf32>
    %118 = arith.addf %109, %117 : vector<8x128xf32>
    %119 = math.tanh %118 : vector<8x128xf32>
    %c16_i32_34 = arith.constant 16 : i32
    %120 = tpu.dynamic_rotate %115 by %c16_i32_34 dim 1 : vector<8x128xf32>, i32 -> vector<8x128xf32>
    %cst_35 = arith.constant 1.000000e+00 : f32
    %121 = vector.broadcast %cst_35 : f32 to vector<8x128xf32>
    %122 = arith.subf %121, %120 : vector<8x128xf32>
    %123 = arith.mulf %122, %119 : vector<8x128xf32>
    %124 = arith.mulf %120, %85 : vector<8x128xf32>
    %125 = arith.addf %123, %124 : vector<8x128xf32>
    %cst_36 = arith.constant dense<0.000000e+00> : vector<8x128xf32>
    %126 = tpu.matmul %125, %5, %cst_36 {dimension_numbers = #tpu.dot_dimension_numbers<[1], [0], [0], [1], [0, 0, 1, 1], [], []>} : vector<8x128xf32>, vector<128x128xf32>, vector<8x128xf32> -> vector<8x128xf32>
    %127 = arith.addf %126, %21 : vector<8x128xf32>
    %128 = arith.addf %127, %107 : vector<8x128xf32>
    %129 = arith.negf %128 : vector<8x128xf32>
    %130 = math.exp %129 : vector<8x128xf32>
    %cst_37 = arith.constant 1.000000e+00 : f32
    %131 = vector.broadcast %cst_37 : f32 to vector<8x128xf32>
    %132 = arith.addf %131, %130 : vector<8x128xf32>
    %133 = arith.divf %131, %132 : vector<8x128xf32>
    %c32_i32_38 = arith.constant 32 : i32
    %134 = tpu.dynamic_rotate %133 by %c32_i32_38 dim 1 : vector<8x128xf32>, i32 -> vector<8x128xf32>
    %135 = arith.mulf %134, %107 : vector<8x128xf32>
    %136 = arith.addf %127, %135 : vector<8x128xf32>
    %137 = math.tanh %136 : vector<8x128xf32>
    %c16_i32_39 = arith.constant 16 : i32
    %138 = tpu.dynamic_rotate %133 by %c16_i32_39 dim 1 : vector<8x128xf32>, i32 -> vector<8x128xf32>
    %cst_40 = arith.constant 1.000000e+00 : f32
    %139 = vector.broadcast %cst_40 : f32 to vector<8x128xf32>
    %140 = arith.subf %139, %138 : vector<8x128xf32>
    %141 = arith.mulf %140, %137 : vector<8x128xf32>
    %142 = arith.mulf %138, %103 : vector<8x128xf32>
    %143 = arith.addf %141, %142 : vector<8x128xf32>
    %cst_41 = arith.constant dense<0.000000e+00> : vector<8x128xf32>
    %144 = tpu.matmul %125, %4, %cst_41 {dimension_numbers = #tpu.dot_dimension_numbers<[1], [0], [0], [1], [0, 0, 1, 1], [], []>} : vector<8x128xf32>, vector<128x128xf32>, vector<8x128xf32> -> vector<8x128xf32>
    %145 = arith.addf %144, %18 : vector<8x128xf32>
    %cst_42 = arith.constant dense<0.000000e+00> : vector<8x128xf32>
    %146 = tpu.matmul %143, %6, %cst_42 {dimension_numbers = #tpu.dot_dimension_numbers<[1], [0], [0], [1], [0, 0, 1, 1], [], []>} : vector<8x128xf32>, vector<128x128xf32>, vector<8x128xf32> -> vector<8x128xf32>
    %147 = arith.addf %146, %24 : vector<8x128xf32>
    %148 = vector.extract_strided_slice %63 {offsets = [2, 0, 0], sizes = [1, 8, 128], strides = [1, 1, 1]} : vector<8x8x128xf32> to vector<1x8x128xf32>
    %149 = vector.shape_cast %148 : vector<1x8x128xf32> to vector<8x128xf32>
    %150 = arith.addf %149, %145 : vector<8x128xf32>
    %151 = arith.negf %150 : vector<8x128xf32>
    %152 = math.exp %151 : vector<8x128xf32>
    %cst_43 = arith.constant 1.000000e+00 : f32
    %153 = vector.broadcast %cst_43 : f32 to vector<8x128xf32>
    %154 = arith.addf %153, %152 : vector<8x128xf32>
    %155 = arith.divf %153, %154 : vector<8x128xf32>
    %c32_i32_44 = arith.constant 32 : i32
    %156 = tpu.dynamic_rotate %155 by %c32_i32_44 dim 1 : vector<8x128xf32>, i32 -> vector<8x128xf32>
    %157 = arith.mulf %156, %145 : vector<8x128xf32>
    %158 = arith.addf %149, %157 : vector<8x128xf32>
    %159 = math.tanh %158 : vector<8x128xf32>
    %c16_i32_45 = arith.constant 16 : i32
    %160 = tpu.dynamic_rotate %155 by %c16_i32_45 dim 1 : vector<8x128xf32>, i32 -> vector<8x128xf32>
    %cst_46 = arith.constant 1.000000e+00 : f32
    %161 = vector.broadcast %cst_46 : f32 to vector<8x128xf32>
    %162 = arith.subf %161, %160 : vector<8x128xf32>
    %163 = arith.mulf %162, %159 : vector<8x128xf32>
    %164 = arith.mulf %160, %125 : vector<8x128xf32>
    %165 = arith.addf %163, %164 : vector<8x128xf32>
    %cst_47 = arith.constant dense<0.000000e+00> : vector<8x128xf32>
    %166 = tpu.matmul %165, %5, %cst_47 {dimension_numbers = #tpu.dot_dimension_numbers<[1], [0], [0], [1], [0, 0, 1, 1], [], []>} : vector<8x128xf32>, vector<128x128xf32>, vector<8x128xf32> -> vector<8x128xf32>
    %167 = arith.addf %166, %21 : vector<8x128xf32>
    %168 = arith.addf %167, %147 : vector<8x128xf32>
    %169 = arith.negf %168 : vector<8x128xf32>
    %170 = math.exp %169 : vector<8x128xf32>
    %cst_48 = arith.constant 1.000000e+00 : f32
    %171 = vector.broadcast %cst_48 : f32 to vector<8x128xf32>
    %172 = arith.addf %171, %170 : vector<8x128xf32>
    %173 = arith.divf %171, %172 : vector<8x128xf32>
    %c32_i32_49 = arith.constant 32 : i32
    %174 = tpu.dynamic_rotate %173 by %c32_i32_49 dim 1 : vector<8x128xf32>, i32 -> vector<8x128xf32>
    %175 = arith.mulf %174, %147 : vector<8x128xf32>
    %176 = arith.addf %167, %175 : vector<8x128xf32>
    %177 = math.tanh %176 : vector<8x128xf32>
    %c16_i32_50 = arith.constant 16 : i32
    %178 = tpu.dynamic_rotate %173 by %c16_i32_50 dim 1 : vector<8x128xf32>, i32 -> vector<8x128xf32>
    %cst_51 = arith.constant 1.000000e+00 : f32
    %179 = vector.broadcast %cst_51 : f32 to vector<8x128xf32>
    %180 = arith.subf %179, %178 : vector<8x128xf32>
    %181 = arith.mulf %180, %177 : vector<8x128xf32>
    %182 = arith.mulf %178, %143 : vector<8x128xf32>
    %183 = arith.addf %181, %182 : vector<8x128xf32>
    %cst_52 = arith.constant dense<0.000000e+00> : vector<8x128xf32>
    %184 = tpu.matmul %165, %4, %cst_52 {dimension_numbers = #tpu.dot_dimension_numbers<[1], [0], [0], [1], [0, 0, 1, 1], [], []>} : vector<8x128xf32>, vector<128x128xf32>, vector<8x128xf32> -> vector<8x128xf32>
    %185 = arith.addf %184, %18 : vector<8x128xf32>
    %cst_53 = arith.constant dense<0.000000e+00> : vector<8x128xf32>
    %186 = tpu.matmul %183, %6, %cst_53 {dimension_numbers = #tpu.dot_dimension_numbers<[1], [0], [0], [1], [0, 0, 1, 1], [], []>} : vector<8x128xf32>, vector<128x128xf32>, vector<8x128xf32> -> vector<8x128xf32>
    %187 = arith.addf %186, %24 : vector<8x128xf32>
    %188 = vector.extract_strided_slice %63 {offsets = [3, 0, 0], sizes = [1, 8, 128], strides = [1, 1, 1]} : vector<8x8x128xf32> to vector<1x8x128xf32>
    %189 = vector.shape_cast %188 : vector<1x8x128xf32> to vector<8x128xf32>
    %190 = arith.addf %189, %185 : vector<8x128xf32>
    %191 = arith.negf %190 : vector<8x128xf32>
    %192 = math.exp %191 : vector<8x128xf32>
    %cst_54 = arith.constant 1.000000e+00 : f32
    %193 = vector.broadcast %cst_54 : f32 to vector<8x128xf32>
    %194 = arith.addf %193, %192 : vector<8x128xf32>
    %195 = arith.divf %193, %194 : vector<8x128xf32>
    %c32_i32_55 = arith.constant 32 : i32
    %196 = tpu.dynamic_rotate %195 by %c32_i32_55 dim 1 : vector<8x128xf32>, i32 -> vector<8x128xf32>
    %197 = arith.mulf %196, %185 : vector<8x128xf32>
    %198 = arith.addf %189, %197 : vector<8x128xf32>
    %199 = math.tanh %198 : vector<8x128xf32>
    %c16_i32_56 = arith.constant 16 : i32
    %200 = tpu.dynamic_rotate %195 by %c16_i32_56 dim 1 : vector<8x128xf32>, i32 -> vector<8x128xf32>
    %cst_57 = arith.constant 1.000000e+00 : f32
    %201 = vector.broadcast %cst_57 : f32 to vector<8x128xf32>
    %202 = arith.subf %201, %200 : vector<8x128xf32>
    %203 = arith.mulf %202, %199 : vector<8x128xf32>
    %204 = arith.mulf %200, %165 : vector<8x128xf32>
    %205 = arith.addf %203, %204 : vector<8x128xf32>
    %cst_58 = arith.constant dense<0.000000e+00> : vector<8x128xf32>
    %206 = tpu.matmul %205, %5, %cst_58 {dimension_numbers = #tpu.dot_dimension_numbers<[1], [0], [0], [1], [0, 0, 1, 1], [], []>} : vector<8x128xf32>, vector<128x128xf32>, vector<8x128xf32> -> vector<8x128xf32>
    %207 = arith.addf %206, %21 : vector<8x128xf32>
    %208 = arith.addf %207, %187 : vector<8x128xf32>
    %209 = arith.negf %208 : vector<8x128xf32>
    %210 = math.exp %209 : vector<8x128xf32>
    %cst_59 = arith.constant 1.000000e+00 : f32
    %211 = vector.broadcast %cst_59 : f32 to vector<8x128xf32>
    %212 = arith.addf %211, %210 : vector<8x128xf32>
    %213 = arith.divf %211, %212 : vector<8x128xf32>
    %c32_i32_60 = arith.constant 32 : i32
    %214 = tpu.dynamic_rotate %213 by %c32_i32_60 dim 1 : vector<8x128xf32>, i32 -> vector<8x128xf32>
    %215 = arith.mulf %214, %187 : vector<8x128xf32>
    %216 = arith.addf %207, %215 : vector<8x128xf32>
    %217 = math.tanh %216 : vector<8x128xf32>
    %c16_i32_61 = arith.constant 16 : i32
    %218 = tpu.dynamic_rotate %213 by %c16_i32_61 dim 1 : vector<8x128xf32>, i32 -> vector<8x128xf32>
    %cst_62 = arith.constant 1.000000e+00 : f32
    %219 = vector.broadcast %cst_62 : f32 to vector<8x128xf32>
    %220 = arith.subf %219, %218 : vector<8x128xf32>
    %221 = arith.mulf %220, %217 : vector<8x128xf32>
    %222 = arith.mulf %218, %183 : vector<8x128xf32>
    %223 = arith.addf %221, %222 : vector<8x128xf32>
    %cst_63 = arith.constant dense<0.000000e+00> : vector<8x128xf32>
    %224 = tpu.matmul %205, %4, %cst_63 {dimension_numbers = #tpu.dot_dimension_numbers<[1], [0], [0], [1], [0, 0, 1, 1], [], []>} : vector<8x128xf32>, vector<128x128xf32>, vector<8x128xf32> -> vector<8x128xf32>
    %225 = arith.addf %224, %18 : vector<8x128xf32>
    %cst_64 = arith.constant dense<0.000000e+00> : vector<8x128xf32>
    %226 = tpu.matmul %223, %6, %cst_64 {dimension_numbers = #tpu.dot_dimension_numbers<[1], [0], [0], [1], [0, 0, 1, 1], [], []>} : vector<8x128xf32>, vector<128x128xf32>, vector<8x128xf32> -> vector<8x128xf32>
    %227 = arith.addf %226, %24 : vector<8x128xf32>
    %228 = vector.extract_strided_slice %63 {offsets = [4, 0, 0], sizes = [1, 8, 128], strides = [1, 1, 1]} : vector<8x8x128xf32> to vector<1x8x128xf32>
    %229 = vector.shape_cast %228 : vector<1x8x128xf32> to vector<8x128xf32>
    %230 = arith.addf %229, %225 : vector<8x128xf32>
    %231 = arith.negf %230 : vector<8x128xf32>
    %232 = math.exp %231 : vector<8x128xf32>
    %cst_65 = arith.constant 1.000000e+00 : f32
    %233 = vector.broadcast %cst_65 : f32 to vector<8x128xf32>
    %234 = arith.addf %233, %232 : vector<8x128xf32>
    %235 = arith.divf %233, %234 : vector<8x128xf32>
    %c32_i32_66 = arith.constant 32 : i32
    %236 = tpu.dynamic_rotate %235 by %c32_i32_66 dim 1 : vector<8x128xf32>, i32 -> vector<8x128xf32>
    %237 = arith.mulf %236, %225 : vector<8x128xf32>
    %238 = arith.addf %229, %237 : vector<8x128xf32>
    %239 = math.tanh %238 : vector<8x128xf32>
    %c16_i32_67 = arith.constant 16 : i32
    %240 = tpu.dynamic_rotate %235 by %c16_i32_67 dim 1 : vector<8x128xf32>, i32 -> vector<8x128xf32>
    %cst_68 = arith.constant 1.000000e+00 : f32
    %241 = vector.broadcast %cst_68 : f32 to vector<8x128xf32>
    %242 = arith.subf %241, %240 : vector<8x128xf32>
    %243 = arith.mulf %242, %239 : vector<8x128xf32>
    %244 = arith.mulf %240, %205 : vector<8x128xf32>
    %245 = arith.addf %243, %244 : vector<8x128xf32>
    %cst_69 = arith.constant dense<0.000000e+00> : vector<8x128xf32>
    %246 = tpu.matmul %245, %5, %cst_69 {dimension_numbers = #tpu.dot_dimension_numbers<[1], [0], [0], [1], [0, 0, 1, 1], [], []>} : vector<8x128xf32>, vector<128x128xf32>, vector<8x128xf32> -> vector<8x128xf32>
    %247 = arith.addf %246, %21 : vector<8x128xf32>
    %248 = arith.addf %247, %227 : vector<8x128xf32>
    %249 = arith.negf %248 : vector<8x128xf32>
    %250 = math.exp %249 : vector<8x128xf32>
    %cst_70 = arith.constant 1.000000e+00 : f32
    %251 = vector.broadcast %cst_70 : f32 to vector<8x128xf32>
    %252 = arith.addf %251, %250 : vector<8x128xf32>
    %253 = arith.divf %251, %252 : vector<8x128xf32>
    %c32_i32_71 = arith.constant 32 : i32
    %254 = tpu.dynamic_rotate %253 by %c32_i32_71 dim 1 : vector<8x128xf32>, i32 -> vector<8x128xf32>
    %255 = arith.mulf %254, %227 : vector<8x128xf32>
    %256 = arith.addf %247, %255 : vector<8x128xf32>
    %257 = math.tanh %256 : vector<8x128xf32>
    %c16_i32_72 = arith.constant 16 : i32
    %258 = tpu.dynamic_rotate %253 by %c16_i32_72 dim 1 : vector<8x128xf32>, i32 -> vector<8x128xf32>
    %cst_73 = arith.constant 1.000000e+00 : f32
    %259 = vector.broadcast %cst_73 : f32 to vector<8x128xf32>
    %260 = arith.subf %259, %258 : vector<8x128xf32>
    %261 = arith.mulf %260, %257 : vector<8x128xf32>
    %262 = arith.mulf %258, %223 : vector<8x128xf32>
    %263 = arith.addf %261, %262 : vector<8x128xf32>
    %cst_74 = arith.constant dense<0.000000e+00> : vector<8x128xf32>
    %264 = tpu.matmul %245, %4, %cst_74 {dimension_numbers = #tpu.dot_dimension_numbers<[1], [0], [0], [1], [0, 0, 1, 1], [], []>} : vector<8x128xf32>, vector<128x128xf32>, vector<8x128xf32> -> vector<8x128xf32>
    %265 = arith.addf %264, %18 : vector<8x128xf32>
    %cst_75 = arith.constant dense<0.000000e+00> : vector<8x128xf32>
    %266 = tpu.matmul %263, %6, %cst_75 {dimension_numbers = #tpu.dot_dimension_numbers<[1], [0], [0], [1], [0, 0, 1, 1], [], []>} : vector<8x128xf32>, vector<128x128xf32>, vector<8x128xf32> -> vector<8x128xf32>
    %267 = arith.addf %266, %24 : vector<8x128xf32>
    %268 = vector.extract_strided_slice %63 {offsets = [5, 0, 0], sizes = [1, 8, 128], strides = [1, 1, 1]} : vector<8x8x128xf32> to vector<1x8x128xf32>
    %269 = vector.shape_cast %268 : vector<1x8x128xf32> to vector<8x128xf32>
    %270 = arith.addf %269, %265 : vector<8x128xf32>
    %271 = arith.negf %270 : vector<8x128xf32>
    %272 = math.exp %271 : vector<8x128xf32>
    %cst_76 = arith.constant 1.000000e+00 : f32
    %273 = vector.broadcast %cst_76 : f32 to vector<8x128xf32>
    %274 = arith.addf %273, %272 : vector<8x128xf32>
    %275 = arith.divf %273, %274 : vector<8x128xf32>
    %c32_i32_77 = arith.constant 32 : i32
    %276 = tpu.dynamic_rotate %275 by %c32_i32_77 dim 1 : vector<8x128xf32>, i32 -> vector<8x128xf32>
    %277 = arith.mulf %276, %265 : vector<8x128xf32>
    %278 = arith.addf %269, %277 : vector<8x128xf32>
    %279 = math.tanh %278 : vector<8x128xf32>
    %c16_i32_78 = arith.constant 16 : i32
    %280 = tpu.dynamic_rotate %275 by %c16_i32_78 dim 1 : vector<8x128xf32>, i32 -> vector<8x128xf32>
    %cst_79 = arith.constant 1.000000e+00 : f32
    %281 = vector.broadcast %cst_79 : f32 to vector<8x128xf32>
    %282 = arith.subf %281, %280 : vector<8x128xf32>
    %283 = arith.mulf %282, %279 : vector<8x128xf32>
    %284 = arith.mulf %280, %245 : vector<8x128xf32>
    %285 = arith.addf %283, %284 : vector<8x128xf32>
    %cst_80 = arith.constant dense<0.000000e+00> : vector<8x128xf32>
    %286 = tpu.matmul %285, %5, %cst_80 {dimension_numbers = #tpu.dot_dimension_numbers<[1], [0], [0], [1], [0, 0, 1, 1], [], []>} : vector<8x128xf32>, vector<128x128xf32>, vector<8x128xf32> -> vector<8x128xf32>
    %287 = arith.addf %286, %21 : vector<8x128xf32>
    %288 = arith.addf %287, %267 : vector<8x128xf32>
    %289 = arith.negf %288 : vector<8x128xf32>
    %290 = math.exp %289 : vector<8x128xf32>
    %cst_81 = arith.constant 1.000000e+00 : f32
    %291 = vector.broadcast %cst_81 : f32 to vector<8x128xf32>
    %292 = arith.addf %291, %290 : vector<8x128xf32>
    %293 = arith.divf %291, %292 : vector<8x128xf32>
    %c32_i32_82 = arith.constant 32 : i32
    %294 = tpu.dynamic_rotate %293 by %c32_i32_82 dim 1 : vector<8x128xf32>, i32 -> vector<8x128xf32>
    %295 = arith.mulf %294, %267 : vector<8x128xf32>
    %296 = arith.addf %287, %295 : vector<8x128xf32>
    %297 = math.tanh %296 : vector<8x128xf32>
    %c16_i32_83 = arith.constant 16 : i32
    %298 = tpu.dynamic_rotate %293 by %c16_i32_83 dim 1 : vector<8x128xf32>, i32 -> vector<8x128xf32>
    %cst_84 = arith.constant 1.000000e+00 : f32
    %299 = vector.broadcast %cst_84 : f32 to vector<8x128xf32>
    %300 = arith.subf %299, %298 : vector<8x128xf32>
    %301 = arith.mulf %300, %297 : vector<8x128xf32>
    %302 = arith.mulf %298, %263 : vector<8x128xf32>
    %303 = arith.addf %301, %302 : vector<8x128xf32>
    %cst_85 = arith.constant dense<0.000000e+00> : vector<8x128xf32>
    %304 = tpu.matmul %285, %4, %cst_85 {dimension_numbers = #tpu.dot_dimension_numbers<[1], [0], [0], [1], [0, 0, 1, 1], [], []>} : vector<8x128xf32>, vector<128x128xf32>, vector<8x128xf32> -> vector<8x128xf32>
    %305 = arith.addf %304, %18 : vector<8x128xf32>
    %cst_86 = arith.constant dense<0.000000e+00> : vector<8x128xf32>
    %306 = tpu.matmul %303, %6, %cst_86 {dimension_numbers = #tpu.dot_dimension_numbers<[1], [0], [0], [1], [0, 0, 1, 1], [], []>} : vector<8x128xf32>, vector<128x128xf32>, vector<8x128xf32> -> vector<8x128xf32>
    %307 = arith.addf %306, %24 : vector<8x128xf32>
    %308 = vector.extract_strided_slice %63 {offsets = [6, 0, 0], sizes = [1, 8, 128], strides = [1, 1, 1]} : vector<8x8x128xf32> to vector<1x8x128xf32>
    %309 = vector.shape_cast %308 : vector<1x8x128xf32> to vector<8x128xf32>
    %310 = arith.addf %309, %305 : vector<8x128xf32>
    %311 = arith.negf %310 : vector<8x128xf32>
    %312 = math.exp %311 : vector<8x128xf32>
    %cst_87 = arith.constant 1.000000e+00 : f32
    %313 = vector.broadcast %cst_87 : f32 to vector<8x128xf32>
    %314 = arith.addf %313, %312 : vector<8x128xf32>
    %315 = arith.divf %313, %314 : vector<8x128xf32>
    %c32_i32_88 = arith.constant 32 : i32
    %316 = tpu.dynamic_rotate %315 by %c32_i32_88 dim 1 : vector<8x128xf32>, i32 -> vector<8x128xf32>
    %317 = arith.mulf %316, %305 : vector<8x128xf32>
    %318 = arith.addf %309, %317 : vector<8x128xf32>
    %319 = math.tanh %318 : vector<8x128xf32>
    %c16_i32_89 = arith.constant 16 : i32
    %320 = tpu.dynamic_rotate %315 by %c16_i32_89 dim 1 : vector<8x128xf32>, i32 -> vector<8x128xf32>
    %cst_90 = arith.constant 1.000000e+00 : f32
    %321 = vector.broadcast %cst_90 : f32 to vector<8x128xf32>
    %322 = arith.subf %321, %320 : vector<8x128xf32>
    %323 = arith.mulf %322, %319 : vector<8x128xf32>
    %324 = arith.mulf %320, %285 : vector<8x128xf32>
    %325 = arith.addf %323, %324 : vector<8x128xf32>
    %cst_91 = arith.constant dense<0.000000e+00> : vector<8x128xf32>
    %326 = tpu.matmul %325, %5, %cst_91 {dimension_numbers = #tpu.dot_dimension_numbers<[1], [0], [0], [1], [0, 0, 1, 1], [], []>} : vector<8x128xf32>, vector<128x128xf32>, vector<8x128xf32> -> vector<8x128xf32>
    %327 = arith.addf %326, %21 : vector<8x128xf32>
    %328 = arith.addf %327, %307 : vector<8x128xf32>
    %329 = arith.negf %328 : vector<8x128xf32>
    %330 = math.exp %329 : vector<8x128xf32>
    %cst_92 = arith.constant 1.000000e+00 : f32
    %331 = vector.broadcast %cst_92 : f32 to vector<8x128xf32>
    %332 = arith.addf %331, %330 : vector<8x128xf32>
    %333 = arith.divf %331, %332 : vector<8x128xf32>
    %c32_i32_93 = arith.constant 32 : i32
    %334 = tpu.dynamic_rotate %333 by %c32_i32_93 dim 1 : vector<8x128xf32>, i32 -> vector<8x128xf32>
    %335 = arith.mulf %334, %307 : vector<8x128xf32>
    %336 = arith.addf %327, %335 : vector<8x128xf32>
    %337 = math.tanh %336 : vector<8x128xf32>
    %c16_i32_94 = arith.constant 16 : i32
    %338 = tpu.dynamic_rotate %333 by %c16_i32_94 dim 1 : vector<8x128xf32>, i32 -> vector<8x128xf32>
    %cst_95 = arith.constant 1.000000e+00 : f32
    %339 = vector.broadcast %cst_95 : f32 to vector<8x128xf32>
    %340 = arith.subf %339, %338 : vector<8x128xf32>
    %341 = arith.mulf %340, %337 : vector<8x128xf32>
    %342 = arith.mulf %338, %303 : vector<8x128xf32>
    %343 = arith.addf %341, %342 : vector<8x128xf32>
    %cst_96 = arith.constant dense<0.000000e+00> : vector<8x128xf32>
    %344 = tpu.matmul %325, %4, %cst_96 {dimension_numbers = #tpu.dot_dimension_numbers<[1], [0], [0], [1], [0, 0, 1, 1], [], []>} : vector<8x128xf32>, vector<128x128xf32>, vector<8x128xf32> -> vector<8x128xf32>
    %345 = arith.addf %344, %18 : vector<8x128xf32>
    %cst_97 = arith.constant dense<0.000000e+00> : vector<8x128xf32>
    %346 = tpu.matmul %343, %6, %cst_97 {dimension_numbers = #tpu.dot_dimension_numbers<[1], [0], [0], [1], [0, 0, 1, 1], [], []>} : vector<8x128xf32>, vector<128x128xf32>, vector<8x128xf32> -> vector<8x128xf32>
    %347 = arith.addf %346, %24 : vector<8x128xf32>
    %348 = vector.extract_strided_slice %63 {offsets = [7, 0, 0], sizes = [1, 8, 128], strides = [1, 1, 1]} : vector<8x8x128xf32> to vector<1x8x128xf32>
    %349 = vector.shape_cast %348 : vector<1x8x128xf32> to vector<8x128xf32>
    %350 = arith.addf %349, %345 : vector<8x128xf32>
    %351 = arith.negf %350 : vector<8x128xf32>
    %352 = math.exp %351 : vector<8x128xf32>
    %cst_98 = arith.constant 1.000000e+00 : f32
    %353 = vector.broadcast %cst_98 : f32 to vector<8x128xf32>
    %354 = arith.addf %353, %352 : vector<8x128xf32>
    %355 = arith.divf %353, %354 : vector<8x128xf32>
    %c32_i32_99 = arith.constant 32 : i32
    %356 = tpu.dynamic_rotate %355 by %c32_i32_99 dim 1 : vector<8x128xf32>, i32 -> vector<8x128xf32>
    %357 = arith.mulf %356, %345 : vector<8x128xf32>
    %358 = arith.addf %349, %357 : vector<8x128xf32>
    %359 = math.tanh %358 : vector<8x128xf32>
    %c16_i32_100 = arith.constant 16 : i32
    %360 = tpu.dynamic_rotate %355 by %c16_i32_100 dim 1 : vector<8x128xf32>, i32 -> vector<8x128xf32>
    %cst_101 = arith.constant 1.000000e+00 : f32
    %361 = vector.broadcast %cst_101 : f32 to vector<8x128xf32>
    %362 = arith.subf %361, %360 : vector<8x128xf32>
    %363 = arith.mulf %362, %359 : vector<8x128xf32>
    %364 = arith.mulf %360, %325 : vector<8x128xf32>
    %365 = arith.addf %363, %364 : vector<8x128xf32>
    %cst_102 = arith.constant dense<0.000000e+00> : vector<8x128xf32>
    %366 = tpu.matmul %365, %5, %cst_102 {dimension_numbers = #tpu.dot_dimension_numbers<[1], [0], [0], [1], [0, 0, 1, 1], [], []>} : vector<8x128xf32>, vector<128x128xf32>, vector<8x128xf32> -> vector<8x128xf32>
    %367 = arith.addf %366, %21 : vector<8x128xf32>
    %368 = arith.addf %367, %347 : vector<8x128xf32>
    %369 = arith.negf %368 : vector<8x128xf32>
    %370 = math.exp %369 : vector<8x128xf32>
    %cst_103 = arith.constant 1.000000e+00 : f32
    %371 = vector.broadcast %cst_103 : f32 to vector<8x128xf32>
    %372 = arith.addf %371, %370 : vector<8x128xf32>
    %373 = arith.divf %371, %372 : vector<8x128xf32>
    %c32_i32_104 = arith.constant 32 : i32
    %374 = tpu.dynamic_rotate %373 by %c32_i32_104 dim 1 : vector<8x128xf32>, i32 -> vector<8x128xf32>
    %375 = arith.mulf %374, %347 : vector<8x128xf32>
    %376 = arith.addf %367, %375 : vector<8x128xf32>
    %377 = math.tanh %376 : vector<8x128xf32>
    %c16_i32_105 = arith.constant 16 : i32
    %378 = tpu.dynamic_rotate %373 by %c16_i32_105 dim 1 : vector<8x128xf32>, i32 -> vector<8x128xf32>
    %cst_106 = arith.constant 1.000000e+00 : f32
    %379 = vector.broadcast %cst_106 : f32 to vector<8x128xf32>
    %380 = arith.subf %379, %378 : vector<8x128xf32>
    %381 = arith.mulf %380, %377 : vector<8x128xf32>
    %382 = arith.mulf %378, %343 : vector<8x128xf32>
    %383 = arith.addf %381, %382 : vector<8x128xf32>
    %cst_107 = arith.constant dense<0.000000e+00> : vector<8x128xf32>
    %384 = tpu.matmul %383, %7, %cst_107 {dimension_numbers = #tpu.dot_dimension_numbers<[1], [0], [0], [1], [0, 0, 1, 1], [], []>} : vector<8x128xf32>, vector<128x128xf32>, vector<8x128xf32> -> vector<8x128xf32>
    %385 = vector.broadcast %15 : vector<1x128xf32> to vector<8x128xf32>
    %386 = arith.addf %384, %385 : vector<8x128xf32>
    %c112_i32 = arith.constant 112 : i32
    %387 = tpu.dynamic_rotate %386 by %c112_i32 dim 1 : vector<8x128xf32>, i32 -> vector<8x128xf32>
    %388 = arith.negf %387 : vector<8x128xf32>
    %389 = math.exp %388 : vector<8x128xf32>
    %cst_108 = arith.constant 1.000000e+00 : f32
    %390 = vector.broadcast %cst_108 : f32 to vector<8x128xf32>
    %391 = arith.addf %390, %389 : vector<8x128xf32>
    %392 = arith.divf %390, %391 : vector<8x128xf32>
    %393 = arith.mulf %386, %392 : vector<8x128xf32>
    %c0_109 = arith.constant 0 : index
    %c0_110 = arith.constant 0 : index
    %394 = vector.load %arg3[%c0_109, %c0_110] : memref<8x128xf32, #tpu.memory_space<vmem>>, vector<8x128xf32>
    tpu.vector_store %arg3[%c0_109, %c0_110], %393 {strides = array<i32>} : memref<8x128xf32, #tpu.memory_space<vmem>>, vector<8x128xf32>,
    return
  }
}

</mosaic_0001>

<llo_original>
// kernel: tpu_custom_call.1
$region0: #{tpu_custom_call.1}
  #allocation0 [shape = 'u32[]', space=smem, size = 0x4, offset = 0x4, fixed_abs, tag = 'smem constant byte address 0x4 - core index']
  #allocation1 [shape = 'u32[144,128]{1,0:T(1,128)}', space=vmem, size = 0x12000, scoped, tag = 'internal scratch']
  %s0 = inlined_call_operand.vmem [shape: f32[8,64], index: 0, kind: input, shape index: {}]
  %s1 = inlined_call_operand.vmem [shape: f32[64,16], index: 1, kind: input, shape index: {}]
  %s2 = inlined_call_operand.hbm [shape: f32[864,128], index: 2, kind: input, shape index: {}]
  %s3 = inlined_call_operand.hbm [shape: f32[8,128], index: 3, kind: output, shape index: {}]
  %s4 = sld [smem:[#allocation0]]
  $region26: #{tpu_custom_call.1} parent=0
    _
  %s6 = ssub.s32 1, %s4
  %s7 = scalar_select 0, %s6, %s4
  $region1: #{tpu_custom_call.1} parent=0
    #allocation2 [shape = 'u8[442368]{0}', space=vmem, size = 0x6c000, scoped, tag = 'input window, operand 2, single buffered']
    #allocation3 [shape = 's32[1]{0}', space=sflag, size = 0x4, scoped, tag = 'scoped memory for tpu_custom_call.1']
    #allocation4 [shape = 's32[1]{0}', space=sflag, size = 0x4, scoped, tag = 'scoped memory for tpu_custom_call.1']
    #allocation5 [shape = 'u8[4096]{0}', space=vmem, size = 0x1000, scoped, tag = 'output window, operand 0, single buffered']
    %8 = vsyncpa [#allocation3], 0
    %9 = vsyncpa [#allocation4], 0
    // Predicated region
    $region2: #{tpu_custom_call.1} parent=1 // pred_check
      _
    $region3: #{tpu_custom_call.1} parent=1 // pred_check_branch
      %11 = sbr.rel (0) target = $region5
    $region4: #{tpu_custom_call.1} parent=1 // pred_region
      _
    $region5: #{tpu_custom_call.1} parent=1 // pred_fallthru
      _
    // Predicated region
    $region6: #{tpu_custom_call.1} parent=1 // pred_check
      _
    $region7: #{tpu_custom_call.1} parent=1 // pred_check_branch
      %13 = sbr.rel (0) target = $region9
    $region8: #{tpu_custom_call.1} parent=1 // pred_region
      _
    $region9: #{tpu_custom_call.1} parent=1 // pred_fallthru
      _
    // Predicated region
    $region10: #{tpu_custom_call.1} parent=1 // pred_check
      _
    $region11: #{tpu_custom_call.1} parent=1 // pred_check_branch
      %15 = sbr.rel (0) target = $region13
    $region12: #{tpu_custom_call.1} parent=1 // pred_region
      %s17 = ssub.s32 13824, 13824
      %18 = vsyncadd [#allocation3], %s17
      %s19 = sshll.u32 [#allocation2], 4
      %s20 = int_to_ptr.vmem [resolvable:$true] %s19
      %25 = dma.hbm_to_vmem [thread:$0]  %s2, 13824, %s20, [#allocation3], 128, 128, 8
    $region13: #{tpu_custom_call.1} parent=1 // pred_fallthru
      _
    // Predicated region
    $region14: #{tpu_custom_call.1} parent=1 // pred_check
      _
    $region15: #{tpu_custom_call.1} parent=1 // pred_check_branch
      %27 = sbr.rel (0) target = $region17
    $region16: #{tpu_custom_call.1} parent=1 // pred_region
      %28 = dma.done [#allocation3], 13824
    $region17: #{tpu_custom_call.1} parent=1 // pred_fallthru
      _
    %v29 = vld [vmem:[#allocation2] sm:$0xff]
    %v30 = vld [vmem:[#allocation2 + $0x8] sm:$0xff]
    %v31 = vld [vmem:[#allocation2 + $0x10] sm:$0xff]
    %v32 = vld [vmem:[#allocation2 + $0x18] sm:$0xff]
    %v33 = vld [vmem:[#allocation2 + $0x20] sm:$0xff]
    %v34 = vld [vmem:[#allocation2 + $0x28] sm:$0xff]
    %v35 = vld [vmem:[#allocation2 + $0x30] sm:$0xff]
    %v36 = vld [vmem:[#allocation2 + $0x38] sm:$0xff]
    %v37 = vld [vmem:[#allocation2 + $0x40] sm:$0xff]
    %v38 = vld [vmem:[#allocation2 + $0x48] sm:$0xff]
    %v39 = vld [vmem:[#allocation2 + $0x50] sm:$0xff]
    %v40 = vld [vmem:[#allocation2 + $0x58] sm:$0xff]
    %v41 = vld [vmem:[#allocation2 + $0x60] sm:$0xff]
    %v42 = vld [vmem:[#allocation2 + $0x68] sm:$0xff]
    %v43 = vld [vmem:[#allocation2 + $0x70] sm:$0xff]
    %v44 = vld [vmem:[#allocation2 + $0x78] sm:$0xff]
    %v45 = vld [vmem:[#allocation2 + $0x80] sm:$0xff]
    %v46 = vld [vmem:[#allocation2 + $0x88] sm:$0xff]
    %v47 = vld [vmem:[#allocation2 + $0x90] sm:$0xff]
    %v48 = vld [vmem:[#allocation2 + $0x98] sm:$0xff]
    %v49 = vld [vmem:[#allocation2 + $0xa0] sm:$0xff]
    %v50 = vld [vmem:[#allocation2 + $0xa8] sm:$0xff]
    %v51 = vld [vmem:[#allocation2 + $0xb0] sm:$0xff]
    %v52 = vld [vmem:[#allocation2 + $0xb8] sm:$0xff]
    %v53 = vld [vmem:[#allocation2 + $0xc0] sm:$0xff]
    %v54 = vld [vmem:[#allocation2 + $0xc8] sm:$0xff]
    %v55 = vld [vmem:[#allocation2 + $0xd0] sm:$0xff]
    %v56 = vld [vmem:[#allocation2 + $0xd8] sm:$0xff]
    %v57 = vld [vmem:[#allocation2 + $0xe0] sm:$0xff]
    %v58 = vld [vmem:[#allocation2 + $0xe8] sm:$0xff]
    %v59 = vld [vmem:[#allocation2 + $0xf0] sm:$0xff]
    %v60 = vld [vmem:[#allocation2 + $0xf8] sm:$0xff]
    %v61 = vld [vmem:[#allocation2 + $0x100] sm:$0xff]
    %v62 = vld [vmem:[#allocation2 + $0x108] sm:$0xff]
    %v63 = vld [vmem:[#allocation2 + $0x110] sm:$0xff]
    %v64 = vld [vmem:[#allocation2 + $0x118] sm:$0xff]
    %v65 = vld [vmem:[#allocation2 + $0x120] sm:$0xff]
    %v66 = vld [vmem:[#allocation2 + $0x128] sm:$0xff]
    %v67 = vld [vmem:[#allocation2 + $0x130] sm:$0xff]
    %v68 = vld [vmem:[#allocation2 + $0x138] sm:$0xff]
    %v69 = vld [vmem:[#allocation2 + $0x140] sm:$0xff]
    %v70 = vld [vmem:[#allocation2 + $0x148] sm:$0xff]
    %v71 = vld [vmem:[#allocation2 + $0x150] sm:$0xff]
    %v72 = vld [vmem:[#allocation2 + $0x158] sm:$0xff]
    %v73 = vld [vmem:[#allocation2 + $0x160] sm:$0xff]
    %v74 = vld [vmem:[#allocation2 + $0x168] sm:$0xff]
    %v75 = vld [vmem:[#allocation2 + $0x170] sm:$0xff]
    %v76 = vld [vmem:[#allocation2 + $0x178] sm:$0xff]
    %v77 = vld [vmem:[#allocation2 + $0x180] sm:$0xff]
    %v78 = vld [vmem:[#allocation2 + $0x188] sm:$0xff]
    %v79 = vld [vmem:[#allocation2 + $0x190] sm:$0xff]
    %v80 = vld [vmem:[#allocation2 + $0x198] sm:$0xff]
    %v81 = vld [vmem:[#allocation2 + $0x1a0] sm:$0xff]
    %v82 = vld [vmem:[#allocation2 + $0x1a8] sm:$0xff]
    %v83 = vld [vmem:[#allocation2 + $0x1b0] sm:$0xff]
    %v84 = vld [vmem:[#allocation2 + $0x1b8] sm:$0xff]
    %v85 = vld [vmem:[#allocation2 + $0x1c0] sm:$0xff]
    %v86 = vld [vmem:[#allocation2 + $0x1c8] sm:$0xff]
    %v87 = vld [vmem:[#allocation2 + $0x1d0] sm:$0xff]
    %v88 = vld [vmem:[#allocation2 + $0x1d8] sm:$0xff]
    %v89 = vld [vmem:[#allocation2 + $0x1e0] sm:$0xff]
    %v90 = vld [vmem:[#allocation2 + $0x1e8] sm:$0xff]
    %v91 = vld [vmem:[#allocation2 + $0x1f0] sm:$0xff]
    %v92 = vld [vmem:[#allocation2 + $0x1f8] sm:$0xff]
    %v93 = vld [vmem:[#allocation2 + $0x200] sm:$0xff]
    %v94 = vld [vmem:[#allocation2 + $0x208] sm:$0xff]
    %v95 = vld [vmem:[#allocation2 + $0x210] sm:$0xff]
    %v96 = vld [vmem:[#allocation2 + $0x218] sm:$0xff]
    %v97 = vld [vmem:[#allocation2 + $0x220] sm:$0xff]
    %v98 = vld [vmem:[#allocation2 + $0x228] sm:$0xff]
    %v99 = vld [vmem:[#allocation2 + $0x230] sm:$0xff]
    %v100 = vld [vmem:[#allocation2 + $0x238] sm:$0xff]
    %v101 = vld [vmem:[#allocation2 + $0x240] sm:$0xff]
    %v102 = vld [vmem:[#allocation2 + $0x248] sm:$0xff]
    %v103 = vld [vmem:[#allocation2 + $0x250] sm:$0xff]
    %v104 = vld [vmem:[#allocation2 + $0x258] sm:$0xff]
    %v105 = vld [vmem:[#allocation2 + $0x260] sm:$0xff]
    %v106 = vld [vmem:[#allocation2 + $0x268] sm:$0xff]
    %v107 = vld [vmem:[#allocation2 + $0x270] sm:$0xff]
    %v108 = vld [vmem:[#allocation2 + $0x278] sm:$0xff]
    %v109 = vld [vmem:[#allocation2 + $0x280] sm:$0xff]
    %v110 = vld [vmem:[#allocation2 + $0x288] sm:$0xff]
    %v111 = vld [vmem:[#allocation2 + $0x290] sm:$0xff]
    %v112 = vld [vmem:[#allocation2 + $0x298] sm:$0xff]
    %v113 = vld [vmem:[#allocation2 + $0x2a0] sm:$0xff]
    %v114 = vld [vmem:[#allocation2 + $0x2a8] sm:$0xff]
    %v115 = vld [vmem:[#allocation2 + $0x2b0] sm:$0xff]
    %v116 = vld [vmem:[#allocation2 + $0x2b8] sm:$0xff]
    %v117 = vld [vmem:[#allocation2 + $0x2c0] sm:$0xff]
    %v118 = vld [vmem:[#allocation2 + $0x2c8] sm:$0xff]
    %v119 = vld [vmem:[#allocation2 + $0x2d0] sm:$0xff]
    %v120 = vld [vmem:[#allocation2 + $0x2d8] sm:$0xff]
    %v121 = vld [vmem:[#allocation2 + $0x2e0] sm:$0xff]
    %v122 = vld [vmem:[#allocation2 + $0x2e8] sm:$0xff]
    %v123 = vld [vmem:[#allocation2 + $0x2f0] sm:$0xff]
    %v124 = vld [vmem:[#allocation2 + $0x2f8] sm:$0xff]
    %v125 = vld [vmem:[#allocation2 + $0x300] sm:$0xff]
    %v126 = vld [vmem:[#allocation2 + $0x308] sm:$0xff]
    %v127 = vld [vmem:[#allocation2 + $0x310] sm:$0xff]
    %v128 = vld [vmem:[#allocation2 + $0x318] sm:$0xff]
    %v129 = vld [vmem:[#allocation2 + $0x320] sm:$0xff]
    %v130 = vld [vmem:[#allocation2 + $0x328] sm:$0xff]
    %v131 = vld [vmem:[#allocation2 + $0x330] sm:$0xff]
    %v132 = vld [vmem:[#allocation2 + $0x338] sm:$0xff]
    %v133 = vld [vmem:[#allocation2 + $0x340] sm:$0xff]
    %v134 = vld [vmem:[#allocation2 + $0x348] sm:$0xff]
    %v135 = vld [vmem:[#allocation2 + $0x350] sm:$0xff]
    %v136 = vld [vmem:[#allocation2 + $0x358] sm:$0xff]
    %v137 = vlaneseq
    %v138 = vshrl.u32 %v137, 7
    %v139 = vsub.s32 6, %v138
    %v140 = vrot.slane %v135, %v139
    %v141 = vlaneseq
    %v142 = vshrl.u32 %v141, 7
    %v143 = vsub.s32 7, %v142
    %v144 = vrot.slane %v135, %v143
    %v145 = vlaneseq
    %v146 = vshrl.u32 %v145, 7
    %v147 = vsub.s32 0, %v146
    %v148 = vrot.slane %v136, %v147
    %v149 = vld [vmem:[%s0] sm:$0xff]
    %v150 = vlaneseq
    %v151 = vshrl.u32 %v150, 7
    %v152 = vsub.s32 0, %v151
    %v153 = vrot.slane %v135, %v152
    %vm154 = vcmask 523264
    %v156 = vsel %vm154, %v149, 0
    %158 = vmatprep.subr.mxu0 0.0
    %159 = vmatpush1.msra.mxu0 %v29
    %160 = vmatprep.subr.mxu0 0.0
    %161 = vmatpush1.msra.mxu0 %v30
    %162 = vmatprep.subr.mxu0 0.0
    %163 = vmatpush1.msra.mxu0 %v31
    %164 = vmatprep.subr.mxu0 0.0
    %165 = vmatpush1.msra.mxu0 %v32
    %166 = vmatprep.subr.mxu0 0.0
    %167 = vmatpush1.msra.mxu0 %v33
    %168 = vmatprep.subr.mxu0 0.0
    %169 = vmatpush1.msra.mxu0 %v34
    %170 = vmatprep.subr.mxu0 0.0
    %171 = vmatpush1.msra.mxu0 %v35
    %172 = vmatprep.subr.mxu0 0.0
    %173 = vmatpush1.msra.mxu0 %v36
    %174 = vmatprep.subr.mxu0 0.0
    %175 = vmatpush1.msra.mxu0 0.0
    %176 = vmatprep.subr.mxu0 0.0
    %177 = vmatpush1.msra.mxu0 0.0
    %178 = vmatprep.subr.mxu0 0.0
    %179 = vmatpush1.msra.mxu0 0.0
    %180 = vmatprep.subr.mxu0 0.0
    %181 = vmatpush1.msra.mxu0 0.0
    %182 = vmatprep.subr.mxu0 0.0
    %183 = vmatpush1.msra.mxu0 0.0
    %184 = vmatprep.subr.mxu0 0.0
    %185 = vmatpush1.msra.mxu0 0.0
    %186 = vmatprep.subr.mxu0 0.0
    %187 = vmatpush1.msra.mxu0 0.0
    %188 = vmatprep.subr.mxu0 0.0
    %189 = vmatpush1.msra.mxu0 0.0
    %190 = vmatprep.subr.mxu0 0.0
    %191 = vmatpush1.msra.mxu0 0.0
    %192 = vmatprep.subr.mxu0 0.0
    %193 = vmatpush1.msra.mxu0 0.0
    %194 = vmatprep.subr.mxu0 0.0
    %195 = vmatpush1.msra.mxu0 0.0
    %196 = vmatprep.subr.mxu0 0.0
    %197 = vmatpush1.msra.mxu0 0.0
    %198 = vmatprep.subr.mxu0 0.0
    %199 = vmatpush1.msra.mxu0 0.0
    %200 = vmatprep.subr.mxu0 0.0
    %201 = vmatpush1.msra.mxu0 0.0
    %202 = vmatprep.subr.mxu0 0.0
    %203 = vmatpush1.msra.mxu0 0.0
    %204 = vmatprep.subr.mxu0 0.0
    %205 = vmatpush1.msra.mxu0 0.0
    %206 = vmatprep.subr.mxu0 0.0
    %207 = vmatpush1.msra.mxu0 0.0
    %208 = vmatprep.subr.mxu0 0.0
    %209 = vmatpush1.msra.mxu0 0.0
    %210 = vmatprep.subr.mxu0 0.0
    %211 = vmatpush1.msra.mxu0 0.0
    %212 = vmatprep.subr.mxu0 0.0
    %213 = vmatpush1.msra.mxu0 0.0
    %214 = vmatprep.subr.mxu0 0.0
    %215 = vmatpush1.msra.mxu0 0.0
    %216 = vmatprep.subr.mxu0 0.0
    %217 = vmatpush1.msra.mxu0 0.0
    %218 = vmatprep.subr.mxu0 0.0
    %219 = vmatpush1.msra.mxu0 0.0
    %220 = vmatprep.subr.mxu0 0.0
    %221 = vmatpush1.msra.mxu0 0.0
    %222 = vmatprep.mubr.f32.mxu0 0.0
    %223 = vmatmul.mubr.f32.gmra.mrb[0].mxu0 %v156
    %v224 = vpop.f32.mrb[0].mxu0
    %v225 = vadd.f32 %v153, %v224
    %v226 = vpop.f32.mrb[0].mxu0
    %227 = vdwg.mxu0
    %v228 = vtanh.pop %v225
    %v229 = vld [vmem:[%s1] sm:$0xff]
    %v230 = vld [vmem:[%s1 + $0x8] sm:$0xff]
    %v231 = vld [vmem:[%s1 + $0x10] sm:$0xff]
    %v232 = vld [vmem:[%s1 + $0x18] sm:$0xff]
    %v233 = vld [vmem:[%s1 + $0x20] sm:$0xff]
    %v234 = vld [vmem:[%s1 + $0x28] sm:$0xff]
    %v235 = vld [vmem:[%s1 + $0x30] sm:$0xff]
    %v236 = vld [vmem:[%s1 + $0x38] sm:$0xff]
    %v237 = vlaneseq
    %v238 = vshrl.u32 %v237, 7
    %v239 = vsub.s32 1, %v238
    %v240 = vrot.slane %v135, %v239
    %vm241 = vcmask 130048
    %v243 = vsel %vm241, %v229, 0
    %v246 = vsel %vm241, %v230, 0
    %v249 = vsel %vm241, %v231, 0
    %v252 = vsel %vm241, %v232, 0
    %v255 = vsel %vm241, %v233, 0
    %v258 = vsel %vm241, %v234, 0
    %v261 = vsel %vm241, %v235, 0
    %v264 = vsel %vm241, %v236, 0
    %266 = vmatprep.subr.mxu0 0.0
    %267 = vmatpush1.msra.mxu0 %v37
    %268 = vmatprep.subr.mxu0 0.0
    %269 = vmatpush1.msra.mxu0 %v38
    %270 = vmatprep.subr.mxu0 0.0
    %271 = vmatpush1.msra.mxu0 0.0
    %272 = vmatprep.subr.mxu0 0.0
    %273 = vmatpush1.msra.mxu0 0.0
    %274 = vmatprep.subr.mxu0 0.0
    %275 = vmatpush1.msra.mxu0 0.0
    %276 = vmatprep.subr.mxu0 0.0
    %277 = vmatpush1.msra.mxu0 0.0
    %278 = vmatprep.subr.mxu0 0.0
    %279 = vmatpush1.msra.mxu0 0.0
    %280 = vmatprep.subr.mxu0 0.0
    %281 = vmatpush1.msra.mxu0 0.0
    %282 = vmatprep.subr.mxu0 0.0
    %283 = vmatpush1.msra.mxu0 0.0
    %284 = vmatprep.subr.mxu0 0.0
    %285 = vmatpush1.msra.mxu0 0.0
    %286 = vmatprep.subr.mxu0 0.0
    %287 = vmatpush1.msra.mxu0 0.0
    %288 = vmatprep.subr.mxu0 0.0
    %289 = vmatpush1.msra.mxu0 0.0
    %290 = vmatprep.subr.mxu0 0.0
    %291 = vmatpush1.msra.mxu0 0.0
    %292 = vmatprep.subr.mxu0 0.0
    %293 = vmatpush1.msra.mxu0 0.0
    %294 = vmatprep.subr.mxu0 0.0
    %295 = vmatpush1.msra.mxu0 0.0
    %296 = vmatprep.subr.mxu0 0.0
    %297 = vmatpush1.msra.mxu0 0.0
    %298 = vmatprep.subr.mxu0 0.0
    %299 = vmatpush1.msra.mxu0 0.0
    %300 = vmatprep.subr.mxu0 0.0
    %301 = vmatpush1.msra.mxu0 0.0
    %302 = vmatprep.subr.mxu0 0.0
    %303 = vmatpush1.msra.mxu0 0.0
    %304 = vmatprep.subr.mxu0 0.0
    %305 = vmatpush1.msra.mxu0 0.0
    %306 = vmatprep.subr.mxu0 0.0
    %307 = vmatpush1.msra.mxu0 0.0
    %308 = vmatprep.subr.mxu0 0.0
    %309 = vmatpush1.msra.mxu0 0.0
    %310 = vmatprep.subr.mxu0 0.0
    %311 = vmatpush1.msra.mxu0 0.0
    %312 = vmatprep.subr.mxu0 0.0
    %313 = vmatpush1.msra.mxu0 0.0
    %314 = vmatprep.subr.mxu0 0.0
    %315 = vmatpush1.msra.mxu0 0.0
    %316 = vmatprep.subr.mxu0 0.0
    %317 = vmatpush1.msra.mxu0 0.0
    %318 = vmatprep.subr.mxu0 0.0
    %319 = vmatpush1.msra.mxu0 0.0
    %320 = vmatprep.subr.mxu0 0.0
    %321 = vmatpush1.msra.mxu0 0.0
    %322 = vmatprep.subr.mxu0 0.0
    %323 = vmatpush1.msra.mxu0 0.0
    %324 = vmatprep.subr.mxu0 0.0
    %325 = vmatpush1.msra.mxu0 0.0
    %326 = vmatprep.subr.mxu0 0.0
    %327 = vmatpush1.msra.mxu0 0.0
    %328 = vmatprep.subr.mxu0 0.0
    %329 = vmatpush1.msra.mxu0 0.0
    %330 = vmatprep.mubr.f32.mxu0 0.0
    %331 = vmatmul.mubr.f32.gmra.mrb[0].mxu0 %v243
    %v332 = vpop.f32.mrb[0].mxu0
    %v333 = vadd.f32 %v240, %v332
    %v334 = vpop.f32.mrb[0].mxu0
    %335 = vmatprep.mubr.f32.mxu0 0.0
    %336 = vmatmul.mubr.f32.gmra.mrb[0].mxu0 %v246
    %v337 = vpop.f32.mrb[0].mxu0
    %v338 = vadd.f32 %v240, %v337
    %v339 = vpop.f32.mrb[0].mxu0
    %340 = vmatprep.mubr.f32.mxu0 0.0
    %341 = vmatmul.mubr.f32.gmra.mrb[0].mxu0 %v249
    %v342 = vpop.f32.mrb[0].mxu0
    %v343 = vadd.f32 %v240, %v342
    %v344 = vpop.f32.mrb[0].mxu0
    %345 = vmatprep.mubr.f32.mxu0 0.0
    %346 = vmatmul.mubr.f32.gmra.mrb[0].mxu0 %v252
    %v347 = vpop.f32.mrb[0].mxu0
    %v348 = vadd.f32 %v240, %v347
    %v349 = vpop.f32.mrb[0].mxu0
    %350 = vmatprep.mubr.f32.mxu0 0.0
    %351 = vmatmul.mubr.f32.gmra.mrb[0].mxu0 %v255
    %v352 = vpop.f32.mrb[0].mxu0
    %v353 = vadd.f32 %v240, %v352
    %v354 = vpop.f32.mrb[0].mxu0
    %355 = vmatprep.mubr.f32.mxu0 0.0
    %356 = vmatmul.mubr.f32.gmra.mrb[0].mxu0 %v258
    %v357 = vpop.f32.mrb[0].mxu0
    %v358 = vadd.f32 %v240, %v357
    %v359 = vpop.f32.mrb[0].mxu0
    %360 = vmatprep.mubr.f32.mxu0 0.0
    %361 = vmatmul.mubr.f32.gmra.mrb[0].mxu0 %v261
    %v362 = vpop.f32.mrb[0].mxu0
    %v363 = vadd.f32 %v240, %v362
    %v364 = vpop.f32.mrb[0].mxu0
    %365 = vmatprep.mubr.f32.mxu0 0.0
    %366 = vmatmul.mubr.f32.gmra.mrb[0].mxu0 %v264
    %v367 = vpop.f32.mrb[0].mxu0
    %v368 = vadd.f32 %v240, %v367
    %v369 = vpop.f32.mrb[0].mxu0
    %370 = vdwg.mxu0
    %v371 = vadd.f32 %v333, %v338
    %v372 = vadd.f32 %v371, %v343
    %v373 = vadd.f32 %v372, %v348
    %v374 = vadd.f32 %v373, %v353
    %v375 = vadd.f32 %v374, %v358
    %v376 = vadd.f32 %v375, %v363
    %v377 = vadd.f32 %v376, %v368
    %v378 = vrot.slane %v377, 4
    %v379 = vadd.f32 %v377, %v378
    %v380 = vrot.slane %v379, 2
    %v381 = vadd.f32 %v379, %v380
    %v382 = vrot.slane %v381, 1
    %v383 = vadd.f32 %v381, %v382
    %v384 = vrcp.pop 64.0
    %v385 = vmul.f32 %v383, %v384
    %v386 = vsub.f32 %v333, %v385
    %v387 = vsub.f32 %v338, %v385
    %v388 = vsub.f32 %v343, %v385
    %v389 = vsub.f32 %v348, %v385
    %v390 = vsub.f32 %v353, %v385
    %v391 = vsub.f32 %v358, %v385
    %v392 = vsub.f32 %v363, %v385
    %v393 = vsub.f32 %v368, %v385
    %v394 = vmul.f32 %v386, %v386
    %v395 = vmul.f32 %v387, %v387
    %v396 = vmul.f32 %v388, %v388
    %v397 = vmul.f32 %v389, %v389
    %v398 = vmul.f32 %v390, %v390
    %v399 = vmul.f32 %v391, %v391
    %v400 = vmul.f32 %v392, %v392
    %v401 = vmul.f32 %v393, %v393
    %v402 = vadd.f32 %v394, %v395
    %v403 = vadd.f32 %v402, %v396
    %v404 = vadd.f32 %v403, %v397
    %v405 = vadd.f32 %v404, %v398
    %v406 = vadd.f32 %v405, %v399
    %v407 = vadd.f32 %v406, %v400
    %v408 = vadd.f32 %v407, %v401
    %v409 = vrot.slane %v408, 4
    %v410 = vadd.f32 %v408, %v409
    %v411 = vrot.slane %v410, 2
    %v412 = vadd.f32 %v410, %v411
    %v413 = vrot.slane %v412, 1
    %v414 = vadd.f32 %v412, %v413
    %v415 = vmul.f32 %v414, %v384
    %v416 = vadd.f32 %v415, 1e-05
    %v417 = vrsqrt.pop %v416
    %v418 = vmul.f32 %v386, %v417
    %v419 = vmul.f32 %v387, %v417
    %v420 = vmul.f32 %v388, %v417
    %v421 = vmul.f32 %v389, %v417
    %v422 = vmul.f32 %v390, %v417
    %v423 = vmul.f32 %v391, %v417
    %v424 = vmul.f32 %v392, %v417
    %v425 = vmul.f32 %v393, %v417
    %v426 = vlaneseq
    %v427 = vshrl.u32 %v426, 7
    %v428 = vsub.s32 2, %v427
    %v429 = vrot.slane %v135, %v428
    %v430 = vmul.f32 %v418, %v429
    %v431 = vmul.f32 %v419, %v429
    %v432 = vmul.f32 %v420, %v429
    %v433 = vmul.f32 %v421, %v429
    %v434 = vmul.f32 %v422, %v429
    %v435 = vmul.f32 %v423, %v429
    %v436 = vmul.f32 %v424, %v429
    %v437 = vmul.f32 %v425, %v429
    %v438 = vlaneseq
    %v439 = vshrl.u32 %v438, 7
    %v440 = vsub.s32 3, %v439
    %v441 = vrot.slane %v135, %v440
    %v442 = vadd.f32 %v430, %v441
    %v443 = vadd.f32 %v431, %v441
    %v444 = vadd.f32 %v432, %v441
    %v445 = vadd.f32 %v433, %v441
    %v446 = vadd.f32 %v434, %v441
    %v447 = vadd.f32 %v435, %v441
    %v448 = vadd.f32 %v436, %v441
    %v449 = vadd.f32 %v437, %v441
    %v450 = vtanh.pop %v442
    %v451 = vtanh.pop %v443
    %v452 = vtanh.pop %v444
    %v453 = vtanh.pop %v445
    %v454 = vtanh.pop %v446
    %v455 = vtanh.pop %v447
    %v456 = vtanh.pop %v448
    %v457 = vtanh.pop %v449
    %v458 = vlaneseq
    %v459 = vshrl.u32 %v458, 7
    %v460 = vsub.s32 4, %v459
    %v461 = vrot.slane %v135, %v460
    %462 = vmatprep.subr.mxu0 0.0
    %463 = vmatpush1.msra.mxu0 %v39
    %464 = vmatprep.subr.mxu0 0.0
    %465 = vmatpush1.msra.mxu0 %v40
    %466 = vmatprep.subr.mxu0 0.0
    %467 = vmatpush1.msra.mxu0 %v41
    %468 = vmatprep.subr.mxu0 0.0
    %469 = vmatpush1.msra.mxu0 %v42
    %470 = vmatprep.subr.mxu0 0.0
    %471 = vmatpush1.msra.mxu0 %v43
    %472 = vmatprep.subr.mxu0 0.0
    %473 = vmatpush1.msra.mxu0 %v44
    %474 = vmatprep.subr.mxu0 0.0
    %475 = vmatpush1.msra.mxu0 %v45
    %476 = vmatprep.subr.mxu0 0.0
    %477 = vmatpush1.msra.mxu0 %v46
    %478 = vmatprep.subr.mxu0 0.0
    %479 = vmatpush1.msra.mxu0 %v47
    %480 = vmatprep.subr.mxu0 0.0
    %481 = vmatpush1.msra.mxu0 %v48
    %482 = vmatprep.subr.mxu0 0.0
    %483 = vmatpush1.msra.mxu0 %v49
    %484 = vmatprep.subr.mxu0 0.0
    %485 = vmatpush1.msra.mxu0 %v50
    %486 = vmatprep.subr.mxu0 0.0
    %487 = vmatpush1.msra.mxu0 %v51
    %488 = vmatprep.subr.mxu0 0.0
    %489 = vmatpush1.msra.mxu0 %v52
    %490 = vmatprep.subr.mxu0 0.0
    %491 = vmatpush1.msra.mxu0 %v53
    %492 = vmatprep.subr.mxu0 0.0
    %493 = vmatpush1.msra.mxu0 %v54
    %494 = vmatprep.subr.mxu0 0.0
    %495 = vmatpush1.msra.mxu0 0.0
    %496 = vmatprep.subr.mxu0 0.0
    %497 = vmatpush1.msra.mxu0 0.0
    %498 = vmatprep.subr.mxu0 0.0
    %499 = vmatpush1.msra.mxu0 0.0
    %500 = vmatprep.subr.mxu0 0.0
    %501 = vmatpush1.msra.mxu0 0.0
    %502 = vmatprep.subr.mxu0 0.0
    %503 = vmatpush1.msra.mxu0 0.0
    %504 = vmatprep.subr.mxu0 0.0
    %505 = vmatpush1.msra.mxu0 0.0
    %506 = vmatprep.subr.mxu0 0.0
    %507 = vmatpush1.msra.mxu0 0.0
    %508 = vmatprep.subr.mxu0 0.0
    %509 = vmatpush1.msra.mxu0 0.0
    %510 = vmatprep.subr.mxu0 0.0
    %511 = vmatpush1.msra.mxu0 0.0
    %512 = vmatprep.subr.mxu0 0.0
    %513 = vmatpush1.msra.mxu0 0.0
    %514 = vmatprep.subr.mxu0 0.0
    %515 = vmatpush1.msra.mxu0 0.0
    %516 = vmatprep.subr.mxu0 0.0
    %517 = vmatpush1.msra.mxu0 0.0
    %518 = vmatprep.subr.mxu0 0.0
    %519 = vmatpush1.msra.mxu0 0.0
    %520 = vmatprep.subr.mxu0 0.0
    %521 = vmatpush1.msra.mxu0 0.0
    %522 = vmatprep.subr.mxu0 0.0
    %523 = vmatpush1.msra.mxu0 0.0
    %524 = vmatprep.subr.mxu0 0.0
    %525 = vmatpush1.msra.mxu0 0.0
    %526 = vmatprep.mubr.f32.mxu0 0.0
    %527 = vmatmul.mubr.f32.gmra.mrb[0].mxu0 %v450
    %v528 = vpop.f32.mrb[0].mxu0
    %v529 = vadd.f32 %v461, %v528
    %v530 = vpop.f32.mrb[0].mxu0
    %531 = vmatprep.mubr.f32.mxu0 0.0
    %532 = vmatmul.mubr.f32.gmra.mrb[0].mxu0 %v451
    %v533 = vpop.f32.mrb[0].mxu0
    %v534 = vadd.f32 %v461, %v533
    %v535 = vpop.f32.mrb[0].mxu0
    %536 = vmatprep.mubr.f32.mxu0 0.0
    %537 = vmatmul.mubr.f32.gmra.mrb[0].mxu0 %v452
    %v538 = vpop.f32.mrb[0].mxu0
    %v539 = vadd.f32 %v461, %v538
    %v540 = vpop.f32.mrb[0].mxu0
    %541 = vmatprep.mubr.f32.mxu0 0.0
    %542 = vmatmul.mubr.f32.gmra.mrb[0].mxu0 %v453
    %v543 = vpop.f32.mrb[0].mxu0
    %v544 = vadd.f32 %v461, %v543
    %v545 = vpop.f32.mrb[0].mxu0
    %546 = vmatprep.mubr.f32.mxu0 0.0
    %547 = vmatmul.mubr.f32.gmra.mrb[0].mxu0 %v454
    %v548 = vpop.f32.mrb[0].mxu0
    %v549 = vadd.f32 %v461, %v548
    %v550 = vpop.f32.mrb[0].mxu0
    %551 = vmatprep.mubr.f32.mxu0 0.0
    %552 = vmatmul.mubr.f32.gmra.mrb[0].mxu0 %v455
    %v553 = vpop.f32.mrb[0].mxu0
    %v554 = vadd.f32 %v461, %v553
    %v555 = vpop.f32.mrb[0].mxu0
    %556 = vmatprep.mubr.f32.mxu0 0.0
    %557 = vmatmul.mubr.f32.gmra.mrb[0].mxu0 %v456
    %v558 = vpop.f32.mrb[0].mxu0
    %v559 = vadd.f32 %v461, %v558
    %v560 = vpop.f32.mrb[0].mxu0
    %561 = vmatprep.mubr.f32.mxu0 0.0
    %562 = vmatmul.mubr.f32.gmra.mrb[0].mxu0 %v457
    %v563 = vpop.f32.mrb[0].mxu0
    %v564 = vadd.f32 %v461, %v563
    %v565 = vpop.f32.mrb[0].mxu0
    %566 = vdwg.mxu0
    %v567 = vlaneseq
    %v568 = vshrl.u32 %v567, 7
    %v569 = vsub.s32 5, %v568
    %v570 = vrot.slane %v135, %v569
    %571 = vmatprep.subr.mxu0 0.0
    %572 = vmatpush1.msra.mxu0 %v55
    %573 = vmatprep.subr.mxu0 0.0
    %574 = vmatpush1.msra.mxu0 %v56
    %575 = vmatprep.subr.mxu0 0.0
    %576 = vmatpush1.msra.mxu0 %v57
    %577 = vmatprep.subr.mxu0 0.0
    %578 = vmatpush1.msra.mxu0 %v58
    %579 = vmatprep.subr.mxu0 0.0
    %580 = vmatpush1.msra.mxu0 %v59
    %581 = vmatprep.subr.mxu0 0.0
    %582 = vmatpush1.msra.mxu0 %v60
    %583 = vmatprep.subr.mxu0 0.0
    %584 = vmatpush1.msra.mxu0 %v61
    %585 = vmatprep.subr.mxu0 0.0
    %586 = vmatpush1.msra.mxu0 %v62
    %587 = vmatprep.subr.mxu0 0.0
    %588 = vmatpush1.msra.mxu0 %v63
    %589 = vmatprep.subr.mxu0 0.0
    %590 = vmatpush1.msra.mxu0 %v64
    %591 = vmatprep.subr.mxu0 0.0
    %592 = vmatpush1.msra.mxu0 %v65
    %593 = vmatprep.subr.mxu0 0.0
    %594 = vmatpush1.msra.mxu0 %v66
    %595 = vmatprep.subr.mxu0 0.0
    %596 = vmatpush1.msra.mxu0 %v67
    %597 = vmatprep.subr.mxu0 0.0
    %598 = vmatpush1.msra.mxu0 %v68
    %599 = vmatprep.subr.mxu0 0.0
    %600 = vmatpush1.msra.mxu0 %v69
    %601 = vmatprep.subr.mxu0 0.0
    %602 = vmatpush1.msra.mxu0 %v70
    %603 = vmatprep.subr.mxu0 0.0
    %604 = vmatpush1.msra.mxu0 0.0
    %605 = vmatprep.subr.mxu0 0.0
    %606 = vmatpush1.msra.mxu0 0.0
    %607 = vmatprep.subr.mxu0 0.0
    %608 = vmatpush1.msra.mxu0 0.0
    %609 = vmatprep.subr.mxu0 0.0
    %610 = vmatpush1.msra.mxu0 0.0
    %611 = vmatprep.subr.mxu0 0.0
    %612 = vmatpush1.msra.mxu0 0.0
    %613 = vmatprep.subr.mxu0 0.0
    %614 = vmatpush1.msra.mxu0 0.0
    %615 = vmatprep.subr.mxu0 0.0
    %616 = vmatpush1.msra.mxu0 0.0
    %617 = vmatprep.subr.mxu0 0.0
    %618 = vmatpush1.msra.mxu0 0.0
    %619 = vmatprep.subr.mxu0 0.0
    %620 = vmatpush1.msra.mxu0 0.0
    %621 = vmatprep.subr.mxu0 0.0
    %622 = vmatpush1.msra.mxu0 0.0
    %623 = vmatprep.subr.mxu0 0.0
    %624 = vmatpush1.msra.mxu0 0.0
    %625 = vmatprep.subr.mxu0 0.0
    %626 = vmatpush1.msra.mxu0 0.0
    %627 = vmatprep.subr.mxu0 0.0
    %628 = vmatpush1.msra.mxu0 0.0
    %629 = vmatprep.subr.mxu0 0.0
    %630 = vmatpush1.msra.mxu0 0.0
    %631 = vmatprep.subr.mxu0 0.0
    %632 = vmatpush1.msra.mxu0 0.0
    %633 = vmatprep.subr.mxu0 0.0
    %634 = vmatpush1.msra.mxu0 0.0
    %635 = vmatprep.mubr.f32.mxu0 0.0
    %636 = vmatmul.mubr.f32.gmra.mrb[0].mxu0 %v529
    %v637 = vpop.f32.mrb[0].mxu0
    %v638 = vadd.f32 %v570, %v637
    %v639 = vpop.f32.mrb[0].mxu0
    %640 = vmatprep.mubr.f32.mxu0 0.0
    %641 = vmatmul.mubr.f32.gmra.mrb[0].mxu0 %v534
    %v642 = vpop.f32.mrb[0].mxu0
    %v643 = vadd.f32 %v570, %v642
    %v644 = vpop.f32.mrb[0].mxu0
    %645 = vmatprep.mubr.f32.mxu0 0.0
    %646 = vmatmul.mubr.f32.gmra.mrb[0].mxu0 %v539
    %v647 = vpop.f32.mrb[0].mxu0
    %v648 = vadd.f32 %v570, %v647
    %v649 = vpop.f32.mrb[0].mxu0
    %650 = vmatprep.mubr.f32.mxu0 0.0
    %651 = vmatmul.mubr.f32.gmra.mrb[0].mxu0 %v544
    %v652 = vpop.f32.mrb[0].mxu0
    %v653 = vadd.f32 %v570, %v652
    %v654 = vpop.f32.mrb[0].mxu0
    %655 = vmatprep.mubr.f32.mxu0 0.0
    %656 = vmatmul.mubr.f32.gmra.mrb[0].mxu0 %v549
    %v657 = vpop.f32.mrb[0].mxu0
    %v658 = vadd.f32 %v570, %v657
    %v659 = vpop.f32.mrb[0].mxu0
    %660 = vmatprep.mubr.f32.mxu0 0.0
    %661 = vmatmul.mubr.f32.gmra.mrb[0].mxu0 %v554
    %v662 = vpop.f32.mrb[0].mxu0
    %v663 = vadd.f32 %v570, %v662
    %v664 = vpop.f32.mrb[0].mxu0
    %665 = vmatprep.mubr.f32.mxu0 0.0
    %666 = vmatmul.mubr.f32.gmra.mrb[0].mxu0 %v559
    %v667 = vpop.f32.mrb[0].mxu0
    %v668 = vadd.f32 %v570, %v667
    %v669 = vpop.f32.mrb[0].mxu0
    %670 = vmatprep.mubr.f32.mxu0 0.0
    %671 = vmatmul.mubr.f32.gmra.mrb[0].mxu0 %v564
    %v672 = vpop.f32.mrb[0].mxu0
    %v673 = vadd.f32 %v570, %v672
    %v674 = vpop.f32.mrb[0].mxu0
    %675 = vdwg.mxu0
    %676 = vmatprep.subr.mxu0 0.0
    %677 = vmatpush1.msra.mxu0 %v71
    %678 = vmatprep.subr.mxu0 0.0
    %679 = vmatpush1.msra.mxu0 %v72
    %680 = vmatprep.subr.mxu0 0.0
    %681 = vmatpush1.msra.mxu0 %v73
    %682 = vmatprep.subr.mxu0 0.0
    %683 = vmatpush1.msra.mxu0 %v74
    %684 = vmatprep.subr.mxu0 0.0
    %685 = vmatpush1.msra.mxu0 %v75
    %686 = vmatprep.subr.mxu0 0.0
    %687 = vmatpush1.msra.mxu0 %v76
    %688 = vmatprep.subr.mxu0 0.0
    %689 = vmatpush1.msra.mxu0 %v77
    %690 = vmatprep.subr.mxu0 0.0
    %691 = vmatpush1.msra.mxu0 %v78
    %692 = vmatprep.subr.mxu0 0.0
    %693 = vmatpush1.msra.mxu0 %v79
    %694 = vmatprep.subr.mxu0 0.0
    %695 = vmatpush1.msra.mxu0 %v80
    %696 = vmatprep.subr.mxu0 0.0
    %697 = vmatpush1.msra.mxu0 %v81
    %698 = vmatprep.subr.mxu0 0.0
    %699 = vmatpush1.msra.mxu0 %v82
    %700 = vmatprep.subr.mxu0 0.0
    %701 = vmatpush1.msra.mxu0 %v83
    %702 = vmatprep.subr.mxu0 0.0
    %703 = vmatpush1.msra.mxu0 %v84
    %704 = vmatprep.subr.mxu0 0.0
    %705 = vmatpush1.msra.mxu0 %v85
    %706 = vmatprep.subr.mxu0 0.0
    %707 = vmatpush1.msra.mxu0 %v86
    %708 = vmatprep.subr.mxu0 0.0
    %709 = vmatpush1.msra.mxu0 0.0
    %710 = vmatprep.subr.mxu0 0.0
    %711 = vmatpush1.msra.mxu0 0.0
    %712 = vmatprep.subr.mxu0 0.0
    %713 = vmatpush1.msra.mxu0 0.0
    %714 = vmatprep.subr.mxu0 0.0
    %715 = vmatpush1.msra.mxu0 0.0
    %716 = vmatprep.subr.mxu0 0.0
    %717 = vmatpush1.msra.mxu0 0.0
    %718 = vmatprep.subr.mxu0 0.0
    %719 = vmatpush1.msra.mxu0 0.0
    %720 = vmatprep.subr.mxu0 0.0
    %721 = vmatpush1.msra.mxu0 0.0
    %722 = vmatprep.subr.mxu0 0.0
    %723 = vmatpush1.msra.mxu0 0.0
    %724 = vmatprep.subr.mxu0 0.0
    %725 = vmatpush1.msra.mxu0 0.0
    %726 = vmatprep.subr.mxu0 0.0
    %727 = vmatpush1.msra.mxu0 0.0
    %728 = vmatprep.subr.mxu0 0.0
    %729 = vmatpush1.msra.mxu0 0.0
    %730 = vmatprep.subr.mxu0 0.0
    %731 = vmatpush1.msra.mxu0 0.0
    %732 = vmatprep.subr.mxu0 0.0
    %733 = vmatpush1.msra.mxu0 0.0
    %734 = vmatprep.subr.mxu0 0.0
    %735 = vmatpush1.msra.mxu0 0.0
    %736 = vmatprep.subr.mxu0 0.0
    %737 = vmatpush1.msra.mxu0 0.0
    %738 = vmatprep.subr.mxu0 0.0
    %739 = vmatpush1.msra.mxu0 0.0
    %740 = vmatprep.mubr.f32.mxu0 0.0
    %741 = vmatmul.mubr.f32.gmra.mrb[0].mxu0 %v228
    %v742 = vpop.f32.mrb[0].mxu0
    %v743 = vadd.f32 %v140, %v742
    %v744 = vpop.f32.mrb[0].mxu0
    %745 = vdwg.mxu0
    %746 = vmatprep.subr.mxu0 0.0
    %747 = vmatpush1.msra.mxu0 %v103
    %748 = vmatprep.subr.mxu0 0.0
    %749 = vmatpush1.msra.mxu0 %v104
    %750 = vmatprep.subr.mxu0 0.0
    %751 = vmatpush1.msra.mxu0 %v105
    %752 = vmatprep.subr.mxu0 0.0
    %753 = vmatpush1.msra.mxu0 %v106
    %754 = vmatprep.subr.mxu0 0.0
    %755 = vmatpush1.msra.mxu0 %v107
    %756 = vmatprep.subr.mxu0 0.0
    %757 = vmatpush1.msra.mxu0 %v108
    %758 = vmatprep.subr.mxu0 0.0
    %759 = vmatpush1.msra.mxu0 %v109
    %760 = vmatprep.subr.mxu0 0.0
    %761 = vmatpush1.msra.mxu0 %v110
    %762 = vmatprep.subr.mxu0 0.0
    %763 = vmatpush1.msra.mxu0 %v111
    %764 = vmatprep.subr.mxu0 0.0
    %765 = vmatpush1.msra.mxu0 %v112
    %766 = vmatprep.subr.mxu0 0.0
    %767 = vmatpush1.msra.mxu0 %v113
    %768 = vmatprep.subr.mxu0 0.0
    %769 = vmatpush1.msra.mxu0 %v114
    %770 = vmatprep.subr.mxu0 0.0
    %771 = vmatpush1.msra.mxu0 %v115
    %772 = vmatprep.subr.mxu0 0.0
    %773 = vmatpush1.msra.mxu0 %v116
    %774 = vmatprep.subr.mxu0 0.0
    %775 = vmatpush1.msra.mxu0 %v117
    %776 = vmatprep.subr.mxu0 0.0
    %777 = vmatpush1.msra.mxu0 %v118
    %778 = vmatprep.subr.mxu0 0.0
    %779 = vmatpush1.msra.mxu0 0.0
    %780 = vmatprep.subr.mxu0 0.0
    %781 = vmatpush1.msra.mxu0 0.0
    %782 = vmatprep.subr.mxu0 0.0
    %783 = vmatpush1.msra.mxu0 0.0
    %784 = vmatprep.subr.mxu0 0.0
    %785 = vmatpush1.msra.mxu0 0.0
    %786 = vmatprep.subr.mxu0 0.0
    %787 = vmatpush1.msra.mxu0 0.0
    %788 = vmatprep.subr.mxu0 0.0
    %789 = vmatpush1.msra.mxu0 0.0
    %790 = vmatprep.subr.mxu0 0.0
    %791 = vmatpush1.msra.mxu0 0.0
    %792 = vmatprep.subr.mxu0 0.0
    %793 = vmatpush1.msra.mxu0 0.0
    %794 = vmatprep.subr.mxu0 0.0
    %795 = vmatpush1.msra.mxu0 0.0
    %796 = vmatprep.subr.mxu0 0.0
    %797 = vmatpush1.msra.mxu0 0.0
    %798 = vmatprep.subr.mxu0 0.0
    %799 = vmatpush1.msra.mxu0 0.0
    %800 = vmatprep.subr.mxu0 0.0
    %801 = vmatpush1.msra.mxu0 0.0
    %802 = vmatprep.subr.mxu0 0.0
    %803 = vmatpush1.msra.mxu0 0.0
    %804 = vmatprep.subr.mxu0 0.0
    %805 = vmatpush1.msra.mxu0 0.0
    %806 = vmatprep.subr.mxu0 0.0
    %807 = vmatpush1.msra.mxu0 0.0
    %808 = vmatprep.subr.mxu0 0.0
    %809 = vmatpush1.msra.mxu0 0.0
    %810 = vmatprep.mubr.f32.mxu0 0.0
    %811 = vmatmul.mubr.f32.gmra.mrb[0].mxu0 %v228
    %v812 = vpop.f32.mrb[0].mxu0
    %v813 = vadd.f32 %v148, %v812
    %v814 = vpop.f32.mrb[0].mxu0
    %815 = vdwg.mxu0
    %v816 = vadd.f32 %v638, %v743
    %v817 = vxor.u32 %v816, 2147483648
    %v818 = vmul.f32 %v817, 1.442695
    %v819 = vpow.pop %v818
    %v820 = vadd.f32 %v819, 1.0
    %v821 = vrcp.pop %v820
    %v822 = vmul.f32 1.0, %v821
    %823 = vrot.lane.b32.xlu0 %v822, 32
    %v824 = vpop.permute.xlu0 %823
    %v825 = vmul.f32 %v824, %v743
    %v826 = vadd.f32 %v638, %v825
    %v827 = vtanh.pop %v826
    %828 = vrot.lane.b32.xlu0 %v822, 16
    %v829 = vpop.permute.xlu0 %828
    %v830 = vsub.f32 1.0, %v829
    %v831 = vmul.f32 %v830, %v827
    %v832 = vmul.f32 %v829, %v228
    %v833 = vadd.f32 %v831, %v832
    %834 = vmatprep.subr.mxu0 0.0
    %835 = vmatpush1.msra.mxu0 %v87
    %836 = vmatprep.subr.mxu0 0.0
    %837 = vmatpush1.msra.mxu0 %v88
    %838 = vmatprep.subr.mxu0 0.0
    %839 = vmatpush1.msra.mxu0 %v89
    %840 = vmatprep.subr.mxu0 0.0
    %841 = vmatpush1.msra.mxu0 %v90
    %842 = vmatprep.subr.mxu0 0.0
    %843 = vmatpush1.msra.mxu0 %v91
    %844 = vmatprep.subr.mxu0 0.0
    %845 = vmatpush1.msra.mxu0 %v92
    %846 = vmatprep.subr.mxu0 0.0
    %847 = vmatpush1.msra.mxu0 %v93
    %848 = vmatprep.subr.mxu0 0.0
    %849 = vmatpush1.msra.mxu0 %v94
    %850 = vmatprep.subr.mxu0 0.0
    %851 = vmatpush1.msra.mxu0 %v95
    %852 = vmatprep.subr.mxu0 0.0
    %853 = vmatpush1.msra.mxu0 %v96
    %854 = vmatprep.subr.mxu0 0.0
    %855 = vmatpush1.msra.mxu0 %v97
    %856 = vmatprep.subr.mxu0 0.0
    %857 = vmatpush1.msra.mxu0 %v98
    %858 = vmatprep.subr.mxu0 0.0
    %859 = vmatpush1.msra.mxu0 %v99
    %860 = vmatprep.subr.mxu0 0.0
    %861 = vmatpush1.msra.mxu0 %v100
    %862 = vmatprep.subr.mxu0 0.0
    %863 = vmatpush1.msra.mxu0 %v101
    %864 = vmatprep.subr.mxu0 0.0
    %865 = vmatpush1.msra.mxu0 %v102
    %866 = vmatprep.subr.mxu0 0.0
    %867 = vmatpush1.msra.mxu0 0.0
    %868 = vmatprep.subr.mxu0 0.0
    %869 = vmatpush1.msra.mxu0 0.0
    %870 = vmatprep.subr.mxu0 0.0
    %871 = vmatpush1.msra.mxu0 0.0
    %872 = vmatprep.subr.mxu0 0.0
    %873 = vmatpush1.msra.mxu0 0.0
    %874 = vmatprep.subr.mxu0 0.0
    %875 = vmatpush1.msra.mxu0 0.0
    %876 = vmatprep.subr.mxu0 0.0
    %877 = vmatpush1.msra.mxu0 0.0
    %878 = vmatprep.subr.mxu0 0.0
    %879 = vmatpush1.msra.mxu0 0.0
    %880 = vmatprep.subr.mxu0 0.0
    %881 = vmatpush1.msra.mxu0 0.0
    %882 = vmatprep.subr.mxu0 0.0
    %883 = vmatpush1.msra.mxu0 0.0
    %884 = vmatprep.subr.mxu0 0.0
    %885 = vmatpush1.msra.mxu0 0.0
    %886 = vmatprep.subr.mxu0 0.0
    %887 = vmatpush1.msra.mxu0 0.0
    %888 = vmatprep.subr.mxu0 0.0
    %889 = vmatpush1.msra.mxu0 0.0
    %890 = vmatprep.subr.mxu0 0.0
    %891 = vmatpush1.msra.mxu0 0.0
    %892 = vmatprep.subr.mxu0 0.0
    %893 = vmatpush1.msra.mxu0 0.0
    %894 = vmatprep.subr.mxu0 0.0
    %895 = vmatpush1.msra.mxu0 0.0
    %896 = vmatprep.subr.mxu0 0.0
    %897 = vmatpush1.msra.mxu0 0.0
    %898 = vmatprep.mubr.f32.mxu0 0.0
    %899 = vmatmul.mubr.f32.gmra.mrb[0].mxu0 %v833
    %v900 = vpop.f32.mrb[0].mxu0
    %v901 = vadd.f32 %v144, %v900
    %v902 = vpop.f32.mrb[0].mxu0
    %903 = vdwg.mxu0
    %v904 = vadd.f32 %v901, %v813
    %v905 = vxor.u32 %v904, 2147483648
    %v906 = vmul.f32 %v905, 1.442695
    %v907 = vpow.pop %v906
    %v908 = vadd.f32 %v907, 1.0
    %v909 = vrcp.pop %v908
    %v910 = vmul.f32 1.0, %v909
    %911 = vrot.lane.b32.xlu0 %v910, 32
    %v912 = vpop.permute.xlu0 %911
    %v913 = vmul.f32 %v912, %v813
    %v914 = vadd.f32 %v901, %v913
    %v915 = vtanh.pop %v914
    %916 = vrot.lane.b32.xlu0 %v910, 16
    %v917 = vpop.permute.xlu0 %916
    %v918 = vsub.f32 1.0, %v917
    %v919 = vmul.f32 %v918, %v915
    %v920 = vmul.f32 %v917, %v228
    %v921 = vadd.f32 %v919, %v920
    %922 = vmatprep.subr.mxu0 0.0
    %923 = vmatpush1.msra.mxu0 %v71
    %924 = vmatprep.subr.mxu0 0.0
    %925 = vmatpush1.msra.mxu0 %v72
    %926 = vmatprep.subr.mxu0 0.0
    %927 = vmatpush1.msra.mxu0 %v73
    %928 = vmatprep.subr.mxu0 0.0
    %929 = vmatpush1.msra.mxu0 %v74
    %930 = vmatprep.subr.mxu0 0.0
    %931 = vmatpush1.msra.mxu0 %v75
    %932 = vmatprep.subr.mxu0 0.0
    %933 = vmatpush1.msra.mxu0 %v76
    %934 = vmatprep.subr.mxu0 0.0
    %935 = vmatpush1.msra.mxu0 %v77
    %936 = vmatprep.subr.mxu0 0.0
    %937 = vmatpush1.msra.mxu0 %v78
    %938 = vmatprep.subr.mxu0 0.0
    %939 = vmatpush1.msra.mxu0 %v79
    %940 = vmatprep.subr.mxu0 0.0
    %941 = vmatpush1.msra.mxu0 %v80
    %942 = vmatprep.subr.mxu0 0.0
    %943 = vmatpush1.msra.mxu0 %v81
    %944 = vmatprep.subr.mxu0 0.0
    %945 = vmatpush1.msra.mxu0 %v82
    %946 = vmatprep.subr.mxu0 0.0
    %947 = vmatpush1.msra.mxu0 %v83
    %948 = vmatprep.subr.mxu0 0.0
    %949 = vmatpush1.msra.mxu0 %v84
    %950 = vmatprep.subr.mxu0 0.0
    %951 = vmatpush1.msra.mxu0 %v85
    %952 = vmatprep.subr.mxu0 0.0
    %953 = vmatpush1.msra.mxu0 %v86
    %954 = vmatprep.subr.mxu0 0.0
    %955 = vmatpush1.msra.mxu0 0.0
    %956 = vmatprep.subr.mxu0 0.0
    %957 = vmatpush1.msra.mxu0 0.0
    %958 = vmatprep.subr.mxu0 0.0
    %959 = vmatpush1.msra.mxu0 0.0
    %960 = vmatprep.subr.mxu0 0.0
    %961 = vmatpush1.msra.mxu0 0.0
    %962 = vmatprep.subr.mxu0 0.0
    %963 = vmatpush1.msra.mxu0 0.0
    %964 = vmatprep.subr.mxu0 0.0
    %965 = vmatpush1.msra.mxu0 0.0
    %966 = vmatprep.subr.mxu0 0.0
    %967 = vmatpush1.msra.mxu0 0.0
    %968 = vmatprep.subr.mxu0 0.0
    %969 = vmatpush1.msra.mxu0 0.0
    %970 = vmatprep.subr.mxu0 0.0
    %971 = vmatpush1.msra.mxu0 0.0
    %972 = vmatprep.subr.mxu0 0.0
    %973 = vmatpush1.msra.mxu0 0.0
    %974 = vmatprep.subr.mxu0 0.0
    %975 = vmatpush1.msra.mxu0 0.0
    %976 = vmatprep.subr.mxu0 0.0
    %977 = vmatpush1.msra.mxu0 0.0
    %978 = vmatprep.subr.mxu0 0.0
    %979 = vmatpush1.msra.mxu0 0.0
    %980 = vmatprep.subr.mxu0 0.0
    %981 = vmatpush1.msra.mxu0 0.0
    %982 = vmatprep.subr.mxu0 0.0
    %983 = vmatpush1.msra.mxu0 0.0
    %984 = vmatprep.subr.mxu0 0.0
    %985 = vmatpush1.msra.mxu0 0.0
    %986 = vmatprep.mubr.f32.mxu0 0.0
    %987 = vmatmul.mubr.f32.gmra.mrb[0].mxu0 %v833
    %v988 = vpop.f32.mrb[0].mxu0
    %v989 = vadd.f32 %v140, %v988
    %v990 = vpop.f32.mrb[0].mxu0
    %991 = vdwg.mxu0
    %992 = vmatprep.subr.mxu0 0.0
    %993 = vmatpush1.msra.mxu0 %v103
    %994 = vmatprep.subr.mxu0 0.0
    %995 = vmatpush1.msra.mxu0 %v104
    %996 = vmatprep.subr.mxu0 0.0
    %997 = vmatpush1.msra.mxu0 %v105
    %998 = vmatprep.subr.mxu0 0.0
    %999 = vmatpush1.msra.mxu0 %v106
    %1000 = vmatprep.subr.mxu0 0.0
    %1001 = vmatpush1.msra.mxu0 %v107
    %1002 = vmatprep.subr.mxu0 0.0
    %1003 = vmatpush1.msra.mxu0 %v108
    %1004 = vmatprep.subr.mxu0 0.0
    %1005 = vmatpush1.msra.mxu0 %v109
    %1006 = vmatprep.subr.mxu0 0.0
    %1007 = vmatpush1.msra.mxu0 %v110
    %1008 = vmatprep.subr.mxu0 0.0
    %1009 = vmatpush1.msra.mxu0 %v111
    %1010 = vmatprep.subr.mxu0 0.0
    %1011 = vmatpush1.msra.mxu0 %v112
    %1012 = vmatprep.subr.mxu0 0.0
    %1013 = vmatpush1.msra.mxu0 %v113
    %1014 = vmatprep.subr.mxu0 0.0
    %1015 = vmatpush1.msra.mxu0 %v114
    %1016 = vmatprep.subr.mxu0 0.0
    %1017 = vmatpush1.msra.mxu0 %v115
    %1018 = vmatprep.subr.mxu0 0.0
    %1019 = vmatpush1.msra.mxu0 %v116
    %1020 = vmatprep.subr.mxu0 0.0
    %1021 = vmatpush1.msra.mxu0 %v117
    %1022 = vmatprep.subr.mxu0 0.0
    %1023 = vmatpush1.msra.mxu0 %v118
    %1024 = vmatprep.subr.mxu0 0.0
    %1025 = vmatpush1.msra.mxu0 0.0
    %1026 = vmatprep.subr.mxu0 0.0
    %1027 = vmatpush1.msra.mxu0 0.0
    %1028 = vmatprep.subr.mxu0 0.0
    %1029 = vmatpush1.msra.mxu0 0.0
    %1030 = vmatprep.subr.mxu0 0.0
    %1031 = vmatpush1.msra.mxu0 0.0
    %1032 = vmatprep.subr.mxu0 0.0
    %1033 = vmatpush1.msra.mxu0 0.0
    %1034 = vmatprep.subr.mxu0 0.0
    %1035 = vmatpush1.msra.mxu0 0.0
    %1036 = vmatprep.subr.mxu0 0.0
    %1037 = vmatpush1.msra.mxu0 0.0
    %1038 = vmatprep.subr.mxu0 0.0
    %1039 = vmatpush1.msra.mxu0 0.0
    %1040 = vmatprep.subr.mxu0 0.0
    %1041 = vmatpush1.msra.mxu0 0.0
    %1042 = vmatprep.subr.mxu0 0.0
    %1043 = vmatpush1.msra.mxu0 0.0
    %1044 = vmatprep.subr.mxu0 0.0
    %1045 = vmatpush1.msra.mxu0 0.0
    %1046 = vmatprep.subr.mxu0 0.0
    %1047 = vmatpush1.msra.mxu0 0.0
    %1048 = vmatprep.subr.mxu0 0.0
    %1049 = vmatpush1.msra.mxu0 0.0
    %1050 = vmatprep.subr.mxu0 0.0
    %1051 = vmatpush1.msra.mxu0 0.0
    %1052 = vmatprep.subr.mxu0 0.0
    %1053 = vmatpush1.msra.mxu0 0.0
    %1054 = vmatprep.subr.mxu0 0.0
    %1055 = vmatpush1.msra.mxu0 0.0
    %1056 = vmatprep.mubr.f32.mxu0 0.0
    %1057 = vmatmul.mubr.f32.gmra.mrb[0].mxu0 %v921
    %v1058 = vpop.f32.mrb[0].mxu0
    %v1059 = vadd.f32 %v148, %v1058
    %v1060 = vpop.f32.mrb[0].mxu0
    %1061 = vdwg.mxu0
    %v1062 = vadd.f32 %v643, %v989
    %v1063 = vxor.u32 %v1062, 2147483648
    %v1064 = vmul.f32 %v1063, 1.442695
    %v1065 = vpow.pop %v1064
    %v1066 = vadd.f32 %v1065, 1.0
    %v1067 = vrcp.pop %v1066
    %v1068 = vmul.f32 1.0, %v1067
    %1069 = vrot.lane.b32.xlu0 %v1068, 32
    %v1070 = vpop.permute.xlu0 %1069
    %v1071 = vmul.f32 %v1070, %v989
    %v1072 = vadd.f32 %v643, %v1071
    %v1073 = vtanh.pop %v1072
    %1074 = vrot.lane.b32.xlu0 %v1068, 16
    %v1075 = vpop.permute.xlu0 %1074
    %v1076 = vsub.f32 1.0, %v1075
    %v1077 = vmul.f32 %v1076, %v1073
    %v1078 = vmul.f32 %v1075, %v833
    %v1079 = vadd.f32 %v1077, %v1078
    %1080 = vmatprep.subr.mxu0 0.0
    %1081 = vmatpush1.msra.mxu0 %v87
    %1082 = vmatprep.subr.mxu0 0.0
    %1083 = vmatpush1.msra.mxu0 %v88
    %1084 = vmatprep.subr.mxu0 0.0
    %1085 = vmatpush1.msra.mxu0 %v89
    %1086 = vmatprep.subr.mxu0 0.0
    %1087 = vmatpush1.msra.mxu0 %v90
    %1088 = vmatprep.subr.mxu0 0.0
    %1089 = vmatpush1.msra.mxu0 %v91
    %1090 = vmatprep.subr.mxu0 0.0
    %1091 = vmatpush1.msra.mxu0 %v92
    %1092 = vmatprep.subr.mxu0 0.0
    %1093 = vmatpush1.msra.mxu0 %v93
    %1094 = vmatprep.subr.mxu0 0.0
    %1095 = vmatpush1.msra.mxu0 %v94
    %1096 = vmatprep.subr.mxu0 0.0
    %1097 = vmatpush1.msra.mxu0 %v95
    %1098 = vmatprep.subr.mxu0 0.0
    %1099 = vmatpush1.msra.mxu0 %v96
    %1100 = vmatprep.subr.mxu0 0.0
    %1101 = vmatpush1.msra.mxu0 %v97
    %1102 = vmatprep.subr.mxu0 0.0
    %1103 = vmatpush1.msra.mxu0 %v98
    %1104 = vmatprep.subr.mxu0 0.0
    %1105 = vmatpush1.msra.mxu0 %v99
    %1106 = vmatprep.subr.mxu0 0.0
    %1107 = vmatpush1.msra.mxu0 %v100
    %1108 = vmatprep.subr.mxu0 0.0
    %1109 = vmatpush1.msra.mxu0 %v101
    %1110 = vmatprep.subr.mxu0 0.0
    %1111 = vmatpush1.msra.mxu0 %v102
    %1112 = vmatprep.subr.mxu0 0.0
    %1113 = vmatpush1.msra.mxu0 0.0
    %1114 = vmatprep.subr.mxu0 0.0
    %1115 = vmatpush1.msra.mxu0 0.0
    %1116 = vmatprep.subr.mxu0 0.0
    %1117 = vmatpush1.msra.mxu0 0.0
    %1118 = vmatprep.subr.mxu0 0.0
    %1119 = vmatpush1.msra.mxu0 0.0
    %1120 = vmatprep.subr.mxu0 0.0
    %1121 = vmatpush1.msra.mxu0 0.0
    %1122 = vmatprep.subr.mxu0 0.0
    %1123 = vmatpush1.msra.mxu0 0.0
    %1124 = vmatprep.subr.mxu0 0.0
    %1125 = vmatpush1.msra.mxu0 0.0
    %1126 = vmatprep.subr.mxu0 0.0
    %1127 = vmatpush1.msra.mxu0 0.0
    %1128 = vmatprep.subr.mxu0 0.0
    %1129 = vmatpush1.msra.mxu0 0.0
    %1130 = vmatprep.subr.mxu0 0.0
    %1131 = vmatpush1.msra.mxu0 0.0
    %1132 = vmatprep.subr.mxu0 0.0
    %1133 = vmatpush1.msra.mxu0 0.0
    %1134 = vmatprep.subr.mxu0 0.0
    %1135 = vmatpush1.msra.mxu0 0.0
    %1136 = vmatprep.subr.mxu0 0.0
    %1137 = vmatpush1.msra.mxu0 0.0
    %1138 = vmatprep.subr.mxu0 0.0
    %1139 = vmatpush1.msra.mxu0 0.0
    %1140 = vmatprep.subr.mxu0 0.0
    %1141 = vmatpush1.msra.mxu0 0.0
    %1142 = vmatprep.subr.mxu0 0.0
    %1143 = vmatpush1.msra.mxu0 0.0
    %1144 = vmatprep.mubr.f32.mxu0 0.0
    %1145 = vmatmul.mubr.f32.gmra.mrb[0].mxu0 %v1079
    %v1146 = vpop.f32.mrb[0].mxu0
    %v1147 = vadd.f32 %v144, %v1146
    %v1148 = vpop.f32.mrb[0].mxu0
    %1149 = vdwg.mxu0
    %v1150 = vadd.f32 %v1147, %v1059
    %v1151 = vxor.u32 %v1150, 2147483648
    %v1152 = vmul.f32 %v1151, 1.442695
    %v1153 = vpow.pop %v1152
    %v1154 = vadd.f32 %v1153, 1.0
    %v1155 = vrcp.pop %v1154
    %v1156 = vmul.f32 1.0, %v1155
    %1157 = vrot.lane.b32.xlu0 %v1156, 32
    %v1158 = vpop.permute.xlu0 %1157
    %v1159 = vmul.f32 %v1158, %v1059
    %v1160 = vadd.f32 %v1147, %v1159
    %v1161 = vtanh.pop %v1160
    %1162 = vrot.lane.b32.xlu0 %v1156, 16
    %v1163 = vpop.permute.xlu0 %1162
    %v1164 = vsub.f32 1.0, %v1163
    %v1165 = vmul.f32 %v1164, %v1161
    %v1166 = vmul.f32 %v1163, %v921
    %v1167 = vadd.f32 %v1165, %v1166
    %1168 = vmatprep.subr.mxu0 0.0
    %1169 = vmatpush1.msra.mxu0 %v71
    %1170 = vmatprep.subr.mxu0 0.0
    %1171 = vmatpush1.msra.mxu0 %v72
    %1172 = vmatprep.subr.mxu0 0.0
    %1173 = vmatpush1.msra.mxu0 %v73
    %1174 = vmatprep.subr.mxu0 0.0
    %1175 = vmatpush1.msra.mxu0 %v74
    %1176 = vmatprep.subr.mxu0 0.0
    %1177 = vmatpush1.msra.mxu0 %v75
    %1178 = vmatprep.subr.mxu0 0.0
    %1179 = vmatpush1.msra.mxu0 %v76
    %1180 = vmatprep.subr.mxu0 0.0
    %1181 = vmatpush1.msra.mxu0 %v77
    %1182 = vmatprep.subr.mxu0 0.0
    %1183 = vmatpush1.msra.mxu0 %v78
    %1184 = vmatprep.subr.mxu0 0.0
    %1185 = vmatpush1.msra.mxu0 %v79
    %1186 = vmatprep.subr.mxu0 0.0
    %1187 = vmatpush1.msra.mxu0 %v80
    %1188 = vmatprep.subr.mxu0 0.0
    %1189 = vmatpush1.msra.mxu0 %v81
    %1190 = vmatprep.subr.mxu0 0.0
    %1191 = vmatpush1.msra.mxu0 %v82
    %1192 = vmatprep.subr.mxu0 0.0
    %1193 = vmatpush1.msra.mxu0 %v83
    %1194 = vmatprep.subr.mxu0 0.0
    %1195 = vmatpush1.msra.mxu0 %v84
    %1196 = vmatprep.subr.mxu0 0.0
    %1197 = vmatpush1.msra.mxu0 %v85
    %1198 = vmatprep.subr.mxu0 0.0
    %1199 = vmatpush1.msra.mxu0 %v86
    %1200 = vmatprep.subr.mxu0 0.0
    %1201 = vmatpush1.msra.mxu0 0.0
    %1202 = vmatprep.subr.mxu0 0.0
    %1203 = vmatpush1.msra.mxu0 0.0
    %1204 = vmatprep.subr.mxu0 0.0
    %1205 = vmatpush1.msra.mxu0 0.0
    %1206 = vmatprep.subr.mxu0 0.0
    %1207 = vmatpush1.msra.mxu0 0.0
    %1208 = vmatprep.subr.mxu0 0.0
    %1209 = vmatpush1.msra.mxu0 0.0
    %1210 = vmatprep.subr.mxu0 0.0
    %1211 = vmatpush1.msra.mxu0 0.0
    %1212 = vmatprep.subr.mxu0 0.0
    %1213 = vmatpush1.msra.mxu0 0.0
    %1214 = vmatprep.subr.mxu0 0.0
    %1215 = vmatpush1.msra.mxu0 0.0
    %1216 = vmatprep.subr.mxu0 0.0
    %1217 = vmatpush1.msra.mxu0 0.0
    %1218 = vmatprep.subr.mxu0 0.0
    %1219 = vmatpush1.msra.mxu0 0.0
    %1220 = vmatprep.subr.mxu0 0.0
    %1221 = vmatpush1.msra.mxu0 0.0
    %1222 = vmatprep.subr.mxu0 0.0
    %1223 = vmatpush1.msra.mxu0 0.0
    %1224 = vmatprep.subr.mxu0 0.0
    %1225 = vmatpush1.msra.mxu0 0.0
    %1226 = vmatprep.subr.mxu0 0.0
    %1227 = vmatpush1.msra.mxu0 0.0
    %1228 = vmatprep.subr.mxu0 0.0
    %1229 = vmatpush1.msra.mxu0 0.0
    %1230 = vmatprep.subr.mxu0 0.0
    %1231 = vmatpush1.msra.mxu0 0.0
    %1232 = vmatprep.mubr.f32.mxu0 0.0
    %1233 = vmatmul.mubr.f32.gmra.mrb[0].mxu0 %v1079
    %v1234 = vpop.f32.mrb[0].mxu0
    %v1235 = vadd.f32 %v140, %v1234
    %v1236 = vpop.f32.mrb[0].mxu0
    %1237 = vdwg.mxu0
    %1238 = vmatprep.subr.mxu0 0.0
    %1239 = vmatpush1.msra.mxu0 %v103
    %1240 = vmatprep.subr.mxu0 0.0
    %1241 = vmatpush1.msra.mxu0 %v104
    %1242 = vmatprep.subr.mxu0 0.0
    %1243 = vmatpush1.msra.mxu0 %v105
    %1244 = vmatprep.subr.mxu0 0.0
    %1245 = vmatpush1.msra.mxu0 %v106
    %1246 = vmatprep.subr.mxu0 0.0
    %1247 = vmatpush1.msra.mxu0 %v107
    %1248 = vmatprep.subr.mxu0 0.0
    %1249 = vmatpush1.msra.mxu0 %v108
    %1250 = vmatprep.subr.mxu0 0.0
    %1251 = vmatpush1.msra.mxu0 %v109
    %1252 = vmatprep.subr.mxu0 0.0
    %1253 = vmatpush1.msra.mxu0 %v110
    %1254 = vmatprep.subr.mxu0 0.0
    %1255 = vmatpush1.msra.mxu0 %v111
    %1256 = vmatprep.subr.mxu0 0.0
    %1257 = vmatpush1.msra.mxu0 %v112
    %1258 = vmatprep.subr.mxu0 0.0
    %1259 = vmatpush1.msra.mxu0 %v113
    %1260 = vmatprep.subr.mxu0 0.0
    %1261 = vmatpush1.msra.mxu0 %v114
    %1262 = vmatprep.subr.mxu0 0.0
    %1263 = vmatpush1.msra.mxu0 %v115
    %1264 = vmatprep.subr.mxu0 0.0
    %1265 = vmatpush1.msra.mxu0 %v116
    %1266 = vmatprep.subr.mxu0 0.0
    %1267 = vmatpush1.msra.mxu0 %v117
    %1268 = vmatprep.subr.mxu0 0.0
    %1269 = vmatpush1.msra.mxu0 %v118
    %1270 = vmatprep.subr.mxu0 0.0
    %1271 = vmatpush1.msra.mxu0 0.0
    %1272 = vmatprep.subr.mxu0 0.0
    %1273 = vmatpush1.msra.mxu0 0.0
    %1274 = vmatprep.subr.mxu0 0.0
    %1275 = vmatpush1.msra.mxu0 0.0
    %1276 = vmatprep.subr.mxu0 0.0
    %1277 = vmatpush1.msra.mxu0 0.0
    %1278 = vmatprep.subr.mxu0 0.0
    %1279 = vmatpush1.msra.mxu0 0.0
    %1280 = vmatprep.subr.mxu0 0.0
    %1281 = vmatpush1.msra.mxu0 0.0
    %1282 = vmatprep.subr.mxu0 0.0
    %1283 = vmatpush1.msra.mxu0 0.0
    %1284 = vmatprep.subr.mxu0 0.0
    %1285 = vmatpush1.msra.mxu0 0.0
    %1286 = vmatprep.subr.mxu0 0.0
    %1287 = vmatpush1.msra.mxu0 0.0
    %1288 = vmatprep.subr.mxu0 0.0
    %1289 = vmatpush1.msra.mxu0 0.0
    %1290 = vmatprep.subr.mxu0 0.0
    %1291 = vmatpush1.msra.mxu0 0.0
    %1292 = vmatprep.subr.mxu0 0.0
    %1293 = vmatpush1.msra.mxu0 0.0
    %1294 = vmatprep.subr.mxu0 0.0
    %1295 = vmatpush1.msra.mxu0 0.0
    %1296 = vmatprep.subr.mxu0 0.0
    %1297 = vmatpush1.msra.mxu0 0.0
    %1298 = vmatprep.subr.mxu0 0.0
    %1299 = vmatpush1.msra.mxu0 0.0
    %1300 = vmatprep.subr.mxu0 0.0
    %1301 = vmatpush1.msra.mxu0 0.0
    %1302 = vmatprep.mubr.f32.mxu0 0.0
    %1303 = vmatmul.mubr.f32.gmra.mrb[0].mxu0 %v1167
    %v1304 = vpop.f32.mrb[0].mxu0
    %v1305 = vadd.f32 %v148, %v1304
    %v1306 = vpop.f32.mrb[0].mxu0
    %1307 = vdwg.mxu0
    %v1308 = vadd.f32 %v648, %v1235
    %v1309 = vxor.u32 %v1308, 2147483648
    %v1310 = vmul.f32 %v1309, 1.442695
    %v1311 = vpow.pop %v1310
    %v1312 = vadd.f32 %v1311, 1.0
    %v1313 = vrcp.pop %v1312
    %v1314 = vmul.f32 1.0, %v1313
    %1315 = vrot.lane.b32.xlu0 %v1314, 32
    %v1316 = vpop.permute.xlu0 %1315
    %v1317 = vmul.f32 %v1316, %v1235
    %v1318 = vadd.f32 %v648, %v1317
    %v1319 = vtanh.pop %v1318
    %1320 = vrot.lane.b32.xlu0 %v1314, 16
    %v1321 = vpop.permute.xlu0 %1320
    %v1322 = vsub.f32 1.0, %v1321
    %v1323 = vmul.f32 %v1322, %v1319
    %v1324 = vmul.f32 %v1321, %v1079
    %v1325 = vadd.f32 %v1323, %v1324
    %1326 = vmatprep.subr.mxu0 0.0
    %1327 = vmatpush1.msra.mxu0 %v87
    %1328 = vmatprep.subr.mxu0 0.0
    %1329 = vmatpush1.msra.mxu0 %v88
    %1330 = vmatprep.subr.mxu0 0.0
    %1331 = vmatpush1.msra.mxu0 %v89
    %1332 = vmatprep.subr.mxu0 0.0
    %1333 = vmatpush1.msra.mxu0 %v90
    %1334 = vmatprep.subr.mxu0 0.0
    %1335 = vmatpush1.msra.mxu0 %v91
    %1336 = vmatprep.subr.mxu0 0.0
    %1337 = vmatpush1.msra.mxu0 %v92
    %1338 = vmatprep.subr.mxu0 0.0
    %1339 = vmatpush1.msra.mxu0 %v93
    %1340 = vmatprep.subr.mxu0 0.0
    %1341 = vmatpush1.msra.mxu0 %v94
    %1342 = vmatprep.subr.mxu0 0.0
    %1343 = vmatpush1.msra.mxu0 %v95
    %1344 = vmatprep.subr.mxu0 0.0
    %1345 = vmatpush1.msra.mxu0 %v96
    %1346 = vmatprep.subr.mxu0 0.0
    %1347 = vmatpush1.msra.mxu0 %v97
    %1348 = vmatprep.subr.mxu0 0.0
    %1349 = vmatpush1.msra.mxu0 %v98
    %1350 = vmatprep.subr.mxu0 0.0
    %1351 = vmatpush1.msra.mxu0 %v99
    %1352 = vmatprep.subr.mxu0 0.0
    %1353 = vmatpush1.msra.mxu0 %v100
    %1354 = vmatprep.subr.mxu0 0.0
    %1355 = vmatpush1.msra.mxu0 %v101
    %1356 = vmatprep.subr.mxu0 0.0
    %1357 = vmatpush1.msra.mxu0 %v102
    %1358 = vmatprep.subr.mxu0 0.0
    %1359 = vmatpush1.msra.mxu0 0.0
    %1360 = vmatprep.subr.mxu0 0.0
    %1361 = vmatpush1.msra.mxu0 0.0
    %1362 = vmatprep.subr.mxu0 0.0
    %1363 = vmatpush1.msra.mxu0 0.0
    %1364 = vmatprep.subr.mxu0 0.0
    %1365 = vmatpush1.msra.mxu0 0.0
    %1366 = vmatprep.subr.mxu0 0.0
    %1367 = vmatpush1.msra.mxu0 0.0
    %1368 = vmatprep.subr.mxu0 0.0
    %1369 = vmatpush1.msra.mxu0 0.0
    %1370 = vmatprep.subr.mxu0 0.0
    %1371 = vmatpush1.msra.mxu0 0.0
    %1372 = vmatprep.subr.mxu0 0.0
    %1373 = vmatpush1.msra.mxu0 0.0
    %1374 = vmatprep.subr.mxu0 0.0
    %1375 = vmatpush1.msra.mxu0 0.0
    %1376 = vmatprep.subr.mxu0 0.0
    %1377 = vmatpush1.msra.mxu0 0.0
    %1378 = vmatprep.subr.mxu0 0.0
    %1379 = vmatpush1.msra.mxu0 0.0
    %1380 = vmatprep.subr.mxu0 0.0
    %1381 = vmatpush1.msra.mxu0 0.0
    %1382 = vmatprep.subr.mxu0 0.0
    %1383 = vmatpush1.msra.mxu0 0.0
    %1384 = vmatprep.subr.mxu0 0.0
    %1385 = vmatpush1.msra.mxu0 0.0
    %1386 = vmatprep.subr.mxu0 0.0
    %1387 = vmatpush1.msra.mxu0 0.0
    %1388 = vmatprep.subr.mxu0 0.0
    %1389 = vmatpush1.msra.mxu0 0.0
    %1390 = vmatprep.mubr.f32.mxu0 0.0
    %1391 = vmatmul.mubr.f32.gmra.mrb[0].mxu0 %v1325
    %v1392 = vpop.f32.mrb[0].mxu0
    %v1393 = vadd.f32 %v144, %v1392
    %v1394 = vpop.f32.mrb[0].mxu0
    %1395 = vdwg.mxu0
    %v1396 = vadd.f32 %v1393, %v1305
    %v1397 = vxor.u32 %v1396, 2147483648
    %v1398 = vmul.f32 %v1397, 1.442695
    %v1399 = vpow.pop %v1398
    %v1400 = vadd.f32 %v1399, 1.0
    %v1401 = vrcp.pop %v1400
    %v1402 = vmul.f32 1.0, %v1401
    %1403 = vrot.lane.b32.xlu0 %v1402, 32
    %v1404 = vpop.permute.xlu0 %1403
    %v1405 = vmul.f32 %v1404, %v1305
    %v1406 = vadd.f32 %v1393, %v1405
    %v1407 = vtanh.pop %v1406
    %1408 = vrot.lane.b32.xlu0 %v1402, 16
    %v1409 = vpop.permute.xlu0 %1408
    %v1410 = vsub.f32 1.0, %v1409
    %v1411 = vmul.f32 %v1410, %v1407
    %v1412 = vmul.f32 %v1409, %v1167
    %v1413 = vadd.f32 %v1411, %v1412
    %1414 = vmatprep.subr.mxu0 0.0
    %1415 = vmatpush1.msra.mxu0 %v71
    %1416 = vmatprep.subr.mxu0 0.0
    %1417 = vmatpush1.msra.mxu0 %v72
    %1418 = vmatprep.subr.mxu0 0.0
    %1419 = vmatpush1.msra.mxu0 %v73
    %1420 = vmatprep.subr.mxu0 0.0
    %1421 = vmatpush1.msra.mxu0 %v74
    %1422 = vmatprep.subr.mxu0 0.0
    %1423 = vmatpush1.msra.mxu0 %v75
    %1424 = vmatprep.subr.mxu0 0.0
    %1425 = vmatpush1.msra.mxu0 %v76
    %1426 = vmatprep.subr.mxu0 0.0
    %1427 = vmatpush1.msra.mxu0 %v77
    %1428 = vmatprep.subr.mxu0 0.0
    %1429 = vmatpush1.msra.mxu0 %v78
    %1430 = vmatprep.subr.mxu0 0.0
    %1431 = vmatpush1.msra.mxu0 %v79
    %1432 = vmatprep.subr.mxu0 0.0
    %1433 = vmatpush1.msra.mxu0 %v80
    %1434 = vmatprep.subr.mxu0 0.0
    %1435 = vmatpush1.msra.mxu0 %v81
    %1436 = vmatprep.subr.mxu0 0.0
    %1437 = vmatpush1.msra.mxu0 %v82
    %1438 = vmatprep.subr.mxu0 0.0
    %1439 = vmatpush1.msra.mxu0 %v83
    %1440 = vmatprep.subr.mxu0 0.0
    %1441 = vmatpush1.msra.mxu0 %v84
    %1442 = vmatprep.subr.mxu0 0.0
    %1443 = vmatpush1.msra.mxu0 %v85
    %1444 = vmatprep.subr.mxu0 0.0
    %1445 = vmatpush1.msra.mxu0 %v86
    %1446 = vmatprep.subr.mxu0 0.0
    %1447 = vmatpush1.msra.mxu0 0.0
    %1448 = vmatprep.subr.mxu0 0.0
    %1449 = vmatpush1.msra.mxu0 0.0
    %1450 = vmatprep.subr.mxu0 0.0
    %1451 = vmatpush1.msra.mxu0 0.0
    %1452 = vmatprep.subr.mxu0 0.0
    %1453 = vmatpush1.msra.mxu0 0.0
    %1454 = vmatprep.subr.mxu0 0.0
    %1455 = vmatpush1.msra.mxu0 0.0
    %1456 = vmatprep.subr.mxu0 0.0
    %1457 = vmatpush1.msra.mxu0 0.0
    %1458 = vmatprep.subr.mxu0 0.0
    %1459 = vmatpush1.msra.mxu0 0.0
    %1460 = vmatprep.subr.mxu0 0.0
    %1461 = vmatpush1.msra.mxu0 0.0
    %1462 = vmatprep.subr.mxu0 0.0
    %1463 = vmatpush1.msra.mxu0 0.0
    %1464 = vmatprep.subr.mxu0 0.0
    %1465 = vmatpush1.msra.mxu0 0.0
    %1466 = vmatprep.subr.mxu0 0.0
    %1467 = vmatpush1.msra.mxu0 0.0
    %1468 = vmatprep.subr.mxu0 0.0
    %1469 = vmatpush1.msra.mxu0 0.0
    %1470 = vmatprep.subr.mxu0 0.0
    %1471 = vmatpush1.msra.mxu0 0.0
    %1472 = vmatprep.subr.mxu0 0.0
    %1473 = vmatpush1.msra.mxu0 0.0
    %1474 = vmatprep.subr.mxu0 0.0
    %1475 = vmatpush1.msra.mxu0 0.0
    %1476 = vmatprep.subr.mxu0 0.0
    %1477 = vmatpush1.msra.mxu0 0.0
    %1478 = vmatprep.mubr.f32.mxu0 0.0
    %1479 = vmatmul.mubr.f32.gmra.mrb[0].mxu0 %v1325
    %v1480 = vpop.f32.mrb[0].mxu0
    %v1481 = vadd.f32 %v140, %v1480
    %v1482 = vpop.f32.mrb[0].mxu0
    %1483 = vdwg.mxu0
    %1484 = vmatprep.subr.mxu0 0.0
    %1485 = vmatpush1.msra.mxu0 %v103
    %1486 = vmatprep.subr.mxu0 0.0
    %1487 = vmatpush1.msra.mxu0 %v104
    %1488 = vmatprep.subr.mxu0 0.0
    %1489 = vmatpush1.msra.mxu0 %v105
    %1490 = vmatprep.subr.mxu0 0.0
    %1491 = vmatpush1.msra.mxu0 %v106
    %1492 = vmatprep.subr.mxu0 0.0
    %1493 = vmatpush1.msra.mxu0 %v107
    %1494 = vmatprep.subr.mxu0 0.0
    %1495 = vmatpush1.msra.mxu0 %v108
    %1496 = vmatprep.subr.mxu0 0.0
    %1497 = vmatpush1.msra.mxu0 %v109
    %1498 = vmatprep.subr.mxu0 0.0
    %1499 = vmatpush1.msra.mxu0 %v110
    %1500 = vmatprep.subr.mxu0 0.0
    %1501 = vmatpush1.msra.mxu0 %v111
    %1502 = vmatprep.subr.mxu0 0.0
    %1503 = vmatpush1.msra.mxu0 %v112
    %1504 = vmatprep.subr.mxu0 0.0
    %1505 = vmatpush1.msra.mxu0 %v113
    %1506 = vmatprep.subr.mxu0 0.0
    %1507 = vmatpush1.msra.mxu0 %v114
    %1508 = vmatprep.subr.mxu0 0.0
    %1509 = vmatpush1.msra.mxu0 %v115
    %1510 = vmatprep.subr.mxu0 0.0
    %1511 = vmatpush1.msra.mxu0 %v116
    %1512 = vmatprep.subr.mxu0 0.0
    %1513 = vmatpush1.msra.mxu0 %v117
    %1514 = vmatprep.subr.mxu0 0.0
    %1515 = vmatpush1.msra.mxu0 %v118
    %1516 = vmatprep.subr.mxu0 0.0
    %1517 = vmatpush1.msra.mxu0 0.0
    %1518 = vmatprep.subr.mxu0 0.0
    %1519 = vmatpush1.msra.mxu0 0.0
    %1520 = vmatprep.subr.mxu0 0.0
    %1521 = vmatpush1.msra.mxu0 0.0
    %1522 = vmatprep.subr.mxu0 0.0
    %1523 = vmatpush1.msra.mxu0 0.0
    %1524 = vmatprep.subr.mxu0 0.0
    %1525 = vmatpush1.msra.mxu0 0.0
    %1526 = vmatprep.subr.mxu0 0.0
    %1527 = vmatpush1.msra.mxu0 0.0
    %1528 = vmatprep.subr.mxu0 0.0
    %1529 = vmatpush1.msra.mxu0 0.0
    %1530 = vmatprep.subr.mxu0 0.0
    %1531 = vmatpush1.msra.mxu0 0.0
    %1532 = vmatprep.subr.mxu0 0.0
    %1533 = vmatpush1.msra.mxu0 0.0
    %1534 = vmatprep.subr.mxu0 0.0
    %1535 = vmatpush1.msra.mxu0 0.0
    %1536 = vmatprep.subr.mxu0 0.0
    %1537 = vmatpush1.msra.mxu0 0.0
    %1538 = vmatprep.subr.mxu0 0.0
    %1539 = vmatpush1.msra.mxu0 0.0
    %1540 = vmatprep.subr.mxu0 0.0
    %1541 = vmatpush1.msra.mxu0 0.0
    %1542 = vmatprep.subr.mxu0 0.0
    %1543 = vmatpush1.msra.mxu0 0.0
    %1544 = vmatprep.subr.mxu0 0.0
    %1545 = vmatpush1.msra.mxu0 0.0
    %1546 = vmatprep.subr.mxu0 0.0
    %1547 = vmatpush1.msra.mxu0 0.0
    %1548 = vmatprep.mubr.f32.mxu0 0.0
    %1549 = vmatmul.mubr.f32.gmra.mrb[0].mxu0 %v1413
    %v1550 = vpop.f32.mrb[0].mxu0
    %v1551 = vadd.f32 %v148, %v1550
    %v1552 = vpop.f32.mrb[0].mxu0
    %1553 = vdwg.mxu0
    %v1554 = vadd.f32 %v653, %v1481
    %v1555 = vxor.u32 %v1554, 2147483648
    %v1556 = vmul.f32 %v1555, 1.442695
    %v1557 = vpow.pop %v1556
    %v1558 = vadd.f32 %v1557, 1.0
    %v1559 = vrcp.pop %v1558
    %v1560 = vmul.f32 1.0, %v1559
    %1561 = vrot.lane.b32.xlu0 %v1560, 32
    %v1562 = vpop.permute.xlu0 %1561
    %v1563 = vmul.f32 %v1562, %v1481
    %v1564 = vadd.f32 %v653, %v1563
    %v1565 = vtanh.pop %v1564
    %1566 = vrot.lane.b32.xlu0 %v1560, 16
    %v1567 = vpop.permute.xlu0 %1566
    %v1568 = vsub.f32 1.0, %v1567
    %v1569 = vmul.f32 %v1568, %v1565
    %v1570 = vmul.f32 %v1567, %v1325
    %v1571 = vadd.f32 %v1569, %v1570
    %1572 = vmatprep.subr.mxu0 0.0
    %1573 = vmatpush1.msra.mxu0 %v87
    %1574 = vmatprep.subr.mxu0 0.0
    %1575 = vmatpush1.msra.mxu0 %v88
    %1576 = vmatprep.subr.mxu0 0.0
    %1577 = vmatpush1.msra.mxu0 %v89
    %1578 = vmatprep.subr.mxu0 0.0
    %1579 = vmatpush1.msra.mxu0 %v90
    %1580 = vmatprep.subr.mxu0 0.0
    %1581 = vmatpush1.msra.mxu0 %v91
    %1582 = vmatprep.subr.mxu0 0.0
    %1583 = vmatpush1.msra.mxu0 %v92
    %1584 = vmatprep.subr.mxu0 0.0
    %1585 = vmatpush1.msra.mxu0 %v93
    %1586 = vmatprep.subr.mxu0 0.0
    %1587 = vmatpush1.msra.mxu0 %v94
    %1588 = vmatprep.subr.mxu0 0.0
    %1589 = vmatpush1.msra.mxu0 %v95
    %1590 = vmatprep.subr.mxu0 0.0
    %1591 = vmatpush1.msra.mxu0 %v96
    %1592 = vmatprep.subr.mxu0 0.0
    %1593 = vmatpush1.msra.mxu0 %v97
    %1594 = vmatprep.subr.mxu0 0.0
    %1595 = vmatpush1.msra.mxu0 %v98
    %1596 = vmatprep.subr.mxu0 0.0
    %1597 = vmatpush1.msra.mxu0 %v99
    %1598 = vmatprep.subr.mxu0 0.0
    %1599 = vmatpush1.msra.mxu0 %v100
    %1600 = vmatprep.subr.mxu0 0.0
    %1601 = vmatpush1.msra.mxu0 %v101
    %1602 = vmatprep.subr.mxu0 0.0
    %1603 = vmatpush1.msra.mxu0 %v102
    %1604 = vmatprep.subr.mxu0 0.0
    %1605 = vmatpush1.msra.mxu0 0.0
    %1606 = vmatprep.subr.mxu0 0.0
    %1607 = vmatpush1.msra.mxu0 0.0
    %1608 = vmatprep.subr.mxu0 0.0
    %1609 = vmatpush1.msra.mxu0 0.0
    %1610 = vmatprep.subr.mxu0 0.0
    %1611 = vmatpush1.msra.mxu0 0.0
    %1612 = vmatprep.subr.mxu0 0.0
    %1613 = vmatpush1.msra.mxu0 0.0
    %1614 = vmatprep.subr.mxu0 0.0
    %1615 = vmatpush1.msra.mxu0 0.0
    %1616 = vmatprep.subr.mxu0 0.0
    %1617 = vmatpush1.msra.mxu0 0.0
    %1618 = vmatprep.subr.mxu0 0.0
    %1619 = vmatpush1.msra.mxu0 0.0
    %1620 = vmatprep.subr.mxu0 0.0
    %1621 = vmatpush1.msra.mxu0 0.0
    %1622 = vmatprep.subr.mxu0 0.0
    %1623 = vmatpush1.msra.mxu0 0.0
    %1624 = vmatprep.subr.mxu0 0.0
    %1625 = vmatpush1.msra.mxu0 0.0
    %1626 = vmatprep.subr.mxu0 0.0
    %1627 = vmatpush1.msra.mxu0 0.0
    %1628 = vmatprep.subr.mxu0 0.0
    %1629 = vmatpush1.msra.mxu0 0.0
    %1630 = vmatprep.subr.mxu0 0.0
    %1631 = vmatpush1.msra.mxu0 0.0
    %1632 = vmatprep.subr.mxu0 0.0
    %1633 = vmatpush1.msra.mxu0 0.0
    %1634 = vmatprep.subr.mxu0 0.0
    %1635 = vmatpush1.msra.mxu0 0.0
    %1636 = vmatprep.mubr.f32.mxu0 0.0
    %1637 = vmatmul.mubr.f32.gmra.mrb[0].mxu0 %v1571
    %v1638 = vpop.f32.mrb[0].mxu0
    %v1639 = vadd.f32 %v144, %v1638
    %v1640 = vpop.f32.mrb[0].mxu0
    %1641 = vdwg.mxu0
    %v1642 = vadd.f32 %v1639, %v1551
    %v1643 = vxor.u32 %v1642, 2147483648
    %v1644 = vmul.f32 %v1643, 1.442695
    %v1645 = vpow.pop %v1644
    %v1646 = vadd.f32 %v1645, 1.0
    %v1647 = vrcp.pop %v1646
    %v1648 = vmul.f32 1.0, %v1647
    %1649 = vrot.lane.b32.xlu0 %v1648, 32
    %v1650 = vpop.permute.xlu0 %1649
    %v1651 = vmul.f32 %v1650, %v1551
    %v1652 = vadd.f32 %v1639, %v1651
    %v1653 = vtanh.pop %v1652
    %1654 = vrot.lane.b32.xlu0 %v1648, 16
    %v1655 = vpop.permute.xlu0 %1654
    %v1656 = vsub.f32 1.0, %v1655
    %v1657 = vmul.f32 %v1656, %v1653
    %v1658 = vmul.f32 %v1655, %v1413
    %v1659 = vadd.f32 %v1657, %v1658
    %1660 = vmatprep.subr.mxu0 0.0
    %1661 = vmatpush1.msra.mxu0 %v71
    %1662 = vmatprep.subr.mxu0 0.0
    %1663 = vmatpush1.msra.mxu0 %v72
    %1664 = vmatprep.subr.mxu0 0.0
    %1665 = vmatpush1.msra.mxu0 %v73
    %1666 = vmatprep.subr.mxu0 0.0
    %1667 = vmatpush1.msra.mxu0 %v74
    %1668 = vmatprep.subr.mxu0 0.0
    %1669 = vmatpush1.msra.mxu0 %v75
    %1670 = vmatprep.subr.mxu0 0.0
    %1671 = vmatpush1.msra.mxu0 %v76
    %1672 = vmatprep.subr.mxu0 0.0
    %1673 = vmatpush1.msra.mxu0 %v77
    %1674 = vmatprep.subr.mxu0 0.0
    %1675 = vmatpush1.msra.mxu0 %v78
    %1676 = vmatprep.subr.mxu0 0.0
    %1677 = vmatpush1.msra.mxu0 %v79
    %1678 = vmatprep.subr.mxu0 0.0
    %1679 = vmatpush1.msra.mxu0 %v80
    %1680 = vmatprep.subr.mxu0 0.0
    %1681 = vmatpush1.msra.mxu0 %v81
    %1682 = vmatprep.subr.mxu0 0.0
    %1683 = vmatpush1.msra.mxu0 %v82
    %1684 = vmatprep.subr.mxu0 0.0
    %1685 = vmatpush1.msra.mxu0 %v83
    %1686 = vmatprep.subr.mxu0 0.0
    %1687 = vmatpush1.msra.mxu0 %v84
    %1688 = vmatprep.subr.mxu0 0.0
    %1689 = vmatpush1.msra.mxu0 %v85
    %1690 = vmatprep.subr.mxu0 0.0
    %1691 = vmatpush1.msra.mxu0 %v86
    %1692 = vmatprep.subr.mxu0 0.0
    %1693 = vmatpush1.msra.mxu0 0.0
    %1694 = vmatprep.subr.mxu0 0.0
    %1695 = vmatpush1.msra.mxu0 0.0
    %1696 = vmatprep.subr.mxu0 0.0
    %1697 = vmatpush1.msra.mxu0 0.0
    %1698 = vmatprep.subr.mxu0 0.0
    %1699 = vmatpush1.msra.mxu0 0.0
    %1700 = vmatprep.subr.mxu0 0.0
    %1701 = vmatpush1.msra.mxu0 0.0
    %1702 = vmatprep.subr.mxu0 0.0
    %1703 = vmatpush1.msra.mxu0 0.0
    %1704 = vmatprep.subr.mxu0 0.0
    %1705 = vmatpush1.msra.mxu0 0.0
    %1706 = vmatprep.subr.mxu0 0.0
    %1707 = vmatpush1.msra.mxu0 0.0
    %1708 = vmatprep.subr.mxu0 0.0
    %1709 = vmatpush1.msra.mxu0 0.0
    %1710 = vmatprep.subr.mxu0 0.0
    %1711 = vmatpush1.msra.mxu0 0.0
    %1712 = vmatprep.subr.mxu0 0.0
    %1713 = vmatpush1.msra.mxu0 0.0
    %1714 = vmatprep.subr.mxu0 0.0
    %1715 = vmatpush1.msra.mxu0 0.0
    %1716 = vmatprep.subr.mxu0 0.0
    %1717 = vmatpush1.msra.mxu0 0.0
    %1718 = vmatprep.subr.mxu0 0.0
    %1719 = vmatpush1.msra.mxu0 0.0
    %1720 = vmatprep.subr.mxu0 0.0
    %1721 = vmatpush1.msra.mxu0 0.0
    %1722 = vmatprep.subr.mxu0 0.0
    %1723 = vmatpush1.msra.mxu0 0.0
    %1724 = vmatprep.mubr.f32.mxu0 0.0
    %1725 = vmatmul.mubr.f32.gmra.mrb[0].mxu0 %v1571
    %v1726 = vpop.f32.mrb[0].mxu0
    %v1727 = vadd.f32 %v140, %v1726
    %v1728 = vpop.f32.mrb[0].mxu0
    %1729 = vdwg.mxu0
    %1730 = vmatprep.subr.mxu0 0.0
    %1731 = vmatpush1.msra.mxu0 %v103
    %1732 = vmatprep.subr.mxu0 0.0
    %1733 = vmatpush1.msra.mxu0 %v104
    %1734 = vmatprep.subr.mxu0 0.0
    %1735 = vmatpush1.msra.mxu0 %v105
    %1736 = vmatprep.subr.mxu0 0.0
    %1737 = vmatpush1.msra.mxu0 %v106
    %1738 = vmatprep.subr.mxu0 0.0
    %1739 = vmatpush1.msra.mxu0 %v107
    %1740 = vmatprep.subr.mxu0 0.0
    %1741 = vmatpush1.msra.mxu0 %v108
    %1742 = vmatprep.subr.mxu0 0.0
    %1743 = vmatpush1.msra.mxu0 %v109
    %1744 = vmatprep.subr.mxu0 0.0
    %1745 = vmatpush1.msra.mxu0 %v110
    %1746 = vmatprep.subr.mxu0 0.0
    %1747 = vmatpush1.msra.mxu0 %v111
    %1748 = vmatprep.subr.mxu0 0.0
    %1749 = vmatpush1.msra.mxu0 %v112
    %1750 = vmatprep.subr.mxu0 0.0
    %1751 = vmatpush1.msra.mxu0 %v113
    %1752 = vmatprep.subr.mxu0 0.0
    %1753 = vmatpush1.msra.mxu0 %v114
    %1754 = vmatprep.subr.mxu0 0.0
    %1755 = vmatpush1.msra.mxu0 %v115
    %1756 = vmatprep.subr.mxu0 0.0
    %1757 = vmatpush1.msra.mxu0 %v116
    %1758 = vmatprep.subr.mxu0 0.0
    %1759 = vmatpush1.msra.mxu0 %v117
    %1760 = vmatprep.subr.mxu0 0.0
    %1761 = vmatpush1.msra.mxu0 %v118
    %1762 = vmatprep.subr.mxu0 0.0
    %1763 = vmatpush1.msra.mxu0 0.0
    %1764 = vmatprep.subr.mxu0 0.0
    %1765 = vmatpush1.msra.mxu0 0.0
    %1766 = vmatprep.subr.mxu0 0.0
    %1767 = vmatpush1.msra.mxu0 0.0
    %1768 = vmatprep.subr.mxu0 0.0
    %1769 = vmatpush1.msra.mxu0 0.0
    %1770 = vmatprep.subr.mxu0 0.0
    %1771 = vmatpush1.msra.mxu0 0.0
    %1772 = vmatprep.subr.mxu0 0.0
    %1773 = vmatpush1.msra.mxu0 0.0
    %1774 = vmatprep.subr.mxu0 0.0
    %1775 = vmatpush1.msra.mxu0 0.0
    %1776 = vmatprep.subr.mxu0 0.0
    %1777 = vmatpush1.msra.mxu0 0.0
    %1778 = vmatprep.subr.mxu0 0.0
    %1779 = vmatpush1.msra.mxu0 0.0
    %1780 = vmatprep.subr.mxu0 0.0
    %1781 = vmatpush1.msra.mxu0 0.0
    %1782 = vmatprep.subr.mxu0 0.0
    %1783 = vmatpush1.msra.mxu0 0.0
    %1784 = vmatprep.subr.mxu0 0.0
    %1785 = vmatpush1.msra.mxu0 0.0
    %1786 = vmatprep.subr.mxu0 0.0
    %1787 = vmatpush1.msra.mxu0 0.0
    %1788 = vmatprep.subr.mxu0 0.0
    %1789 = vmatpush1.msra.mxu0 0.0
    %1790 = vmatprep.subr.mxu0 0.0
    %1791 = vmatpush1.msra.mxu0 0.0
    %1792 = vmatprep.subr.mxu0 0.0
    %1793 = vmatpush1.msra.mxu0 0.0
    %1794 = vmatprep.mubr.f32.mxu0 0.0
    %1795 = vmatmul.mubr.f32.gmra.mrb[0].mxu0 %v1659
    %v1796 = vpop.f32.mrb[0].mxu0
    %v1797 = vadd.f32 %v148, %v1796
    %v1798 = vpop.f32.mrb[0].mxu0
    %1799 = vdwg.mxu0
    %v1800 = vadd.f32 %v658, %v1727
    %v1801 = vxor.u32 %v1800, 2147483648
    %v1802 = vmul.f32 %v1801, 1.442695
    %v1803 = vpow.pop %v1802
    %v1804 = vadd.f32 %v1803, 1.0
    %v1805 = vrcp.pop %v1804
    %v1806 = vmul.f32 1.0, %v1805
    %1807 = vrot.lane.b32.xlu0 %v1806, 32
    %v1808 = vpop.permute.xlu0 %1807
    %v1809 = vmul.f32 %v1808, %v1727
    %v1810 = vadd.f32 %v658, %v1809
    %v1811 = vtanh.pop %v1810
    %1812 = vrot.lane.b32.xlu0 %v1806, 16
    %v1813 = vpop.permute.xlu0 %1812
    %v1814 = vsub.f32 1.0, %v1813
    %v1815 = vmul.f32 %v1814, %v1811
    %v1816 = vmul.f32 %v1813, %v1571
    %v1817 = vadd.f32 %v1815, %v1816
    %1818 = vmatprep.subr.mxu0 0.0
    %1819 = vmatpush1.msra.mxu0 %v87
    %1820 = vmatprep.subr.mxu0 0.0
    %1821 = vmatpush1.msra.mxu0 %v88
    %1822 = vmatprep.subr.mxu0 0.0
    %1823 = vmatpush1.msra.mxu0 %v89
    %1824 = vmatprep.subr.mxu0 0.0
    %1825 = vmatpush1.msra.mxu0 %v90
    %1826 = vmatprep.subr.mxu0 0.0
    %1827 = vmatpush1.msra.mxu0 %v91
    %1828 = vmatprep.subr.mxu0 0.0
    %1829 = vmatpush1.msra.mxu0 %v92
    %1830 = vmatprep.subr.mxu0 0.0
    %1831 = vmatpush1.msra.mxu0 %v93
    %1832 = vmatprep.subr.mxu0 0.0
    %1833 = vmatpush1.msra.mxu0 %v94
    %1834 = vmatprep.subr.mxu0 0.0
    %1835 = vmatpush1.msra.mxu0 %v95
    %1836 = vmatprep.subr.mxu0 0.0
    %1837 = vmatpush1.msra.mxu0 %v96
    %1838 = vmatprep.subr.mxu0 0.0
    %1839 = vmatpush1.msra.mxu0 %v97
    %1840 = vmatprep.subr.mxu0 0.0
    %1841 = vmatpush1.msra.mxu0 %v98
    %1842 = vmatprep.subr.mxu0 0.0
    %1843 = vmatpush1.msra.mxu0 %v99
    %1844 = vmatprep.subr.mxu0 0.0
    %1845 = vmatpush1.msra.mxu0 %v100
    %1846 = vmatprep.subr.mxu0 0.0
    %1847 = vmatpush1.msra.mxu0 %v101
    %1848 = vmatprep.subr.mxu0 0.0
    %1849 = vmatpush1.msra.mxu0 %v102
    %1850 = vmatprep.subr.mxu0 0.0
    %1851 = vmatpush1.msra.mxu0 0.0
    %1852 = vmatprep.subr.mxu0 0.0
    %1853 = vmatpush1.msra.mxu0 0.0
    %1854 = vmatprep.subr.mxu0 0.0
    %1855 = vmatpush1.msra.mxu0 0.0
    %1856 = vmatprep.subr.mxu0 0.0
    %1857 = vmatpush1.msra.mxu0 0.0
    %1858 = vmatprep.subr.mxu0 0.0
    %1859 = vmatpush1.msra.mxu0 0.0
    %1860 = vmatprep.subr.mxu0 0.0
    %1861 = vmatpush1.msra.mxu0 0.0
    %1862 = vmatprep.subr.mxu0 0.0
    %1863 = vmatpush1.msra.mxu0 0.0
    %1864 = vmatprep.subr.mxu0 0.0
    %1865 = vmatpush1.msra.mxu0 0.0
    %1866 = vmatprep.subr.mxu0 0.0
    %1867 = vmatpush1.msra.mxu0 0.0
    %1868 = vmatprep.subr.mxu0 0.0
    %1869 = vmatpush1.msra.mxu0 0.0
    %1870 = vmatprep.subr.mxu0 0.0
    %1871 = vmatpush1.msra.mxu0 0.0
    %1872 = vmatprep.subr.mxu0 0.0
    %1873 = vmatpush1.msra.mxu0 0.0
    %1874 = vmatprep.subr.mxu0 0.0
    %1875 = vmatpush1.msra.mxu0 0.0
    %1876 = vmatprep.subr.mxu0 0.0
    %1877 = vmatpush1.msra.mxu0 0.0
    %1878 = vmatprep.subr.mxu0 0.0
    %1879 = vmatpush1.msra.mxu0 0.0
    %1880 = vmatprep.subr.mxu0 0.0
    %1881 = vmatpush1.msra.mxu0 0.0
    %1882 = vmatprep.mubr.f32.mxu0 0.0
    %1883 = vmatmul.mubr.f32.gmra.mrb[0].mxu0 %v1817
    %v1884 = vpop.f32.mrb[0].mxu0
    %v1885 = vadd.f32 %v144, %v1884
    %v1886 = vpop.f32.mrb[0].mxu0
    %1887 = vdwg.mxu0
    %v1888 = vadd.f32 %v1885, %v1797
    %v1889 = vxor.u32 %v1888, 2147483648
    %v1890 = vmul.f32 %v1889, 1.442695
    %v1891 = vpow.pop %v1890
    %v1892 = vadd.f32 %v1891, 1.0
    %v1893 = vrcp.pop %v1892
    %v1894 = vmul.f32 1.0, %v1893
    %1895 = vrot.lane.b32.xlu0 %v1894, 32
    %v1896 = vpop.permute.xlu0 %1895
    %v1897 = vmul.f32 %v1896, %v1797
    %v1898 = vadd.f32 %v1885, %v1897
    %v1899 = vtanh.pop %v1898
    %1900 = vrot.lane.b32.xlu0 %v1894, 16
    %v1901 = vpop.permute.xlu0 %1900
    %v1902 = vsub.f32 1.0, %v1901
    %v1903 = vmul.f32 %v1902, %v1899
    %v1904 = vmul.f32 %v1901, %v1659
    %v1905 = vadd.f32 %v1903, %v1904
    %1906 = vmatprep.subr.mxu0 0.0
    %1907 = vmatpush1.msra.mxu0 %v71
    %1908 = vmatprep.subr.mxu0 0.0
    %1909 = vmatpush1.msra.mxu0 %v72
    %1910 = vmatprep.subr.mxu0 0.0
    %1911 = vmatpush1.msra.mxu0 %v73
    %1912 = vmatprep.subr.mxu0 0.0
    %1913 = vmatpush1.msra.mxu0 %v74
    %1914 = vmatprep.subr.mxu0 0.0
    %1915 = vmatpush1.msra.mxu0 %v75
    %1916 = vmatprep.subr.mxu0 0.0
    %1917 = vmatpush1.msra.mxu0 %v76
    %1918 = vmatprep.subr.mxu0 0.0
    %1919 = vmatpush1.msra.mxu0 %v77
    %1920 = vmatprep.subr.mxu0 0.0
    %1921 = vmatpush1.msra.mxu0 %v78
    %1922 = vmatprep.subr.mxu0 0.0
    %1923 = vmatpush1.msra.mxu0 %v79
    %1924 = vmatprep.subr.mxu0 0.0
    %1925 = vmatpush1.msra.mxu0 %v80
    %1926 = vmatprep.subr.mxu0 0.0
    %1927 = vmatpush1.msra.mxu0 %v81
    %1928 = vmatprep.subr.mxu0 0.0
    %1929 = vmatpush1.msra.mxu0 %v82
    %1930 = vmatprep.subr.mxu0 0.0
    %1931 = vmatpush1.msra.mxu0 %v83
    %1932 = vmatprep.subr.mxu0 0.0
    %1933 = vmatpush1.msra.mxu0 %v84
    %1934 = vmatprep.subr.mxu0 0.0
    %1935 = vmatpush1.msra.mxu0 %v85
    %1936 = vmatprep.subr.mxu0 0.0
    %1937 = vmatpush1.msra.mxu0 %v86
    %1938 = vmatprep.subr.mxu0 0.0
    %1939 = vmatpush1.msra.mxu0 0.0
    %1940 = vmatprep.subr.mxu0 0.0
    %1941 = vmatpush1.msra.mxu0 0.0
    %1942 = vmatprep.subr.mxu0 0.0
    %1943 = vmatpush1.msra.mxu0 0.0
    %1944 = vmatprep.subr.mxu0 0.0
    %1945 = vmatpush1.msra.mxu0 0.0
    %1946 = vmatprep.subr.mxu0 0.0
    %1947 = vmatpush1.msra.mxu0 0.0
    %1948 = vmatprep.subr.mxu0 0.0
    %1949 = vmatpush1.msra.mxu0 0.0
    %1950 = vmatprep.subr.mxu0 0.0
    %1951 = vmatpush1.msra.mxu0 0.0
    %1952 = vmatprep.subr.mxu0 0.0
    %1953 = vmatpush1.msra.mxu0 0.0
    %1954 = vmatprep.subr.mxu0 0.0
    %1955 = vmatpush1.msra.mxu0 0.0
    %1956 = vmatprep.subr.mxu0 0.0
    %1957 = vmatpush1.msra.mxu0 0.0
    %1958 = vmatprep.subr.mxu0 0.0
    %1959 = vmatpush1.msra.mxu0 0.0
    %1960 = vmatprep.subr.mxu0 0.0
    %1961 = vmatpush1.msra.mxu0 0.0
    %1962 = vmatprep.subr.mxu0 0.0
    %1963 = vmatpush1.msra.mxu0 0.0
    %1964 = vmatprep.subr.mxu0 0.0
    %1965 = vmatpush1.msra.mxu0 0.0
    %1966 = vmatprep.subr.mxu0 0.0
    %1967 = vmatpush1.msra.mxu0 0.0
    %1968 = vmatprep.subr.mxu0 0.0
    %1969 = vmatpush1.msra.mxu0 0.0
    %1970 = vmatprep.mubr.f32.mxu0 0.0
    %1971 = vmatmul.mubr.f32.gmra.mrb[0].mxu0 %v1817
    %v1972 = vpop.f32.mrb[0].mxu0
    %v1973 = vadd.f32 %v140, %v1972
    %v1974 = vpop.f32.mrb[0].mxu0
    %1975 = vdwg.mxu0
    %1976 = vmatprep.subr.mxu0 0.0
    %1977 = vmatpush1.msra.mxu0 %v103
    %1978 = vmatprep.subr.mxu0 0.0
    %1979 = vmatpush1.msra.mxu0 %v104
    %1980 = vmatprep.subr.mxu0 0.0
    %1981 = vmatpush1.msra.mxu0 %v105
    %1982 = vmatprep.subr.mxu0 0.0
    %1983 = vmatpush1.msra.mxu0 %v106
    %1984 = vmatprep.subr.mxu0 0.0
    %1985 = vmatpush1.msra.mxu0 %v107
    %1986 = vmatprep.subr.mxu0 0.0
    %1987 = vmatpush1.msra.mxu0 %v108
    %1988 = vmatprep.subr.mxu0 0.0
    %1989 = vmatpush1.msra.mxu0 %v109
    %1990 = vmatprep.subr.mxu0 0.0
    %1991 = vmatpush1.msra.mxu0 %v110
    %1992 = vmatprep.subr.mxu0 0.0
    %1993 = vmatpush1.msra.mxu0 %v111
    %1994 = vmatprep.subr.mxu0 0.0
    %1995 = vmatpush1.msra.mxu0 %v112
    %1996 = vmatprep.subr.mxu0 0.0
    %1997 = vmatpush1.msra.mxu0 %v113
    %1998 = vmatprep.subr.mxu0 0.0
    %1999 = vmatpush1.msra.mxu0 %v114
    %2000 = vmatprep.subr.mxu0 0.0
    %2001 = vmatpush1.msra.mxu0 %v115
    %2002 = vmatprep.subr.mxu0 0.0
    %2003 = vmatpush1.msra.mxu0 %v116
    %2004 = vmatprep.subr.mxu0 0.0
    %2005 = vmatpush1.msra.mxu0 %v117
    %2006 = vmatprep.subr.mxu0 0.0
    %2007 = vmatpush1.msra.mxu0 %v118
    %2008 = vmatprep.subr.mxu0 0.0
    %2009 = vmatpush1.msra.mxu0 0.0
    %2010 = vmatprep.subr.mxu0 0.0
    %2011 = vmatpush1.msra.mxu0 0.0
    %2012 = vmatprep.subr.mxu0 0.0
    %2013 = vmatpush1.msra.mxu0 0.0
    %2014 = vmatprep.subr.mxu0 0.0
    %2015 = vmatpush1.msra.mxu0 0.0
    %2016 = vmatprep.subr.mxu0 0.0
    %2017 = vmatpush1.msra.mxu0 0.0
    %2018 = vmatprep.subr.mxu0 0.0
    %2019 = vmatpush1.msra.mxu0 0.0
    %2020 = vmatprep.subr.mxu0 0.0
    %2021 = vmatpush1.msra.mxu0 0.0
    %2022 = vmatprep.subr.mxu0 0.0
    %2023 = vmatpush1.msra.mxu0 0.0
    %2024 = vmatprep.subr.mxu0 0.0
    %2025 = vmatpush1.msra.mxu0 0.0
    %2026 = vmatprep.subr.mxu0 0.0
    %2027 = vmatpush1.msra.mxu0 0.0
    %2028 = vmatprep.subr.mxu0 0.0
    %2029 = vmatpush1.msra.mxu0 0.0
    %2030 = vmatprep.subr.mxu0 0.0
    %2031 = vmatpush1.msra.mxu0 0.0
    %2032 = vmatprep.subr.mxu0 0.0
    %2033 = vmatpush1.msra.mxu0 0.0
    %2034 = vmatprep.subr.mxu0 0.0
    %2035 = vmatpush1.msra.mxu0 0.0
    %2036 = vmatprep.subr.mxu0 0.0
    %2037 = vmatpush1.msra.mxu0 0.0
    %2038 = vmatprep.subr.mxu0 0.0
    %2039 = vmatpush1.msra.mxu0 0.0
    %2040 = vmatprep.mubr.f32.mxu0 0.0
    %2041 = vmatmul.mubr.f32.gmra.mrb[0].mxu0 %v1905
    %v2042 = vpop.f32.mrb[0].mxu0
    %v2043 = vadd.f32 %v148, %v2042
    %v2044 = vpop.f32.mrb[0].mxu0
    %2045 = vdwg.mxu0
    %v2046 = vadd.f32 %v663, %v1973
    %v2047 = vxor.u32 %v2046, 2147483648
    %v2048 = vmul.f32 %v2047, 1.442695
    %v2049 = vpow.pop %v2048
    %v2050 = vadd.f32 %v2049, 1.0
    %v2051 = vrcp.pop %v2050
    %v2052 = vmul.f32 1.0, %v2051
    %2053 = vrot.lane.b32.xlu0 %v2052, 32
    %v2054 = vpop.permute.xlu0 %2053
    %v2055 = vmul.f32 %v2054, %v1973
    %v2056 = vadd.f32 %v663, %v2055
    %v2057 = vtanh.pop %v2056
    %2058 = vrot.lane.b32.xlu0 %v2052, 16
    %v2059 = vpop.permute.xlu0 %2058
    %v2060 = vsub.f32 1.0, %v2059
    %v2061 = vmul.f32 %v2060, %v2057
    %v2062 = vmul.f32 %v2059, %v1817
    %v2063 = vadd.f32 %v2061, %v2062
    %2064 = vmatprep.subr.mxu0 0.0
    %2065 = vmatpush1.msra.mxu0 %v87
    %2066 = vmatprep.subr.mxu0 0.0
    %2067 = vmatpush1.msra.mxu0 %v88
    %2068 = vmatprep.subr.mxu0 0.0
    %2069 = vmatpush1.msra.mxu0 %v89
    %2070 = vmatprep.subr.mxu0 0.0
    %2071 = vmatpush1.msra.mxu0 %v90
    %2072 = vmatprep.subr.mxu0 0.0
    %2073 = vmatpush1.msra.mxu0 %v91
    %2074 = vmatprep.subr.mxu0 0.0
    %2075 = vmatpush1.msra.mxu0 %v92
    %2076 = vmatprep.subr.mxu0 0.0
    %2077 = vmatpush1.msra.mxu0 %v93
    %2078 = vmatprep.subr.mxu0 0.0
    %2079 = vmatpush1.msra.mxu0 %v94
    %2080 = vmatprep.subr.mxu0 0.0
    %2081 = vmatpush1.msra.mxu0 %v95
    %2082 = vmatprep.subr.mxu0 0.0
    %2083 = vmatpush1.msra.mxu0 %v96
    %2084 = vmatprep.subr.mxu0 0.0
    %2085 = vmatpush1.msra.mxu0 %v97
    %2086 = vmatprep.subr.mxu0 0.0
    %2087 = vmatpush1.msra.mxu0 %v98
    %2088 = vmatprep.subr.mxu0 0.0
    %2089 = vmatpush1.msra.mxu0 %v99
    %2090 = vmatprep.subr.mxu0 0.0
    %2091 = vmatpush1.msra.mxu0 %v100
    %2092 = vmatprep.subr.mxu0 0.0
    %2093 = vmatpush1.msra.mxu0 %v101
    %2094 = vmatprep.subr.mxu0 0.0
    %2095 = vmatpush1.msra.mxu0 %v102
    %2096 = vmatprep.subr.mxu0 0.0
    %2097 = vmatpush1.msra.mxu0 0.0
    %2098 = vmatprep.subr.mxu0 0.0
    %2099 = vmatpush1.msra.mxu0 0.0
    %2100 = vmatprep.subr.mxu0 0.0
    %2101 = vmatpush1.msra.mxu0 0.0
    %2102 = vmatprep.subr.mxu0 0.0
    %2103 = vmatpush1.msra.mxu0 0.0
    %2104 = vmatprep.subr.mxu0 0.0
    %2105 = vmatpush1.msra.mxu0 0.0
    %2106 = vmatprep.subr.mxu0 0.0
    %2107 = vmatpush1.msra.mxu0 0.0
    %2108 = vmatprep.subr.mxu0 0.0
    %2109 = vmatpush1.msra.mxu0 0.0
    %2110 = vmatprep.subr.mxu0 0.0
    %2111 = vmatpush1.msra.mxu0 0.0
    %2112 = vmatprep.subr.mxu0 0.0
    %2113 = vmatpush1.msra.mxu0 0.0
    %2114 = vmatprep.subr.mxu0 0.0
    %2115 = vmatpush1.msra.mxu0 0.0
    %2116 = vmatprep.subr.mxu0 0.0
    %2117 = vmatpush1.msra.mxu0 0.0
    %2118 = vmatprep.subr.mxu0 0.0
    %2119 = vmatpush1.msra.mxu0 0.0
    %2120 = vmatprep.subr.mxu0 0.0
    %2121 = vmatpush1.msra.mxu0 0.0
    %2122 = vmatprep.subr.mxu0 0.0
    %2123 = vmatpush1.msra.mxu0 0.0
    %2124 = vmatprep.subr.mxu0 0.0
    %2125 = vmatpush1.msra.mxu0 0.0
    %2126 = vmatprep.subr.mxu0 0.0
    %2127 = vmatpush1.msra.mxu0 0.0
    %2128 = vmatprep.mubr.f32.mxu0 0.0
    %2129 = vmatmul.mubr.f32.gmra.mrb[0].mxu0 %v2063
    %v2130 = vpop.f32.mrb[0].mxu0
    %v2131 = vadd.f32 %v144, %v2130
    %v2132 = vpop.f32.mrb[0].mxu0
    %2133 = vdwg.mxu0
    %v2134 = vadd.f32 %v2131, %v2043
    %v2135 = vxor.u32 %v2134, 2147483648
    %v2136 = vmul.f32 %v2135, 1.442695
    %v2137 = vpow.pop %v2136
    %v2138 = vadd.f32 %v2137, 1.0
    %v2139 = vrcp.pop %v2138
    %v2140 = vmul.f32 1.0, %v2139
    %2141 = vrot.lane.b32.xlu0 %v2140, 32
    %v2142 = vpop.permute.xlu0 %2141
    %v2143 = vmul.f32 %v2142, %v2043
    %v2144 = vadd.f32 %v2131, %v2143
    %v2145 = vtanh.pop %v2144
    %2146 = vrot.lane.b32.xlu0 %v2140, 16
    %v2147 = vpop.permute.xlu0 %2146
    %v2148 = vsub.f32 1.0, %v2147
    %v2149 = vmul.f32 %v2148, %v2145
    %v2150 = vmul.f32 %v2147, %v1905
    %v2151 = vadd.f32 %v2149, %v2150
    %2152 = vmatprep.subr.mxu0 0.0
    %2153 = vmatpush1.msra.mxu0 %v71
    %2154 = vmatprep.subr.mxu0 0.0
    %2155 = vmatpush1.msra.mxu0 %v72
    %2156 = vmatprep.subr.mxu0 0.0
    %2157 = vmatpush1.msra.mxu0 %v73
    %2158 = vmatprep.subr.mxu0 0.0
    %2159 = vmatpush1.msra.mxu0 %v74
    %2160 = vmatprep.subr.mxu0 0.0
    %2161 = vmatpush1.msra.mxu0 %v75
    %2162 = vmatprep.subr.mxu0 0.0
    %2163 = vmatpush1.msra.mxu0 %v76
    %2164 = vmatprep.subr.mxu0 0.0
    %2165 = vmatpush1.msra.mxu0 %v77
    %2166 = vmatprep.subr.mxu0 0.0
    %2167 = vmatpush1.msra.mxu0 %v78
    %2168 = vmatprep.subr.mxu0 0.0
    %2169 = vmatpush1.msra.mxu0 %v79
    %2170 = vmatprep.subr.mxu0 0.0
    %2171 = vmatpush1.msra.mxu0 %v80
    %2172 = vmatprep.subr.mxu0 0.0
    %2173 = vmatpush1.msra.mxu0 %v81
    %2174 = vmatprep.subr.mxu0 0.0
    %2175 = vmatpush1.msra.mxu0 %v82
    %2176 = vmatprep.subr.mxu0 0.0
    %2177 = vmatpush1.msra.mxu0 %v83
    %2178 = vmatprep.subr.mxu0 0.0
    %2179 = vmatpush1.msra.mxu0 %v84
    %2180 = vmatprep.subr.mxu0 0.0
    %2181 = vmatpush1.msra.mxu0 %v85
    %2182 = vmatprep.subr.mxu0 0.0
    %2183 = vmatpush1.msra.mxu0 %v86
    %2184 = vmatprep.subr.mxu0 0.0
    %2185 = vmatpush1.msra.mxu0 0.0
    %2186 = vmatprep.subr.mxu0 0.0
    %2187 = vmatpush1.msra.mxu0 0.0
    %2188 = vmatprep.subr.mxu0 0.0
    %2189 = vmatpush1.msra.mxu0 0.0
    %2190 = vmatprep.subr.mxu0 0.0
    %2191 = vmatpush1.msra.mxu0 0.0
    %2192 = vmatprep.subr.mxu0 0.0
    %2193 = vmatpush1.msra.mxu0 0.0
    %2194 = vmatprep.subr.mxu0 0.0
    %2195 = vmatpush1.msra.mxu0 0.0
    %2196 = vmatprep.subr.mxu0 0.0
    %2197 = vmatpush1.msra.mxu0 0.0
    %2198 = vmatprep.subr.mxu0 0.0
    %2199 = vmatpush1.msra.mxu0 0.0
    %2200 = vmatprep.subr.mxu0 0.0
    %2201 = vmatpush1.msra.mxu0 0.0
    %2202 = vmatprep.subr.mxu0 0.0
    %2203 = vmatpush1.msra.mxu0 0.0
    %2204 = vmatprep.subr.mxu0 0.0
    %2205 = vmatpush1.msra.mxu0 0.0
    %2206 = vmatprep.subr.mxu0 0.0
    %2207 = vmatpush1.msra.mxu0 0.0
    %2208 = vmatprep.subr.mxu0 0.0
    %2209 = vmatpush1.msra.mxu0 0.0
    %2210 = vmatprep.subr.mxu0 0.0
    %2211 = vmatpush1.msra.mxu0 0.0
    %2212 = vmatprep.subr.mxu0 0.0
    %2213 = vmatpush1.msra.mxu0 0.0
    %2214 = vmatprep.subr.mxu0 0.0
    %2215 = vmatpush1.msra.mxu0 0.0
    %2216 = vmatprep.mubr.f32.mxu0 0.0
    %2217 = vmatmul.mubr.f32.gmra.mrb[0].mxu0 %v2063
    %v2218 = vpop.f32.mrb[0].mxu0
    %v2219 = vadd.f32 %v140, %v2218
    %v2220 = vpop.f32.mrb[0].mxu0
    %2221 = vdwg.mxu0
    %2222 = vmatprep.subr.mxu0 0.0
    %2223 = vmatpush1.msra.mxu0 %v103
    %2224 = vmatprep.subr.mxu0 0.0
    %2225 = vmatpush1.msra.mxu0 %v104
    %2226 = vmatprep.subr.mxu0 0.0
    %2227 = vmatpush1.msra.mxu0 %v105
    %2228 = vmatprep.subr.mxu0 0.0
    %2229 = vmatpush1.msra.mxu0 %v106
    %2230 = vmatprep.subr.mxu0 0.0
    %2231 = vmatpush1.msra.mxu0 %v107
    %2232 = vmatprep.subr.mxu0 0.0
    %2233 = vmatpush1.msra.mxu0 %v108
    %2234 = vmatprep.subr.mxu0 0.0
    %2235 = vmatpush1.msra.mxu0 %v109
    %2236 = vmatprep.subr.mxu0 0.0
    %2237 = vmatpush1.msra.mxu0 %v110
    %2238 = vmatprep.subr.mxu0 0.0
    %2239 = vmatpush1.msra.mxu0 %v111
    %2240 = vmatprep.subr.mxu0 0.0
    %2241 = vmatpush1.msra.mxu0 %v112
    %2242 = vmatprep.subr.mxu0 0.0
    %2243 = vmatpush1.msra.mxu0 %v113
    %2244 = vmatprep.subr.mxu0 0.0
    %2245 = vmatpush1.msra.mxu0 %v114
    %2246 = vmatprep.subr.mxu0 0.0
    %2247 = vmatpush1.msra.mxu0 %v115
    %2248 = vmatprep.subr.mxu0 0.0
    %2249 = vmatpush1.msra.mxu0 %v116
    %2250 = vmatprep.subr.mxu0 0.0
    %2251 = vmatpush1.msra.mxu0 %v117
    %2252 = vmatprep.subr.mxu0 0.0
    %2253 = vmatpush1.msra.mxu0 %v118
    %2254 = vmatprep.subr.mxu0 0.0
    %2255 = vmatpush1.msra.mxu0 0.0
    %2256 = vmatprep.subr.mxu0 0.0
    %2257 = vmatpush1.msra.mxu0 0.0
    %2258 = vmatprep.subr.mxu0 0.0
    %2259 = vmatpush1.msra.mxu0 0.0
    %2260 = vmatprep.subr.mxu0 0.0
    %2261 = vmatpush1.msra.mxu0 0.0
    %2262 = vmatprep.subr.mxu0 0.0
    %2263 = vmatpush1.msra.mxu0 0.0
    %2264 = vmatprep.subr.mxu0 0.0
    %2265 = vmatpush1.msra.mxu0 0.0
    %2266 = vmatprep.subr.mxu0 0.0
    %2267 = vmatpush1.msra.mxu0 0.0
    %2268 = vmatprep.subr.mxu0 0.0
    %2269 = vmatpush1.msra.mxu0 0.0
    %2270 = vmatprep.subr.mxu0 0.0
    %2271 = vmatpush1.msra.mxu0 0.0
    %2272 = vmatprep.subr.mxu0 0.0
    %2273 = vmatpush1.msra.mxu0 0.0
    %2274 = vmatprep.subr.mxu0 0.0
    %2275 = vmatpush1.msra.mxu0 0.0
    %2276 = vmatprep.subr.mxu0 0.0
    %2277 = vmatpush1.msra.mxu0 0.0
    %2278 = vmatprep.subr.mxu0 0.0
    %2279 = vmatpush1.msra.mxu0 0.0
    %2280 = vmatprep.subr.mxu0 0.0
    %2281 = vmatpush1.msra.mxu0 0.0
    %2282 = vmatprep.subr.mxu0 0.0
    %2283 = vmatpush1.msra.mxu0 0.0
    %2284 = vmatprep.subr.mxu0 0.0
    %2285 = vmatpush1.msra.mxu0 0.0
    %2286 = vmatprep.mubr.f32.mxu0 0.0
    %2287 = vmatmul.mubr.f32.gmra.mrb[0].mxu0 %v2151
    %v2288 = vpop.f32.mrb[0].mxu0
    %v2289 = vadd.f32 %v148, %v2288
    %v2290 = vpop.f32.mrb[0].mxu0
    %2291 = vdwg.mxu0
    %v2292 = vadd.f32 %v668, %v2219
    %v2293 = vxor.u32 %v2292, 2147483648
    %v2294 = vmul.f32 %v2293, 1.442695
    %v2295 = vpow.pop %v2294
    %v2296 = vadd.f32 %v2295, 1.0
    %v2297 = vrcp.pop %v2296
    %v2298 = vmul.f32 1.0, %v2297
    %2299 = vrot.lane.b32.xlu0 %v2298, 32
    %v2300 = vpop.permute.xlu0 %2299
    %v2301 = vmul.f32 %v2300, %v2219
    %v2302 = vadd.f32 %v668, %v2301
    %v2303 = vtanh.pop %v2302
    %2304 = vrot.lane.b32.xlu0 %v2298, 16
    %v2305 = vpop.permute.xlu0 %2304
    %v2306 = vsub.f32 1.0, %v2305
    %v2307 = vmul.f32 %v2306, %v2303
    %v2308 = vmul.f32 %v2305, %v2063
    %v2309 = vadd.f32 %v2307, %v2308
    %2310 = vmatprep.subr.mxu0 0.0
    %2311 = vmatpush1.msra.mxu0 %v87
    %2312 = vmatprep.subr.mxu0 0.0
    %2313 = vmatpush1.msra.mxu0 %v88
    %2314 = vmatprep.subr.mxu0 0.0
    %2315 = vmatpush1.msra.mxu0 %v89
    %2316 = vmatprep.subr.mxu0 0.0
    %2317 = vmatpush1.msra.mxu0 %v90
    %2318 = vmatprep.subr.mxu0 0.0
    %2319 = vmatpush1.msra.mxu0 %v91
    %2320 = vmatprep.subr.mxu0 0.0
    %2321 = vmatpush1.msra.mxu0 %v92
    %2322 = vmatprep.subr.mxu0 0.0
    %2323 = vmatpush1.msra.mxu0 %v93
    %2324 = vmatprep.subr.mxu0 0.0
    %2325 = vmatpush1.msra.mxu0 %v94
    %2326 = vmatprep.subr.mxu0 0.0
    %2327 = vmatpush1.msra.mxu0 %v95
    %2328 = vmatprep.subr.mxu0 0.0
    %2329 = vmatpush1.msra.mxu0 %v96
    %2330 = vmatprep.subr.mxu0 0.0
    %2331 = vmatpush1.msra.mxu0 %v97
    %2332 = vmatprep.subr.mxu0 0.0
    %2333 = vmatpush1.msra.mxu0 %v98
    %2334 = vmatprep.subr.mxu0 0.0
    %2335 = vmatpush1.msra.mxu0 %v99
    %2336 = vmatprep.subr.mxu0 0.0
    %2337 = vmatpush1.msra.mxu0 %v100
    %2338 = vmatprep.subr.mxu0 0.0
    %2339 = vmatpush1.msra.mxu0 %v101
    %2340 = vmatprep.subr.mxu0 0.0
    %2341 = vmatpush1.msra.mxu0 %v102
    %2342 = vmatprep.subr.mxu0 0.0
    %2343 = vmatpush1.msra.mxu0 0.0
    %2344 = vmatprep.subr.mxu0 0.0
    %2345 = vmatpush1.msra.mxu0 0.0
    %2346 = vmatprep.subr.mxu0 0.0
    %2347 = vmatpush1.msra.mxu0 0.0
    %2348 = vmatprep.subr.mxu0 0.0
    %2349 = vmatpush1.msra.mxu0 0.0
    %2350 = vmatprep.subr.mxu0 0.0
    %2351 = vmatpush1.msra.mxu0 0.0
    %2352 = vmatprep.subr.mxu0 0.0
    %2353 = vmatpush1.msra.mxu0 0.0
    %2354 = vmatprep.subr.mxu0 0.0
    %2355 = vmatpush1.msra.mxu0 0.0
    %2356 = vmatprep.subr.mxu0 0.0
    %2357 = vmatpush1.msra.mxu0 0.0
    %2358 = vmatprep.subr.mxu0 0.0
    %2359 = vmatpush1.msra.mxu0 0.0
    %2360 = vmatprep.subr.mxu0 0.0
    %2361 = vmatpush1.msra.mxu0 0.0
    %2362 = vmatprep.subr.mxu0 0.0
    %2363 = vmatpush1.msra.mxu0 0.0
    %2364 = vmatprep.subr.mxu0 0.0
    %2365 = vmatpush1.msra.mxu0 0.0
    %2366 = vmatprep.subr.mxu0 0.0
    %2367 = vmatpush1.msra.mxu0 0.0
    %2368 = vmatprep.subr.mxu0 0.0
    %2369 = vmatpush1.msra.mxu0 0.0
    %2370 = vmatprep.subr.mxu0 0.0
    %2371 = vmatpush1.msra.mxu0 0.0
    %2372 = vmatprep.subr.mxu0 0.0
    %2373 = vmatpush1.msra.mxu0 0.0
    %2374 = vmatprep.mubr.f32.mxu0 0.0
    %2375 = vmatmul.mubr.f32.gmra.mrb[0].mxu0 %v2309
    %v2376 = vpop.f32.mrb[0].mxu0
    %v2377 = vadd.f32 %v144, %v2376
    %v2378 = vpop.f32.mrb[0].mxu0
    %2379 = vdwg.mxu0
    %v2380 = vadd.f32 %v2377, %v2289
    %v2381 = vxor.u32 %v2380, 2147483648
    %v2382 = vmul.f32 %v2381, 1.442695
    %v2383 = vpow.pop %v2382
    %v2384 = vadd.f32 %v2383, 1.0
    %v2385 = vrcp.pop %v2384
    %v2386 = vmul.f32 1.0, %v2385
    %2387 = vrot.lane.b32.xlu0 %v2386, 32
    %v2388 = vpop.permute.xlu0 %2387
    %v2389 = vmul.f32 %v2388, %v2289
    %v2390 = vadd.f32 %v2377, %v2389
    %v2391 = vtanh.pop %v2390
    %2392 = vrot.lane.b32.xlu0 %v2386, 16
    %v2393 = vpop.permute.xlu0 %2392
    %v2394 = vsub.f32 1.0, %v2393
    %v2395 = vmul.f32 %v2394, %v2391
    %v2396 = vmul.f32 %v2393, %v2151
    %v2397 = vadd.f32 %v2395, %v2396
    %2398 = vmatprep.subr.mxu0 0.0
    %2399 = vmatpush1.msra.mxu0 %v71
    %2400 = vmatprep.subr.mxu0 0.0
    %2401 = vmatpush1.msra.mxu0 %v72
    %2402 = vmatprep.subr.mxu0 0.0
    %2403 = vmatpush1.msra.mxu0 %v73
    %2404 = vmatprep.subr.mxu0 0.0
    %2405 = vmatpush1.msra.mxu0 %v74
    %2406 = vmatprep.subr.mxu0 0.0
    %2407 = vmatpush1.msra.mxu0 %v75
    %2408 = vmatprep.subr.mxu0 0.0
    %2409 = vmatpush1.msra.mxu0 %v76
    %2410 = vmatprep.subr.mxu0 0.0
    %2411 = vmatpush1.msra.mxu0 %v77
    %2412 = vmatprep.subr.mxu0 0.0
    %2413 = vmatpush1.msra.mxu0 %v78
    %2414 = vmatprep.subr.mxu0 0.0
    %2415 = vmatpush1.msra.mxu0 %v79
    %2416 = vmatprep.subr.mxu0 0.0
    %2417 = vmatpush1.msra.mxu0 %v80
    %2418 = vmatprep.subr.mxu0 0.0
    %2419 = vmatpush1.msra.mxu0 %v81
    %2420 = vmatprep.subr.mxu0 0.0
    %2421 = vmatpush1.msra.mxu0 %v82
    %2422 = vmatprep.subr.mxu0 0.0
    %2423 = vmatpush1.msra.mxu0 %v83
    %2424 = vmatprep.subr.mxu0 0.0
    %2425 = vmatpush1.msra.mxu0 %v84
    %2426 = vmatprep.subr.mxu0 0.0
    %2427 = vmatpush1.msra.mxu0 %v85
    %2428 = vmatprep.subr.mxu0 0.0
    %2429 = vmatpush1.msra.mxu0 %v86
    %2430 = vmatprep.subr.mxu0 0.0
    %2431 = vmatpush1.msra.mxu0 0.0
    %2432 = vmatprep.subr.mxu0 0.0
    %2433 = vmatpush1.msra.mxu0 0.0
    %2434 = vmatprep.subr.mxu0 0.0
    %2435 = vmatpush1.msra.mxu0 0.0
    %2436 = vmatprep.subr.mxu0 0.0
    %2437 = vmatpush1.msra.mxu0 0.0
    %2438 = vmatprep.subr.mxu0 0.0
    %2439 = vmatpush1.msra.mxu0 0.0
    %2440 = vmatprep.subr.mxu0 0.0
    %2441 = vmatpush1.msra.mxu0 0.0
    %2442 = vmatprep.subr.mxu0 0.0
    %2443 = vmatpush1.msra.mxu0 0.0
    %2444 = vmatprep.subr.mxu0 0.0
    %2445 = vmatpush1.msra.mxu0 0.0
    %2446 = vmatprep.subr.mxu0 0.0
    %2447 = vmatpush1.msra.mxu0 0.0
    %2448 = vmatprep.subr.mxu0 0.0
    %2449 = vmatpush1.msra.mxu0 0.0
    %2450 = vmatprep.subr.mxu0 0.0
    %2451 = vmatpush1.msra.mxu0 0.0
    %2452 = vmatprep.subr.mxu0 0.0
    %2453 = vmatpush1.msra.mxu0 0.0
    %2454 = vmatprep.subr.mxu0 0.0
    %2455 = vmatpush1.msra.mxu0 0.0
    %2456 = vmatprep.subr.mxu0 0.0
    %2457 = vmatpush1.msra.mxu0 0.0
    %2458 = vmatprep.subr.mxu0 0.0
    %2459 = vmatpush1.msra.mxu0 0.0
    %2460 = vmatprep.subr.mxu0 0.0
    %2461 = vmatpush1.msra.mxu0 0.0
    %2462 = vmatprep.mubr.f32.mxu0 0.0
    %2463 = vmatmul.mubr.f32.gmra.mrb[0].mxu0 %v2309
    %v2464 = vpop.f32.mrb[0].mxu0
    %v2465 = vadd.f32 %v140, %v2464
    %v2466 = vpop.f32.mrb[0].mxu0
    %2467 = vdwg.mxu0
    %2468 = vmatprep.subr.mxu0 0.0
    %2469 = vmatpush1.msra.mxu0 %v103
    %2470 = vmatprep.subr.mxu0 0.0
    %2471 = vmatpush1.msra.mxu0 %v104
    %2472 = vmatprep.subr.mxu0 0.0
    %2473 = vmatpush1.msra.mxu0 %v105
    %2474 = vmatprep.subr.mxu0 0.0
    %2475 = vmatpush1.msra.mxu0 %v106
    %2476 = vmatprep.subr.mxu0 0.0
    %2477 = vmatpush1.msra.mxu0 %v107
    %2478 = vmatprep.subr.mxu0 0.0
    %2479 = vmatpush1.msra.mxu0 %v108
    %2480 = vmatprep.subr.mxu0 0.0
    %2481 = vmatpush1.msra.mxu0 %v109
    %2482 = vmatprep.subr.mxu0 0.0
    %2483 = vmatpush1.msra.mxu0 %v110
    %2484 = vmatprep.subr.mxu0 0.0
    %2485 = vmatpush1.msra.mxu0 %v111
    %2486 = vmatprep.subr.mxu0 0.0
    %2487 = vmatpush1.msra.mxu0 %v112
    %2488 = vmatprep.subr.mxu0 0.0
    %2489 = vmatpush1.msra.mxu0 %v113
    %2490 = vmatprep.subr.mxu0 0.0
    %2491 = vmatpush1.msra.mxu0 %v114
    %2492 = vmatprep.subr.mxu0 0.0
    %2493 = vmatpush1.msra.mxu0 %v115
    %2494 = vmatprep.subr.mxu0 0.0
    %2495 = vmatpush1.msra.mxu0 %v116
    %2496 = vmatprep.subr.mxu0 0.0
    %2497 = vmatpush1.msra.mxu0 %v117
    %2498 = vmatprep.subr.mxu0 0.0
    %2499 = vmatpush1.msra.mxu0 %v118
    %2500 = vmatprep.subr.mxu0 0.0
    %2501 = vmatpush1.msra.mxu0 0.0
    %2502 = vmatprep.subr.mxu0 0.0
    %2503 = vmatpush1.msra.mxu0 0.0
    %2504 = vmatprep.subr.mxu0 0.0
    %2505 = vmatpush1.msra.mxu0 0.0
    %2506 = vmatprep.subr.mxu0 0.0
    %2507 = vmatpush1.msra.mxu0 0.0
    %2508 = vmatprep.subr.mxu0 0.0
    %2509 = vmatpush1.msra.mxu0 0.0
    %2510 = vmatprep.subr.mxu0 0.0
    %2511 = vmatpush1.msra.mxu0 0.0
    %2512 = vmatprep.subr.mxu0 0.0
    %2513 = vmatpush1.msra.mxu0 0.0
    %2514 = vmatprep.subr.mxu0 0.0
    %2515 = vmatpush1.msra.mxu0 0.0
    %2516 = vmatprep.subr.mxu0 0.0
    %2517 = vmatpush1.msra.mxu0 0.0
    %2518 = vmatprep.subr.mxu0 0.0
    %2519 = vmatpush1.msra.mxu0 0.0
    %2520 = vmatprep.subr.mxu0 0.0
    %2521 = vmatpush1.msra.mxu0 0.0
    %2522 = vmatprep.subr.mxu0 0.0
    %2523 = vmatpush1.msra.mxu0 0.0
    %2524 = vmatprep.subr.mxu0 0.0
    %2525 = vmatpush1.msra.mxu0 0.0
    %2526 = vmatprep.subr.mxu0 0.0
    %2527 = vmatpush1.msra.mxu0 0.0
    %2528 = vmatprep.subr.mxu0 0.0
    %2529 = vmatpush1.msra.mxu0 0.0
    %2530 = vmatprep.subr.mxu0 0.0
    %2531 = vmatpush1.msra.mxu0 0.0
    %2532 = vmatprep.mubr.f32.mxu0 0.0
    %2533 = vmatmul.mubr.f32.gmra.mrb[0].mxu0 %v2397
    %v2534 = vpop.f32.mrb[0].mxu0
    %v2535 = vadd.f32 %v148, %v2534
    %v2536 = vpop.f32.mrb[0].mxu0
    %2537 = vdwg.mxu0
    %v2538 = vadd.f32 %v673, %v2465
    %v2539 = vxor.u32 %v2538, 2147483648
    %v2540 = vmul.f32 %v2539, 1.442695
    %v2541 = vpow.pop %v2540
    %v2542 = vadd.f32 %v2541, 1.0
    %v2543 = vrcp.pop %v2542
    %v2544 = vmul.f32 1.0, %v2543
    %2545 = vrot.lane.b32.xlu0 %v2544, 32
    %v2546 = vpop.permute.xlu0 %2545
    %v2547 = vmul.f32 %v2546, %v2465
    %v2548 = vadd.f32 %v673, %v2547
    %v2549 = vtanh.pop %v2548
    %2550 = vrot.lane.b32.xlu0 %v2544, 16
    %v2551 = vpop.permute.xlu0 %2550
    %v2552 = vsub.f32 1.0, %v2551
    %v2553 = vmul.f32 %v2552, %v2549
    %v2554 = vmul.f32 %v2551, %v2309
    %v2555 = vadd.f32 %v2553, %v2554
    %2556 = vmatprep.subr.mxu0 0.0
    %2557 = vmatpush1.msra.mxu0 %v87
    %2558 = vmatprep.subr.mxu0 0.0
    %2559 = vmatpush1.msra.mxu0 %v88
    %2560 = vmatprep.subr.mxu0 0.0
    %2561 = vmatpush1.msra.mxu0 %v89
    %2562 = vmatprep.subr.mxu0 0.0
    %2563 = vmatpush1.msra.mxu0 %v90
    %2564 = vmatprep.subr.mxu0 0.0
    %2565 = vmatpush1.msra.mxu0 %v91
    %2566 = vmatprep.subr.mxu0 0.0
    %2567 = vmatpush1.msra.mxu0 %v92
    %2568 = vmatprep.subr.mxu0 0.0
    %2569 = vmatpush1.msra.mxu0 %v93
    %2570 = vmatprep.subr.mxu0 0.0
    %2571 = vmatpush1.msra.mxu0 %v94
    %2572 = vmatprep.subr.mxu0 0.0
    %2573 = vmatpush1.msra.mxu0 %v95
    %2574 = vmatprep.subr.mxu0 0.0
    %2575 = vmatpush1.msra.mxu0 %v96
    %2576 = vmatprep.subr.mxu0 0.0
    %2577 = vmatpush1.msra.mxu0 %v97
    %2578 = vmatprep.subr.mxu0 0.0
    %2579 = vmatpush1.msra.mxu0 %v98
    %2580 = vmatprep.subr.mxu0 0.0
    %2581 = vmatpush1.msra.mxu0 %v99
    %2582 = vmatprep.subr.mxu0 0.0
    %2583 = vmatpush1.msra.mxu0 %v100
    %2584 = vmatprep.subr.mxu0 0.0
    %2585 = vmatpush1.msra.mxu0 %v101
    %2586 = vmatprep.subr.mxu0 0.0
    %2587 = vmatpush1.msra.mxu0 %v102
    %2588 = vmatprep.subr.mxu0 0.0
    %2589 = vmatpush1.msra.mxu0 0.0
    %2590 = vmatprep.subr.mxu0 0.0
    %2591 = vmatpush1.msra.mxu0 0.0
    %2592 = vmatprep.subr.mxu0 0.0
    %2593 = vmatpush1.msra.mxu0 0.0
    %2594 = vmatprep.subr.mxu0 0.0
    %2595 = vmatpush1.msra.mxu0 0.0
    %2596 = vmatprep.subr.mxu0 0.0
    %2597 = vmatpush1.msra.mxu0 0.0
    %2598 = vmatprep.subr.mxu0 0.0
    %2599 = vmatpush1.msra.mxu0 0.0
    %2600 = vmatprep.subr.mxu0 0.0
    %2601 = vmatpush1.msra.mxu0 0.0
    %2602 = vmatprep.subr.mxu0 0.0
    %2603 = vmatpush1.msra.mxu0 0.0
    %2604 = vmatprep.subr.mxu0 0.0
    %2605 = vmatpush1.msra.mxu0 0.0
    %2606 = vmatprep.subr.mxu0 0.0
    %2607 = vmatpush1.msra.mxu0 0.0
    %2608 = vmatprep.subr.mxu0 0.0
    %2609 = vmatpush1.msra.mxu0 0.0
    %2610 = vmatprep.subr.mxu0 0.0
    %2611 = vmatpush1.msra.mxu0 0.0
    %2612 = vmatprep.subr.mxu0 0.0
    %2613 = vmatpush1.msra.mxu0 0.0
    %2614 = vmatprep.subr.mxu0 0.0
    %2615 = vmatpush1.msra.mxu0 0.0
    %2616 = vmatprep.subr.mxu0 0.0
    %2617 = vmatpush1.msra.mxu0 0.0
    %2618 = vmatprep.subr.mxu0 0.0
    %2619 = vmatpush1.msra.mxu0 0.0
    %2620 = vmatprep.mubr.f32.mxu0 0.0
    %2621 = vmatmul.mubr.f32.gmra.mrb[0].mxu0 %v2555
    %v2622 = vpop.f32.mrb[0].mxu0
    %v2623 = vadd.f32 %v144, %v2622
    %v2624 = vpop.f32.mrb[0].mxu0
    %2625 = vdwg.mxu0
    %v2626 = vadd.f32 %v2623, %v2535
    %v2627 = vxor.u32 %v2626, 2147483648
    %v2628 = vmul.f32 %v2627, 1.442695
    %v2629 = vpow.pop %v2628
    %v2630 = vadd.f32 %v2629, 1.0
    %v2631 = vrcp.pop %v2630
    %v2632 = vmul.f32 1.0, %v2631
    %2633 = vrot.lane.b32.xlu0 %v2632, 32
    %v2634 = vpop.permute.xlu0 %2633
    %v2635 = vmul.f32 %v2634, %v2535
    %v2636 = vadd.f32 %v2623, %v2635
    %v2637 = vtanh.pop %v2636
    %2638 = vrot.lane.b32.xlu0 %v2632, 16
    %v2639 = vpop.permute.xlu0 %2638
    %v2640 = vsub.f32 1.0, %v2639
    %v2641 = vmul.f32 %v2640, %v2637
    %v2642 = vmul.f32 %v2639, %v2397
    %v2643 = vadd.f32 %v2641, %v2642
    %v2644 = vlaneseq
    %v2645 = vshrl.u32 %v2644, 7
    %v2646 = vsub.s32 1, %v2645
    %v2647 = vrot.slane %v136, %v2646
    %2648 = vmatprep.subr.mxu0 0.0
    %2649 = vmatpush1.msra.mxu0 %v119
    %2650 = vmatprep.subr.mxu0 0.0
    %2651 = vmatpush1.msra.mxu0 %v120
    %2652 = vmatprep.subr.mxu0 0.0
    %2653 = vmatpush1.msra.mxu0 %v121
    %2654 = vmatprep.subr.mxu0 0.0
    %2655 = vmatpush1.msra.mxu0 %v122
    %2656 = vmatprep.subr.mxu0 0.0
    %2657 = vmatpush1.msra.mxu0 %v123
    %2658 = vmatprep.subr.mxu0 0.0
    %2659 = vmatpush1.msra.mxu0 %v124
    %2660 = vmatprep.subr.mxu0 0.0
    %2661 = vmatpush1.msra.mxu0 %v125
    %2662 = vmatprep.subr.mxu0 0.0
    %2663 = vmatpush1.msra.mxu0 %v126
    %2664 = vmatprep.subr.mxu0 0.0
    %2665 = vmatpush1.msra.mxu0 %v127
    %2666 = vmatprep.subr.mxu0 0.0
    %2667 = vmatpush1.msra.mxu0 %v128
    %2668 = vmatprep.subr.mxu0 0.0
    %2669 = vmatpush1.msra.mxu0 %v129
    %2670 = vmatprep.subr.mxu0 0.0
    %2671 = vmatpush1.msra.mxu0 %v130
    %2672 = vmatprep.subr.mxu0 0.0
    %2673 = vmatpush1.msra.mxu0 %v131
    %2674 = vmatprep.subr.mxu0 0.0
    %2675 = vmatpush1.msra.mxu0 %v132
    %2676 = vmatprep.subr.mxu0 0.0
    %2677 = vmatpush1.msra.mxu0 %v133
    %2678 = vmatprep.subr.mxu0 0.0
    %2679 = vmatpush1.msra.mxu0 %v134
    %2680 = vmatprep.subr.mxu0 0.0
    %2681 = vmatpush1.msra.mxu0 0.0
    %2682 = vmatprep.subr.mxu0 0.0
    %2683 = vmatpush1.msra.mxu0 0.0
    %2684 = vmatprep.subr.mxu0 0.0
    %2685 = vmatpush1.msra.mxu0 0.0
    %2686 = vmatprep.subr.mxu0 0.0
    %2687 = vmatpush1.msra.mxu0 0.0
    %2688 = vmatprep.subr.mxu0 0.0
    %2689 = vmatpush1.msra.mxu0 0.0
    %2690 = vmatprep.subr.mxu0 0.0
    %2691 = vmatpush1.msra.mxu0 0.0
    %2692 = vmatprep.subr.mxu0 0.0
    %2693 = vmatpush1.msra.mxu0 0.0
    %2694 = vmatprep.subr.mxu0 0.0
    %2695 = vmatpush1.msra.mxu0 0.0
    %2696 = vmatprep.subr.mxu0 0.0
    %2697 = vmatpush1.msra.mxu0 0.0
    %2698 = vmatprep.subr.mxu0 0.0
    %2699 = vmatpush1.msra.mxu0 0.0
    %2700 = vmatprep.subr.mxu0 0.0
    %2701 = vmatpush1.msra.mxu0 0.0
    %2702 = vmatprep.subr.mxu0 0.0
    %2703 = vmatpush1.msra.mxu0 0.0
    %2704 = vmatprep.subr.mxu0 0.0
    %2705 = vmatpush1.msra.mxu0 0.0
    %2706 = vmatprep.subr.mxu0 0.0
    %2707 = vmatpush1.msra.mxu0 0.0
    %2708 = vmatprep.subr.mxu0 0.0
    %2709 = vmatpush1.msra.mxu0 0.0
    %2710 = vmatprep.subr.mxu0 0.0
    %2711 = vmatpush1.msra.mxu0 0.0
    %2712 = vmatprep.mubr.f32.mxu0 0.0
    %2713 = vmatmul.mubr.f32.gmra.mrb[0].mxu0 %v2643
    %v2714 = vpop.f32.mrb[0].mxu0
    %v2715 = vadd.f32 %v2647, %v2714
    %v2716 = vpop.f32.mrb[0].mxu0
    %2717 = vdwg.mxu0
    %2718 = vrot.lane.b32.xlu0 %v2715, 112
    %v2719 = vpop.permute.xlu0 %2718
    %v2720 = vxor.u32 %v2719, 2147483648
    %v2721 = vmul.f32 %v2720, 1.442695
    %v2722 = vpow.pop %v2721
    %v2723 = vadd.f32 %v2722, 1.0
    %v2724 = vrcp.pop %v2723
    %v2725 = vmul.f32 1.0, %v2724
    %v2726 = vmul.f32 %v2715, %v2725
    %2727 = vst [vmem:[#allocation5] sm:$0xff] %v2726
    // Predicated region
    $region18: #{tpu_custom_call.1} parent=1 // pred_check
      _
    $region19: #{tpu_custom_call.1} parent=1 // pred_check_branch
      %2729 = sbr.rel (0) target = $region21
    $region20: #{tpu_custom_call.1} parent=1 // pred_region
      %s2731 = ssub.s32 128, 128
      %2732 = vsyncadd [#allocation4], %s2731
      %s2734 = sshll.u32 [#allocation5], 4
      %s2735 = int_to_ptr.vmem [resolvable:$true] %s2734
      %2737 = dma.vmem_to_hbm [thread:$0]  %s2735, 128, %s3, [#allocation4]
    $region21: #{tpu_custom_call.1} parent=1 // pred_fallthru
      _
    // Predicated region
    $region22: #{tpu_custom_call.1} parent=1 // pred_check
      _
    $region23: #{tpu_custom_call.1} parent=1 // pred_check_branch
      %2739 = sbr.rel (0) target = $region25
    $region24: #{tpu_custom_call.1} parent=1 // pred_region
      %2740 = dma.done [#allocation4], 128
    $region25: #{tpu_custom_call.1} parent=1 // pred_fallthru
      _
    %2741 = vsyncpa [#allocation3], 1
    %2742 = vsyncpa [#allocation4], 1

</llo_original>
